<compile_context>
chip_gen: v6e
topology: v6e:2x2x1
jax: 0.10.0
libtpu: 0.0.40
codegen_flags: <defaults>
</compile_context>

<pallas_src>
import math
from functools import partial

import numpy as np
import jax
import jax.numpy as jnp
from jax import lax
from jax.experimental import pallas as pl
from jax.experimental.pallas import tpu as pltpu

EPS = 1e-5  # torch.nn.LayerNorm default


def _layernorm(x, g, b):
    mu = jnp.mean(x, axis=-1, keepdims=True)
    var = jnp.mean((x - mu) ** 2, axis=-1, keepdims=True)
    return (x - mu) * lax.rsqrt(var + EPS) * g + b


def _gelu_exact(x):
    # torch.nn.GELU default (erf-based, exact)
    return 0.5 * x * (1.0 + lax.erf(x * 0.7071067811865476))


def block_kernel(xq_ref, xkv_ref,
                 ln1g_ref, ln1b_ref,
                 wq_ref, wk_ref, wv_ref,
                 wproj_ref, bproj_ref,
                 ln2g_ref, ln2b_ref,
                 wfc1_ref, bfc1_ref,
                 wfc2_ref, bfc2_ref,
                 o_ref,
                 acc_ref,
                 *, num_heads):
    xq = xq_ref[...]          # (tq, C) f32  — query-token tile (residual path)
    xkv = xkv_ref[...]        # (N,  C) f32  — all tokens (K/V source)

    # ------------- attention branch -------------
    hq = _layernorm(xq, ln1g_ref[0], ln1b_ref[0]).astype(jnp.bfloat16)
    hkv = _layernorm(xkv, ln1g_ref[0], ln1b_ref[0]).astype(jnp.bfloat16)

    acc_ref[...] = jnp.zeros_like(acc_ref)   # (tq, C) f32 head-output accumulator

    def head_body(h, carry):
        # 1/sqrt(head_dim) is already folded into wq in the wrapper.
        q = jnp.dot(hq, wq_ref[h], preferred_element_type=jnp.float32)    # (tq, hd)
        k = jnp.dot(hkv, wk_ref[h], preferred_element_type=jnp.float32)   # (N,  hd)
        v = jnp.dot(hkv, wv_ref[h], preferred_element_type=jnp.float32)   # (N,  hd)

        s = jnp.dot(q.astype(jnp.bfloat16), k.astype(jnp.bfloat16).T,
                    preferred_element_type=jnp.float32)                   # (tq, N)
        s = s - jnp.max(s, axis=-1, keepdims=True)
        p = jnp.exp(s)
        denom = jnp.sum(p, axis=-1, keepdims=True)                        # (tq, 1)

        o_h = jnp.dot(p.astype(jnp.bfloat16), v.astype(jnp.bfloat16),
                      preferred_element_type=jnp.float32)                 # (tq, hd)
        # normalize the small (tq, hd) output, not the (tq, N) matrix; approx
        # reciprocal runs on the otherwise-idle EUP slot.
        o_h = o_h * pl.reciprocal(denom, approx=True)

        # fold the output projection into the head loop: full-width (tq, C)
        # MXU accumulation, no concat / lane-dim slicing.
        acc_ref[...] += jnp.dot(o_h.astype(jnp.bfloat16), wproj_ref[h],
                                preferred_element_type=jnp.float32)
        return carry

    lax.fori_loop(0, num_heads, head_body, 0, unroll=True)

    x1 = xq + acc_ref[...] + bproj_ref[0]                                 # residual 1

    # ------------- MLP branch -------------
    h2 = _layernorm(x1, ln2g_ref[0], ln2b_ref[0]).astype(jnp.bfloat16)
    h2 = jnp.dot(h2, wfc1_ref[...],
                 preferred_element_type=jnp.float32) + bfc1_ref[0]
    h2 = _gelu_exact(h2)
    h2 = jnp.dot(h2.astype(jnp.bfloat16), wfc2_ref[...],
                 preferred_element_type=jnp.float32) + bfc2_ref[0]

    o_ref[...] = (x1 + h2).astype(o_ref.dtype)                            # residual 2


def block_forward(x, params, *, num_heads, q_tile=None):
    B, N, C = x.shape
    assert C % num_heads == 0
    hd = C // num_heads
    Ch = params["w_fc1"].shape[1]
    scale = float(hd) ** -0.5

    if q_tile is None:
        q_tile = N if N <= 512 else 512
    if N % q_tile != 0:
        q_tile = N
    n_qt = N // q_tile

    # ---- weight layout plumbing (once, outside the kernel) ----
    # qkv columns are ordered [q | k | v], each head-major with hd inner
    # (matches torch reshape(B, N, 3, nh, hd)).
    w_qkv = params["w_qkv"]                                        # (C, 3C)
    wq = (w_qkv[:, 0 * C:1 * C] * scale).reshape(C, num_heads, hd).transpose(1, 0, 2)
    wk = w_qkv[:, 1 * C:2 * C].reshape(C, num_heads, hd).transpose(1, 0, 2)
    wv = w_qkv[:, 2 * C:3 * C].reshape(C, num_heads, hd).transpose(1, 0, 2)
    wproj = params["w_proj"].reshape(num_heads, hd, C)             # rows = (head, hd) inputs

    bf16 = jnp.bfloat16
    wq, wk, wv, wproj = (w.astype(bf16) for w in (wq, wk, wv, wproj))
    wfc1 = params["w_fc1"].astype(bf16)
    wfc2 = params["w_fc2"].astype(bf16)

    const2 = lambda shape: pl.BlockSpec(shape, lambda b, qi: (0, 0))
    const3 = lambda shape: pl.BlockSpec(shape, lambda b, qi: (0, 0, 0))

    return pl.pallas_call(
        partial(block_kernel, num_heads=num_heads),
        out_shape=jax.ShapeDtypeStruct((B, N, C), jnp.float32),
        grid_spec=pltpu.PrefetchScalarGridSpec(
            num_scalar_prefetch=0,
            grid=(B, n_qt),
            in_specs=[
                pl.BlockSpec((None, q_tile, C), lambda b, qi: (b, qi, 0)),  # x (query tile)
                pl.BlockSpec((None, N, C), lambda b, qi: (b, 0, 0)),        # x (all tokens -> K/V)
                const2((1, C)), const2((1, C)),                             # ln1 gamma/beta
                const3((num_heads, C, hd)),                                 # wq (pre-scaled, bf16)
                const3((num_heads, C, hd)),                                 # wk (bf16)
                const3((num_heads, C, hd)),                                 # wv (bf16)
                const3((num_heads, hd, C)),                                 # wproj per head (bf16)
                const2((1, C)),                                             # b_proj
                const2((1, C)), const2((1, C)),                             # ln2 gamma/beta
                const2((C, Ch)), const2((1, Ch)),                           # fc1 W (bf16), b
                const2((Ch, C)), const2((1, C)),                            # fc2 W (bf16), b
            ],
            out_specs=pl.BlockSpec((None, q_tile, C), lambda b, qi: (b, qi, 0)),
            scratch_shapes=[pltpu.VMEM((q_tile, C), jnp.float32)],
        ),
        compiler_params=pltpu.CompilerParams(
            dimension_semantics=("parallel", "parallel"),
            vmem_limit_bytes=32 * 1024 * 1024,
        ),
    )(x, x,
      params["ln1_g"], params["ln1_b"],
      wq, wk, wv,
      wproj, params["b_proj"],
      params["ln2_g"], params["ln2_b"],
      wfc1, params["b_fc1"],
      wfc2, params["b_fc2"])


# ---------------- pure-JAX f32 reference (mirrors the PyTorch forward) ----------------
def block_reference(x, params, *, num_heads):
    B, N, C = x.shape
    hd = C // num_heads
    scale = hd ** -0.5

    def ln(v, g, b):
        mu = v.mean(-1, keepdims=True)
        var = ((v - mu) ** 2).mean(-1, keepdims=True)
        return (v - mu) / jnp.sqrt(var + EPS) * g + b

    h = ln(x, params["ln1_g"][0], params["ln1_b"][0])
    qkv = h @ params["w_qkv"]                                   # (B, N, 3C)
    qkv = qkv.reshape(B, N, 3, num_heads, hd).transpose(2, 0, 3, 1, 4)
    q, k, v = qkv[0], qkv[1], qkv[2]                            # (B, nh, N, hd)
    attn = (q @ k.transpose(0, 1, 3, 2)) * scale
    attn = jax.nn.softmax(attn, axis=-1)
    o = (attn @ v).transpose(0, 2, 1, 3).reshape(B, N, C)
    o = o @ params["w_proj"] + params["b_proj"][0]
    x = x + o

    h2 = ln(x, params["ln2_g"][0], params["ln2_b"][0])
    h2 = h2 @ params["w_fc1"] + params["b_fc1"][0]
    h2 = 0.5 * h2 * (1.0 + lax.erf(h2 * 0.7071067811865476))
    h2 = h2 @ params["w_fc2"] + params["b_fc2"][0]
    return x + h2


if __name__ == "__main__":
    # Small shapes consistent with the module: dim=32, num_heads=4, mlp_ratio=4,
    # tokens N = H*W with H = W = 8, batch B = 2.
    B, H, W = 2, 8, 8
    C, NH = 32, 4
    N = H * W
    CH = int(C * 4.0)

    key = jax.random.PRNGKey(0)
    ks = jax.random.split(key, 12)

    params = {
        "ln1_g":  jax.random.normal(ks[0], (1, C), jnp.float32) * 0.1 + 1.0,
        "ln1_b":  jax.random.normal(ks[1], (1, C), jnp.float32) * 0.1,
        # qkv: nn.Linear(dim, 3*dim, bias=False) -> transposed weight (C, 3C)
        "w_qkv":  jax.random.normal(ks[2], (C, 3 * C), jnp.float32) * 0.05,
        # proj: nn.Linear(dim, dim) with bias (transposed)
        "w_proj": jax.random.normal(ks[3], (C, C), jnp.float32) * 0.05,
        "b_proj": jax.random.normal(ks[4], (1, C), jnp.float32) * 0.05,
        "ln2_g":  jax.random.normal(ks[5], (1, C), jnp.float32) * 0.1 + 1.0,
        "ln2_b":  jax.random.normal(ks[6], (1, C), jnp.float32) * 0.1,
        # Mlp: fc1 (dim -> 4*dim), GELU, fc2 (4*dim -> dim), both with bias
        "w_fc1":  jax.random.normal(ks[7], (C, CH), jnp.float32) * 0.05,
        "b_fc1":  jax.random.normal(ks[8], (1, CH), jnp.float32) * 0.05,
        "w_fc2":  jax.random.normal(ks[9], (CH, C), jnp.float32) * 0.05,
        "b_fc2":  jax.random.normal(ks[10], (1, C), jnp.float32) * 0.05,
    }
    x = jax.random.normal(ks[11], (B, N, C), jnp.float32)

    out = block_forward(x, params, num_heads=NH)
    out = jax.block_until_ready(out)

    ref = block_reference(x, params, num_heads=NH)
    assert out.shape == (B, N, C)
    err = np.max(np.abs(np.asarray(out) - np.asarray(ref)))
    # bf16 MXU inputs with f32 accumulation -> tolerance loosened vs pure f32.
    assert np.allclose(np.asarray(out), np.asarray(ref), atol=3e-2, rtol=3e-2), (
        f"mismatch vs reference: max abs err {err}")

    # TODO(synk): dropout / drop_path / layer_scale are identity at module defaults
    # (p=0, layer_scale=False); the windowed=True (WindowedAttention) branch is not modeled.
    print("KERNEL_OK")
</pallas_src>

<mosaic_0001>
module attributes {stable_mosaic.version = 11 : i64} {
  func.func @block_kernel(%arg0: i32, %arg1: i32, %arg2: memref<1x64x32xf32, #tpu.memory_space<vmem>>, %arg3: memref<1x64x32xf32, #tpu.memory_space<vmem>>, %arg4: memref<1x32xf32, #tpu.memory_space<vmem>>, %arg5: memref<1x32xf32, #tpu.memory_space<vmem>>, %arg6: memref<4x32x8xbf16, #tpu.memory_space<vmem>>, %arg7: memref<4x32x8xbf16, #tpu.memory_space<vmem>>, %arg8: memref<4x32x8xbf16, #tpu.memory_space<vmem>>, %arg9: memref<4x8x32xbf16, #tpu.memory_space<vmem>>, %arg10: memref<1x32xf32, #tpu.memory_space<vmem>>, %arg11: memref<1x32xf32, #tpu.memory_space<vmem>>, %arg12: memref<1x32xf32, #tpu.memory_space<vmem>>, %arg13: memref<32x128xbf16, #tpu.memory_space<vmem>>, %arg14: memref<1x128xf32, #tpu.memory_space<vmem>>, %arg15: memref<128x32xbf16, #tpu.memory_space<vmem>>, %arg16: memref<1x32xf32, #tpu.memory_space<vmem>>, %arg17: memref<1x64x32xf32, #tpu.memory_space<vmem>>, %arg18: memref<64x32xf32, #tpu.memory_space<vmem>>) attributes {dimension_semantics = [#tpu.dimension_semantics<parallel>, #tpu.dimension_semantics<parallel>], iteration_bounds = array<i64: 2, 1>, scalar_prefetch = 0 : i64, scratch_operands = 1 : i64, tpu.core_type = #tpu.core_type<tc>, window_params = [{transform_indices = @transform_0, window_bounds = array<i64: 1, 64, 32>}, {transform_indices = @transform_1, window_bounds = array<i64: 1, 64, 32>}, {pipeline_mode = #tpu.pipeline_mode<synchronous>, transform_indices = @transform_2, window_bounds = array<i64: 1, 32>}, {pipeline_mode = #tpu.pipeline_mode<synchronous>, transform_indices = @transform_3, window_bounds = array<i64: 1, 32>}, {pipeline_mode = #tpu.pipeline_mode<synchronous>, transform_indices = @transform_4, window_bounds = array<i64: 4, 32, 8>}, {pipeline_mode = #tpu.pipeline_mode<synchronous>, transform_indices = @transform_5, window_bounds = array<i64: 4, 32, 8>}, {pipeline_mode = #tpu.pipeline_mode<synchronous>, transform_indices = @transform_6, window_bounds = array<i64: 4, 32, 8>}, {pipeline_mode = #tpu.pipeline_mode<synchronous>, transform_indices = @transform_7, window_bounds = array<i64: 4, 8, 32>}, {pipeline_mode = #tpu.pipeline_mode<synchronous>, transform_indices = @transform_8, window_bounds = array<i64: 1, 32>}, {pipeline_mode = #tpu.pipeline_mode<synchronous>, transform_indices = @transform_9, window_bounds = array<i64: 1, 32>}, {pipeline_mode = #tpu.pipeline_mode<synchronous>, transform_indices = @transform_10, window_bounds = array<i64: 1, 32>}, {pipeline_mode = #tpu.pipeline_mode<synchronous>, transform_indices = @transform_11, window_bounds = array<i64: 32, 128>}, {pipeline_mode = #tpu.pipeline_mode<synchronous>, transform_indices = @transform_12, window_bounds = array<i64: 1, 128>}, {pipeline_mode = #tpu.pipeline_mode<synchronous>, transform_indices = @transform_13, window_bounds = array<i64: 128, 32>}, {pipeline_mode = #tpu.pipeline_mode<synchronous>, transform_indices = @transform_14, window_bounds = array<i64: 1, 32>}, {transform_indices = @transform_15, window_bounds = array<i64: 1, 64, 32>}]} {
    %c0 = arith.constant 0 : index
    %c0_0 = arith.constant 0 : index
    %c0_1 = arith.constant 0 : index
    %0 = vector.load %arg2[%c0, %c0_0, %c0_1] : memref<1x64x32xf32, #tpu.memory_space<vmem>>, vector<1x64x32xf32>
    %1 = vector.shape_cast %0 : vector<1x64x32xf32> to vector<64x32xf32>
    %c0_2 = arith.constant 0 : index
    %c0_3 = arith.constant 0 : index
    %c0_4 = arith.constant 0 : index
    %2 = vector.load %arg3[%c0_2, %c0_3, %c0_4] : memref<1x64x32xf32, #tpu.memory_space<vmem>>, vector<1x64x32xf32>
    %3 = vector.shape_cast %2 : vector<1x64x32xf32> to vector<64x32xf32>
    %c0_5 = arith.constant 0 : index
    %c0_6 = arith.constant 0 : index
    %4 = vector.load %arg4[%c0_5, %c0_6] : memref<1x32xf32, #tpu.memory_space<vmem>>, vector<1x32xf32>
    %5 = vector.shape_cast %4 : vector<1x32xf32> to vector<32xf32>
    %c0_7 = arith.constant 0 : index
    %c0_8 = arith.constant 0 : index
    %6 = vector.load %arg5[%c0_7, %c0_8] : memref<1x32xf32, #tpu.memory_space<vmem>>, vector<1x32xf32>
    %7 = vector.shape_cast %6 : vector<1x32xf32> to vector<32xf32>
    %cst = arith.constant dense<0.000000e+00> : vector<64xf32>
    %8 = vector.multi_reduction <add>, %1, %cst [1] : vector<64x32xf32> to vector<64xf32>
    %9 = vector.shape_cast %8 : vector<64xf32> to vector<64x1xf32>
    %cst_9 = arith.constant 3.200000e+01 : f32
    %10 = vector.broadcast %cst_9 : f32 to vector<64x1xf32>
    %11 = arith.divf %9, %10 : vector<64x1xf32>
    %12 = vector.broadcast %11 : vector<64x1xf32> to vector<64x32xf32>
    %13 = arith.subf %1, %12 : vector<64x32xf32>
    %14 = arith.mulf %13, %13 : vector<64x32xf32>
    %cst_10 = arith.constant dense<0.000000e+00> : vector<64xf32>
    %15 = vector.multi_reduction <add>, %14, %cst_10 [1] : vector<64x32xf32> to vector<64xf32>
    %16 = vector.shape_cast %15 : vector<64xf32> to vector<64x1xf32>
    %cst_11 = arith.constant 3.200000e+01 : f32
    %17 = vector.broadcast %cst_11 : f32 to vector<64x1xf32>
    %18 = arith.divf %16, %17 : vector<64x1xf32>
    %19 = vector.broadcast %11 : vector<64x1xf32> to vector<64x32xf32>
    %20 = arith.subf %1, %19 : vector<64x32xf32>
    %cst_12 = arith.constant 9.99999974E-6 : f32
    %21 = vector.broadcast %cst_12 : f32 to vector<64x1xf32>
    %22 = arith.addf %18, %21 : vector<64x1xf32>
    %23 = math.rsqrt %22 : vector<64x1xf32>
    %24 = vector.broadcast %23 : vector<64x1xf32> to vector<64x32xf32>
    %25 = arith.mulf %20, %24 : vector<64x32xf32>
    %26 = vector.shape_cast %5 : vector<32xf32> to vector<1x32xf32>
    %27 = vector.broadcast %26 : vector<1x32xf32> to vector<64x32xf32>
    %28 = arith.mulf %25, %27 : vector<64x32xf32>
    %29 = vector.shape_cast %7 : vector<32xf32> to vector<1x32xf32>
    %30 = vector.broadcast %29 : vector<1x32xf32> to vector<64x32xf32>
    %31 = arith.addf %28, %30 : vector<64x32xf32>
    %32 = arith.truncf %31 : vector<64x32xf32> to vector<64x32xbf16>
    %c0_13 = arith.constant 0 : index
    %c0_14 = arith.constant 0 : index
    %33 = vector.load %arg4[%c0_13, %c0_14] : memref<1x32xf32, #tpu.memory_space<vmem>>, vector<1x32xf32>
    %34 = vector.shape_cast %33 : vector<1x32xf32> to vector<32xf32>
    %c0_15 = arith.constant 0 : index
    %c0_16 = arith.constant 0 : index
    %35 = vector.load %arg5[%c0_15, %c0_16] : memref<1x32xf32, #tpu.memory_space<vmem>>, vector<1x32xf32>
    %36 = vector.shape_cast %35 : vector<1x32xf32> to vector<32xf32>
    %cst_17 = arith.constant dense<0.000000e+00> : vector<64xf32>
    %37 = vector.multi_reduction <add>, %3, %cst_17 [1] : vector<64x32xf32> to vector<64xf32>
    %38 = vector.shape_cast %37 : vector<64xf32> to vector<64x1xf32>
    %cst_18 = arith.constant 3.200000e+01 : f32
    %39 = vector.broadcast %cst_18 : f32 to vector<64x1xf32>
    %40 = arith.divf %38, %39 : vector<64x1xf32>
    %41 = vector.broadcast %40 : vector<64x1xf32> to vector<64x32xf32>
    %42 = arith.subf %3, %41 : vector<64x32xf32>
    %43 = arith.mulf %42, %42 : vector<64x32xf32>
    %cst_19 = arith.constant dense<0.000000e+00> : vector<64xf32>
    %44 = vector.multi_reduction <add>, %43, %cst_19 [1] : vector<64x32xf32> to vector<64xf32>
    %45 = vector.shape_cast %44 : vector<64xf32> to vector<64x1xf32>
    %cst_20 = arith.constant 3.200000e+01 : f32
    %46 = vector.broadcast %cst_20 : f32 to vector<64x1xf32>
    %47 = arith.divf %45, %46 : vector<64x1xf32>
    %48 = vector.broadcast %40 : vector<64x1xf32> to vector<64x32xf32>
    %49 = arith.subf %3, %48 : vector<64x32xf32>
    %cst_21 = arith.constant 9.99999974E-6 : f32
    %50 = vector.broadcast %cst_21 : f32 to vector<64x1xf32>
    %51 = arith.addf %47, %50 : vector<64x1xf32>
    %52 = math.rsqrt %51 : vector<64x1xf32>
    %53 = vector.broadcast %52 : vector<64x1xf32> to vector<64x32xf32>
    %54 = arith.mulf %49, %53 : vector<64x32xf32>
    %55 = vector.shape_cast %34 : vector<32xf32> to vector<1x32xf32>
    %56 = vector.broadcast %55 : vector<1x32xf32> to vector<64x32xf32>
    %57 = arith.mulf %54, %56 : vector<64x32xf32>
    %58 = vector.shape_cast %36 : vector<32xf32> to vector<1x32xf32>
    %59 = vector.broadcast %58 : vector<1x32xf32> to vector<64x32xf32>
    %60 = arith.addf %57, %59 : vector<64x32xf32>
    %61 = arith.truncf %60 : vector<64x32xf32> to vector<64x32xbf16>
    %cst_22 = arith.constant 0.000000e+00 : f32
    %62 = vector.broadcast %cst_22 : f32 to vector<64x32xf32>
    %c0_23 = arith.constant 0 : index
    %c0_24 = arith.constant 0 : index
    %63 = vector.load %arg18[%c0_23, %c0_24] : memref<64x32xf32, #tpu.memory_space<vmem>>, vector<64x32xf32>
    tpu.vector_store %arg18[%c0_23, %c0_24], %62 {strides = array<i32>} : memref<64x32xf32, #tpu.memory_space<vmem>>, vector<64x32xf32>,
    %c0_i32 = arith.constant 0 : i32
    %64 = arith.index_cast %c0_i32 : i32 to index
    %c0_25 = arith.constant 0 : index
    %c0_26 = arith.constant 0 : index
    %65 = vector.load %arg6[%64, %c0_25, %c0_26] : memref<4x32x8xbf16, #tpu.memory_space<vmem>>, vector<1x32x8xbf16>
    %66 = vector.shape_cast %65 : vector<1x32x8xbf16> to vector<32x8xbf16>
    %cst_27 = arith.constant dense<0.000000e+00> : vector<64x8xf32>
    %67 = tpu.matmul %32, %66, %cst_27 {dimension_numbers = #tpu.dot_dimension_numbers<[1], [0], [0], [1], [0, 0, 1, 1], [], []>} : vector<64x32xbf16>, vector<32x8xbf16>, vector<64x8xf32> -> vector<64x8xf32>
    %68 = arith.index_cast %c0_i32 : i32 to index
    %c0_28 = arith.constant 0 : index
    %c0_29 = arith.constant 0 : index
    %69 = vector.load %arg7[%68, %c0_28, %c0_29] : memref<4x32x8xbf16, #tpu.memory_space<vmem>>, vector<1x32x8xbf16>
    %70 = vector.shape_cast %69 : vector<1x32x8xbf16> to vector<32x8xbf16>
    %cst_30 = arith.constant dense<0.000000e+00> : vector<64x8xf32>
    %71 = tpu.matmul %61, %70, %cst_30 {dimension_numbers = #tpu.dot_dimension_numbers<[1], [0], [0], [1], [0, 0, 1, 1], [], []>} : vector<64x32xbf16>, vector<32x8xbf16>, vector<64x8xf32> -> vector<64x8xf32>
    %72 = arith.index_cast %c0_i32 : i32 to index
    %c0_31 = arith.constant 0 : index
    %c0_32 = arith.constant 0 : index
    %73 = vector.load %arg8[%72, %c0_31, %c0_32] : memref<4x32x8xbf16, #tpu.memory_space<vmem>>, vector<1x32x8xbf16>
    %74 = vector.shape_cast %73 : vector<1x32x8xbf16> to vector<32x8xbf16>
    %cst_33 = arith.constant dense<0.000000e+00> : vector<64x8xf32>
    %75 = tpu.matmul %61, %74, %cst_33 {dimension_numbers = #tpu.dot_dimension_numbers<[1], [0], [0], [1], [0, 0, 1, 1], [], []>} : vector<64x32xbf16>, vector<32x8xbf16>, vector<64x8xf32> -> vector<64x8xf32>
    %76 = arith.truncf %67 : vector<64x8xf32> to vector<64x8xbf16>
    %77 = arith.truncf %71 : vector<64x8xf32> to vector<64x8xbf16>
    %78 = tpu.transpose %77, [1, 0] : vector<64x8xbf16> -> vector<8x64xbf16>
    %cst_34 = arith.constant dense<0.000000e+00> : vector<64x64xf32>
    %79 = tpu.matmul %76, %78, %cst_34 {dimension_numbers = #tpu.dot_dimension_numbers<[1], [0], [0], [1], [0, 0, 1, 1], [], []>} : vector<64x8xbf16>, vector<8x64xbf16>, vector<64x64xf32> -> vector<64x64xf32>
    %cst_35 = arith.constant dense<0xFF800000> : vector<64xf32>
    %80 = vector.multi_reduction <maximumf>, %79, %cst_35 [1] : vector<64x64xf32> to vector<64xf32>
    %81 = vector.shape_cast %80 : vector<64xf32> to vector<64x1xf32>
    %82 = vector.broadcast %81 : vector<64x1xf32> to vector<64x64xf32>
    %83 = arith.subf %79, %82 : vector<64x64xf32>
    %84 = math.exp %83 : vector<64x64xf32>
    %cst_36 = arith.constant dense<0.000000e+00> : vector<64xf32>
    %85 = vector.multi_reduction <add>, %84, %cst_36 [1] : vector<64x64xf32> to vector<64xf32>
    %86 = vector.shape_cast %85 : vector<64xf32> to vector<64x1xf32>
    %87 = arith.truncf %84 : vector<64x64xf32> to vector<64x64xbf16>
    %88 = arith.truncf %75 : vector<64x8xf32> to vector<64x8xbf16>
    %cst_37 = arith.constant dense<0.000000e+00> : vector<64x8xf32>
    %89 = tpu.matmul %87, %88, %cst_37 {dimension_numbers = #tpu.dot_dimension_numbers<[1], [0], [0], [1], [0, 0, 1, 1], [], []>} : vector<64x64xbf16>, vector<64x8xbf16>, vector<64x8xf32> -> vector<64x8xf32>
    %90 = tpu.reciprocal %86 {approx = true} : vector<64x1xf32> -> vector<64x1xf32>
    %91 = vector.broadcast %90 : vector<64x1xf32> to vector<64x8xf32>
    %92 = arith.mulf %89, %91 : vector<64x8xf32>
    %c0_38 = arith.constant 0 : index
    %c0_39 = arith.constant 0 : index
    %93 = vector.load %arg18[%c0_38, %c0_39] : memref<64x32xf32, #tpu.memory_space<vmem>>, vector<64x32xf32>
    %94 = arith.truncf %92 : vector<64x8xf32> to vector<64x8xbf16>
    %95 = arith.index_cast %c0_i32 : i32 to index
    %c0_40 = arith.constant 0 : index
    %c0_41 = arith.constant 0 : index
    %96 = vector.load %arg9[%95, %c0_40, %c0_41] : memref<4x8x32xbf16, #tpu.memory_space<vmem>>, vector<1x8x32xbf16>
    %97 = vector.shape_cast %96 : vector<1x8x32xbf16> to vector<8x32xbf16>
    %cst_42 = arith.constant dense<0.000000e+00> : vector<64x32xf32>
    %98 = tpu.matmul %94, %97, %cst_42 {dimension_numbers = #tpu.dot_dimension_numbers<[1], [0], [0], [1], [0, 0, 1, 1], [], []>} : vector<64x8xbf16>, vector<8x32xbf16>, vector<64x32xf32> -> vector<64x32xf32>
    %99 = arith.addf %93, %98 : vector<64x32xf32>
    %c0_43 = arith.constant 0 : index
    %c0_44 = arith.constant 0 : index
    %100 = vector.load %arg18[%c0_43, %c0_44] : memref<64x32xf32, #tpu.memory_space<vmem>>, vector<64x32xf32>
    tpu.vector_store %arg18[%c0_43, %c0_44], %99 {strides = array<i32>} : memref<64x32xf32, #tpu.memory_space<vmem>>, vector<64x32xf32>,
    %c1_i32 = arith.constant 1 : i32
    %101 = arith.index_cast %c1_i32 : i32 to index
    %c0_45 = arith.constant 0 : index
    %c0_46 = arith.constant 0 : index
    %102 = vector.load %arg6[%101, %c0_45, %c0_46] : memref<4x32x8xbf16, #tpu.memory_space<vmem>>, vector<1x32x8xbf16>
    %103 = vector.shape_cast %102 : vector<1x32x8xbf16> to vector<32x8xbf16>
    %cst_47 = arith.constant dense<0.000000e+00> : vector<64x8xf32>
    %104 = tpu.matmul %32, %103, %cst_47 {dimension_numbers = #tpu.dot_dimension_numbers<[1], [0], [0], [1], [0, 0, 1, 1], [], []>} : vector<64x32xbf16>, vector<32x8xbf16>, vector<64x8xf32> -> vector<64x8xf32>
    %105 = arith.index_cast %c1_i32 : i32 to index
    %c0_48 = arith.constant 0 : index
    %c0_49 = arith.constant 0 : index
    %106 = vector.load %arg7[%105, %c0_48, %c0_49] : memref<4x32x8xbf16, #tpu.memory_space<vmem>>, vector<1x32x8xbf16>
    %107 = vector.shape_cast %106 : vector<1x32x8xbf16> to vector<32x8xbf16>
    %cst_50 = arith.constant dense<0.000000e+00> : vector<64x8xf32>
    %108 = tpu.matmul %61, %107, %cst_50 {dimension_numbers = #tpu.dot_dimension_numbers<[1], [0], [0], [1], [0, 0, 1, 1], [], []>} : vector<64x32xbf16>, vector<32x8xbf16>, vector<64x8xf32> -> vector<64x8xf32>
    %109 = arith.index_cast %c1_i32 : i32 to index
    %c0_51 = arith.constant 0 : index
    %c0_52 = arith.constant 0 : index
    %110 = vector.load %arg8[%109, %c0_51, %c0_52] : memref<4x32x8xbf16, #tpu.memory_space<vmem>>, vector<1x32x8xbf16>
    %111 = vector.shape_cast %110 : vector<1x32x8xbf16> to vector<32x8xbf16>
    %cst_53 = arith.constant dense<0.000000e+00> : vector<64x8xf32>
    %112 = tpu.matmul %61, %111, %cst_53 {dimension_numbers = #tpu.dot_dimension_numbers<[1], [0], [0], [1], [0, 0, 1, 1], [], []>} : vector<64x32xbf16>, vector<32x8xbf16>, vector<64x8xf32> -> vector<64x8xf32>
    %113 = arith.truncf %104 : vector<64x8xf32> to vector<64x8xbf16>
    %114 = arith.truncf %108 : vector<64x8xf32> to vector<64x8xbf16>
    %115 = tpu.transpose %114, [1, 0] : vector<64x8xbf16> -> vector<8x64xbf16>
    %cst_54 = arith.constant dense<0.000000e+00> : vector<64x64xf32>
    %116 = tpu.matmul %113, %115, %cst_54 {dimension_numbers = #tpu.dot_dimension_numbers<[1], [0], [0], [1], [0, 0, 1, 1], [], []>} : vector<64x8xbf16>, vector<8x64xbf16>, vector<64x64xf32> -> vector<64x64xf32>
    %cst_55 = arith.constant dense<0xFF800000> : vector<64xf32>
    %117 = vector.multi_reduction <maximumf>, %116, %cst_55 [1] : vector<64x64xf32> to vector<64xf32>
    %118 = vector.shape_cast %117 : vector<64xf32> to vector<64x1xf32>
    %119 = vector.broadcast %118 : vector<64x1xf32> to vector<64x64xf32>
    %120 = arith.subf %116, %119 : vector<64x64xf32>
    %121 = math.exp %120 : vector<64x64xf32>
    %cst_56 = arith.constant dense<0.000000e+00> : vector<64xf32>
    %122 = vector.multi_reduction <add>, %121, %cst_56 [1] : vector<64x64xf32> to vector<64xf32>
    %123 = vector.shape_cast %122 : vector<64xf32> to vector<64x1xf32>
    %124 = arith.truncf %121 : vector<64x64xf32> to vector<64x64xbf16>
    %125 = arith.truncf %112 : vector<64x8xf32> to vector<64x8xbf16>
    %cst_57 = arith.constant dense<0.000000e+00> : vector<64x8xf32>
    %126 = tpu.matmul %124, %125, %cst_57 {dimension_numbers = #tpu.dot_dimension_numbers<[1], [0], [0], [1], [0, 0, 1, 1], [], []>} : vector<64x64xbf16>, vector<64x8xbf16>, vector<64x8xf32> -> vector<64x8xf32>
    %127 = tpu.reciprocal %123 {approx = true} : vector<64x1xf32> -> vector<64x1xf32>
    %128 = vector.broadcast %127 : vector<64x1xf32> to vector<64x8xf32>
    %129 = arith.mulf %126, %128 : vector<64x8xf32>
    %c0_58 = arith.constant 0 : index
    %c0_59 = arith.constant 0 : index
    %130 = vector.load %arg18[%c0_58, %c0_59] : memref<64x32xf32, #tpu.memory_space<vmem>>, vector<64x32xf32>
    %131 = arith.truncf %129 : vector<64x8xf32> to vector<64x8xbf16>
    %132 = arith.index_cast %c1_i32 : i32 to index
    %c0_60 = arith.constant 0 : index
    %c0_61 = arith.constant 0 : index
    %133 = vector.load %arg9[%132, %c0_60, %c0_61] : memref<4x8x32xbf16, #tpu.memory_space<vmem>>, vector<1x8x32xbf16>
    %134 = vector.shape_cast %133 : vector<1x8x32xbf16> to vector<8x32xbf16>
    %cst_62 = arith.constant dense<0.000000e+00> : vector<64x32xf32>
    %135 = tpu.matmul %131, %134, %cst_62 {dimension_numbers = #tpu.dot_dimension_numbers<[1], [0], [0], [1], [0, 0, 1, 1], [], []>} : vector<64x8xbf16>, vector<8x32xbf16>, vector<64x32xf32> -> vector<64x32xf32>
    %136 = arith.addf %130, %135 : vector<64x32xf32>
    %c0_63 = arith.constant 0 : index
    %c0_64 = arith.constant 0 : index
    %137 = vector.load %arg18[%c0_63, %c0_64] : memref<64x32xf32, #tpu.memory_space<vmem>>, vector<64x32xf32>
    tpu.vector_store %arg18[%c0_63, %c0_64], %136 {strides = array<i32>} : memref<64x32xf32, #tpu.memory_space<vmem>>, vector<64x32xf32>,
    %c2_i32 = arith.constant 2 : i32
    %138 = arith.index_cast %c2_i32 : i32 to index
    %c0_65 = arith.constant 0 : index
    %c0_66 = arith.constant 0 : index
    %139 = vector.load %arg6[%138, %c0_65, %c0_66] : memref<4x32x8xbf16, #tpu.memory_space<vmem>>, vector<1x32x8xbf16>
    %140 = vector.shape_cast %139 : vector<1x32x8xbf16> to vector<32x8xbf16>
    %cst_67 = arith.constant dense<0.000000e+00> : vector<64x8xf32>
    %141 = tpu.matmul %32, %140, %cst_67 {dimension_numbers = #tpu.dot_dimension_numbers<[1], [0], [0], [1], [0, 0, 1, 1], [], []>} : vector<64x32xbf16>, vector<32x8xbf16>, vector<64x8xf32> -> vector<64x8xf32>
    %142 = arith.index_cast %c2_i32 : i32 to index
    %c0_68 = arith.constant 0 : index
    %c0_69 = arith.constant 0 : index
    %143 = vector.load %arg7[%142, %c0_68, %c0_69] : memref<4x32x8xbf16, #tpu.memory_space<vmem>>, vector<1x32x8xbf16>
    %144 = vector.shape_cast %143 : vector<1x32x8xbf16> to vector<32x8xbf16>
    %cst_70 = arith.constant dense<0.000000e+00> : vector<64x8xf32>
    %145 = tpu.matmul %61, %144, %cst_70 {dimension_numbers = #tpu.dot_dimension_numbers<[1], [0], [0], [1], [0, 0, 1, 1], [], []>} : vector<64x32xbf16>, vector<32x8xbf16>, vector<64x8xf32> -> vector<64x8xf32>
    %146 = arith.index_cast %c2_i32 : i32 to index
    %c0_71 = arith.constant 0 : index
    %c0_72 = arith.constant 0 : index
    %147 = vector.load %arg8[%146, %c0_71, %c0_72] : memref<4x32x8xbf16, #tpu.memory_space<vmem>>, vector<1x32x8xbf16>
    %148 = vector.shape_cast %147 : vector<1x32x8xbf16> to vector<32x8xbf16>
    %cst_73 = arith.constant dense<0.000000e+00> : vector<64x8xf32>
    %149 = tpu.matmul %61, %148, %cst_73 {dimension_numbers = #tpu.dot_dimension_numbers<[1], [0], [0], [1], [0, 0, 1, 1], [], []>} : vector<64x32xbf16>, vector<32x8xbf16>, vector<64x8xf32> -> vector<64x8xf32>
    %150 = arith.truncf %141 : vector<64x8xf32> to vector<64x8xbf16>
    %151 = arith.truncf %145 : vector<64x8xf32> to vector<64x8xbf16>
    %152 = tpu.transpose %151, [1, 0] : vector<64x8xbf16> -> vector<8x64xbf16>
    %cst_74 = arith.constant dense<0.000000e+00> : vector<64x64xf32>
    %153 = tpu.matmul %150, %152, %cst_74 {dimension_numbers = #tpu.dot_dimension_numbers<[1], [0], [0], [1], [0, 0, 1, 1], [], []>} : vector<64x8xbf16>, vector<8x64xbf16>, vector<64x64xf32> -> vector<64x64xf32>
    %cst_75 = arith.constant dense<0xFF800000> : vector<64xf32>
    %154 = vector.multi_reduction <maximumf>, %153, %cst_75 [1] : vector<64x64xf32> to vector<64xf32>
    %155 = vector.shape_cast %154 : vector<64xf32> to vector<64x1xf32>
    %156 = vector.broadcast %155 : vector<64x1xf32> to vector<64x64xf32>
    %157 = arith.subf %153, %156 : vector<64x64xf32>
    %158 = math.exp %157 : vector<64x64xf32>
    %cst_76 = arith.constant dense<0.000000e+00> : vector<64xf32>
    %159 = vector.multi_reduction <add>, %158, %cst_76 [1] : vector<64x64xf32> to vector<64xf32>
    %160 = vector.shape_cast %159 : vector<64xf32> to vector<64x1xf32>
    %161 = arith.truncf %158 : vector<64x64xf32> to vector<64x64xbf16>
    %162 = arith.truncf %149 : vector<64x8xf32> to vector<64x8xbf16>
    %cst_77 = arith.constant dense<0.000000e+00> : vector<64x8xf32>
    %163 = tpu.matmul %161, %162, %cst_77 {dimension_numbers = #tpu.dot_dimension_numbers<[1], [0], [0], [1], [0, 0, 1, 1], [], []>} : vector<64x64xbf16>, vector<64x8xbf16>, vector<64x8xf32> -> vector<64x8xf32>
    %164 = tpu.reciprocal %160 {approx = true} : vector<64x1xf32> -> vector<64x1xf32>
    %165 = vector.broadcast %164 : vector<64x1xf32> to vector<64x8xf32>
    %166 = arith.mulf %163, %165 : vector<64x8xf32>
    %c0_78 = arith.constant 0 : index
    %c0_79 = arith.constant 0 : index
    %167 = vector.load %arg18[%c0_78, %c0_79] : memref<64x32xf32, #tpu.memory_space<vmem>>, vector<64x32xf32>
    %168 = arith.truncf %166 : vector<64x8xf32> to vector<64x8xbf16>
    %169 = arith.index_cast %c2_i32 : i32 to index
    %c0_80 = arith.constant 0 : index
    %c0_81 = arith.constant 0 : index
    %170 = vector.load %arg9[%169, %c0_80, %c0_81] : memref<4x8x32xbf16, #tpu.memory_space<vmem>>, vector<1x8x32xbf16>
    %171 = vector.shape_cast %170 : vector<1x8x32xbf16> to vector<8x32xbf16>
    %cst_82 = arith.constant dense<0.000000e+00> : vector<64x32xf32>
    %172 = tpu.matmul %168, %171, %cst_82 {dimension_numbers = #tpu.dot_dimension_numbers<[1], [0], [0], [1], [0, 0, 1, 1], [], []>} : vector<64x8xbf16>, vector<8x32xbf16>, vector<64x32xf32> -> vector<64x32xf32>
    %173 = arith.addf %167, %172 : vector<64x32xf32>
    %c0_83 = arith.constant 0 : index
    %c0_84 = arith.constant 0 : index
    %174 = vector.load %arg18[%c0_83, %c0_84] : memref<64x32xf32, #tpu.memory_space<vmem>>, vector<64x32xf32>
    tpu.vector_store %arg18[%c0_83, %c0_84], %173 {strides = array<i32>} : memref<64x32xf32, #tpu.memory_space<vmem>>, vector<64x32xf32>,
    %c3_i32 = arith.constant 3 : i32
    %175 = arith.index_cast %c3_i32 : i32 to index
    %c0_85 = arith.constant 0 : index
    %c0_86 = arith.constant 0 : index
    %176 = vector.load %arg6[%175, %c0_85, %c0_86] : memref<4x32x8xbf16, #tpu.memory_space<vmem>>, vector<1x32x8xbf16>
    %177 = vector.shape_cast %176 : vector<1x32x8xbf16> to vector<32x8xbf16>
    %cst_87 = arith.constant dense<0.000000e+00> : vector<64x8xf32>
    %178 = tpu.matmul %32, %177, %cst_87 {dimension_numbers = #tpu.dot_dimension_numbers<[1], [0], [0], [1], [0, 0, 1, 1], [], []>} : vector<64x32xbf16>, vector<32x8xbf16>, vector<64x8xf32> -> vector<64x8xf32>
    %179 = arith.index_cast %c3_i32 : i32 to index
    %c0_88 = arith.constant 0 : index
    %c0_89 = arith.constant 0 : index
    %180 = vector.load %arg7[%179, %c0_88, %c0_89] : memref<4x32x8xbf16, #tpu.memory_space<vmem>>, vector<1x32x8xbf16>
    %181 = vector.shape_cast %180 : vector<1x32x8xbf16> to vector<32x8xbf16>
    %cst_90 = arith.constant dense<0.000000e+00> : vector<64x8xf32>
    %182 = tpu.matmul %61, %181, %cst_90 {dimension_numbers = #tpu.dot_dimension_numbers<[1], [0], [0], [1], [0, 0, 1, 1], [], []>} : vector<64x32xbf16>, vector<32x8xbf16>, vector<64x8xf32> -> vector<64x8xf32>
    %183 = arith.index_cast %c3_i32 : i32 to index
    %c0_91 = arith.constant 0 : index
    %c0_92 = arith.constant 0 : index
    %184 = vector.load %arg8[%183, %c0_91, %c0_92] : memref<4x32x8xbf16, #tpu.memory_space<vmem>>, vector<1x32x8xbf16>
    %185 = vector.shape_cast %184 : vector<1x32x8xbf16> to vector<32x8xbf16>
    %cst_93 = arith.constant dense<0.000000e+00> : vector<64x8xf32>
    %186 = tpu.matmul %61, %185, %cst_93 {dimension_numbers = #tpu.dot_dimension_numbers<[1], [0], [0], [1], [0, 0, 1, 1], [], []>} : vector<64x32xbf16>, vector<32x8xbf16>, vector<64x8xf32> -> vector<64x8xf32>
    %187 = arith.truncf %178 : vector<64x8xf32> to vector<64x8xbf16>
    %188 = arith.truncf %182 : vector<64x8xf32> to vector<64x8xbf16>
    %189 = tpu.transpose %188, [1, 0] : vector<64x8xbf16> -> vector<8x64xbf16>
    %cst_94 = arith.constant dense<0.000000e+00> : vector<64x64xf32>
    %190 = tpu.matmul %187, %189, %cst_94 {dimension_numbers = #tpu.dot_dimension_numbers<[1], [0], [0], [1], [0, 0, 1, 1], [], []>} : vector<64x8xbf16>, vector<8x64xbf16>, vector<64x64xf32> -> vector<64x64xf32>
    %cst_95 = arith.constant dense<0xFF800000> : vector<64xf32>
    %191 = vector.multi_reduction <maximumf>, %190, %cst_95 [1] : vector<64x64xf32> to vector<64xf32>
    %192 = vector.shape_cast %191 : vector<64xf32> to vector<64x1xf32>
    %193 = vector.broadcast %192 : vector<64x1xf32> to vector<64x64xf32>
    %194 = arith.subf %190, %193 : vector<64x64xf32>
    %195 = math.exp %194 : vector<64x64xf32>
    %cst_96 = arith.constant dense<0.000000e+00> : vector<64xf32>
    %196 = vector.multi_reduction <add>, %195, %cst_96 [1] : vector<64x64xf32> to vector<64xf32>
    %197 = vector.shape_cast %196 : vector<64xf32> to vector<64x1xf32>
    %198 = arith.truncf %195 : vector<64x64xf32> to vector<64x64xbf16>
    %199 = arith.truncf %186 : vector<64x8xf32> to vector<64x8xbf16>
    %cst_97 = arith.constant dense<0.000000e+00> : vector<64x8xf32>
    %200 = tpu.matmul %198, %199, %cst_97 {dimension_numbers = #tpu.dot_dimension_numbers<[1], [0], [0], [1], [0, 0, 1, 1], [], []>} : vector<64x64xbf16>, vector<64x8xbf16>, vector<64x8xf32> -> vector<64x8xf32>
    %201 = tpu.reciprocal %197 {approx = true} : vector<64x1xf32> -> vector<64x1xf32>
    %202 = vector.broadcast %201 : vector<64x1xf32> to vector<64x8xf32>
    %203 = arith.mulf %200, %202 : vector<64x8xf32>
    %c0_98 = arith.constant 0 : index
    %c0_99 = arith.constant 0 : index
    %204 = vector.load %arg18[%c0_98, %c0_99] : memref<64x32xf32, #tpu.memory_space<vmem>>, vector<64x32xf32>
    %205 = arith.truncf %203 : vector<64x8xf32> to vector<64x8xbf16>
    %206 = arith.index_cast %c3_i32 : i32 to index
    %c0_100 = arith.constant 0 : index
    %c0_101 = arith.constant 0 : index
    %207 = vector.load %arg9[%206, %c0_100, %c0_101] : memref<4x8x32xbf16, #tpu.memory_space<vmem>>, vector<1x8x32xbf16>
    %208 = vector.shape_cast %207 : vector<1x8x32xbf16> to vector<8x32xbf16>
    %cst_102 = arith.constant dense<0.000000e+00> : vector<64x32xf32>
    %209 = tpu.matmul %205, %208, %cst_102 {dimension_numbers = #tpu.dot_dimension_numbers<[1], [0], [0], [1], [0, 0, 1, 1], [], []>} : vector<64x8xbf16>, vector<8x32xbf16>, vector<64x32xf32> -> vector<64x32xf32>
    %210 = arith.addf %204, %209 : vector<64x32xf32>
    %c0_103 = arith.constant 0 : index
    %c0_104 = arith.constant 0 : index
    %211 = vector.load %arg18[%c0_103, %c0_104] : memref<64x32xf32, #tpu.memory_space<vmem>>, vector<64x32xf32>
    tpu.vector_store %arg18[%c0_103, %c0_104], %210 {strides = array<i32>} : memref<64x32xf32, #tpu.memory_space<vmem>>, vector<64x32xf32>,
    %c4_i32 = arith.constant 4 : i32
    %c0_105 = arith.constant 0 : index
    %c0_106 = arith.constant 0 : index
    %212 = vector.load %arg18[%c0_105, %c0_106] : memref<64x32xf32, #tpu.memory_space<vmem>>, vector<64x32xf32>
    %213 = arith.addf %1, %212 : vector<64x32xf32>
    %c0_107 = arith.constant 0 : index
    %c0_108 = arith.constant 0 : index
    %214 = vector.load %arg10[%c0_107, %c0_108] : memref<1x32xf32, #tpu.memory_space<vmem>>, vector<1x32xf32>
    %215 = vector.shape_cast %214 : vector<1x32xf32> to vector<32xf32>
    %216 = vector.shape_cast %215 : vector<32xf32> to vector<1x32xf32>
    %217 = vector.broadcast %216 : vector<1x32xf32> to vector<64x32xf32>
    %218 = arith.addf %213, %217 : vector<64x32xf32>
    %c0_109 = arith.constant 0 : index
    %c0_110 = arith.constant 0 : index
    %219 = vector.load %arg11[%c0_109, %c0_110] : memref<1x32xf32, #tpu.memory_space<vmem>>, vector<1x32xf32>
    %220 = vector.shape_cast %219 : vector<1x32xf32> to vector<32xf32>
    %c0_111 = arith.constant 0 : index
    %c0_112 = arith.constant 0 : index
    %221 = vector.load %arg12[%c0_111, %c0_112] : memref<1x32xf32, #tpu.memory_space<vmem>>, vector<1x32xf32>
    %222 = vector.shape_cast %221 : vector<1x32xf32> to vector<32xf32>
    %cst_113 = arith.constant dense<0.000000e+00> : vector<64xf32>
    %223 = vector.multi_reduction <add>, %218, %cst_113 [1] : vector<64x32xf32> to vector<64xf32>
    %224 = vector.shape_cast %223 : vector<64xf32> to vector<64x1xf32>
    %cst_114 = arith.constant 3.200000e+01 : f32
    %225 = vector.broadcast %cst_114 : f32 to vector<64x1xf32>
    %226 = arith.divf %224, %225 : vector<64x1xf32>
    %227 = vector.broadcast %226 : vector<64x1xf32> to vector<64x32xf32>
    %228 = arith.subf %218, %227 : vector<64x32xf32>
    %229 = arith.mulf %228, %228 : vector<64x32xf32>
    %cst_115 = arith.constant dense<0.000000e+00> : vector<64xf32>
    %230 = vector.multi_reduction <add>, %229, %cst_115 [1] : vector<64x32xf32> to vector<64xf32>
    %231 = vector.shape_cast %230 : vector<64xf32> to vector<64x1xf32>
    %cst_116 = arith.constant 3.200000e+01 : f32
    %232 = vector.broadcast %cst_116 : f32 to vector<64x1xf32>
    %233 = arith.divf %231, %232 : vector<64x1xf32>
    %234 = vector.broadcast %226 : vector<64x1xf32> to vector<64x32xf32>
    %235 = arith.subf %218, %234 : vector<64x32xf32>
    %cst_117 = arith.constant 9.99999974E-6 : f32
    %236 = vector.broadcast %cst_117 : f32 to vector<64x1xf32>
    %237 = arith.addf %233, %236 : vector<64x1xf32>
    %238 = math.rsqrt %237 : vector<64x1xf32>
    %239 = vector.broadcast %238 : vector<64x1xf32> to vector<64x32xf32>
    %240 = arith.mulf %235, %239 : vector<64x32xf32>
    %241 = vector.shape_cast %220 : vector<32xf32> to vector<1x32xf32>
    %242 = vector.broadcast %241 : vector<1x32xf32> to vector<64x32xf32>
    %243 = arith.mulf %240, %242 : vector<64x32xf32>
    %244 = vector.shape_cast %222 : vector<32xf32> to vector<1x32xf32>
    %245 = vector.broadcast %244 : vector<1x32xf32> to vector<64x32xf32>
    %246 = arith.addf %243, %245 : vector<64x32xf32>
    %247 = arith.truncf %246 : vector<64x32xf32> to vector<64x32xbf16>
    %c0_118 = arith.constant 0 : index
    %c0_119 = arith.constant 0 : index
    %248 = vector.load %arg13[%c0_118, %c0_119] : memref<32x128xbf16, #tpu.memory_space<vmem>>, vector<32x128xbf16>
    %cst_120 = arith.constant dense<0.000000e+00> : vector<64x128xf32>
    %249 = tpu.matmul %247, %248, %cst_120 {dimension_numbers = #tpu.dot_dimension_numbers<[1], [0], [0], [1], [0, 0, 1, 1], [], []>} : vector<64x32xbf16>, vector<32x128xbf16>, vector<64x128xf32> -> vector<64x128xf32>
    %c0_121 = arith.constant 0 : index
    %c0_122 = arith.constant 0 : index
    %250 = vector.load %arg14[%c0_121, %c0_122] : memref<1x128xf32, #tpu.memory_space<vmem>>, vector<1x128xf32>
    %251 = vector.shape_cast %250 : vector<1x128xf32> to vector<128xf32>
    %252 = vector.shape_cast %251 : vector<128xf32> to vector<1x128xf32>
    %253 = vector.broadcast %252 : vector<1x128xf32> to vector<64x128xf32>
    %254 = arith.addf %249, %253 : vector<64x128xf32>
    %cst_123 = arith.constant 5.000000e-01 : f32
    %255 = vector.broadcast %cst_123 : f32 to vector<64x128xf32>
    %256 = arith.mulf %255, %254 : vector<64x128xf32>
    %cst_124 = arith.constant 0.707106769 : f32
    %257 = vector.broadcast %cst_124 : f32 to vector<64x128xf32>
    %258 = arith.mulf %254, %257 : vector<64x128xf32>
    %259 = math.erf %258 : vector<64x128xf32>
    %cst_125 = arith.constant 1.000000e+00 : f32
    %260 = vector.broadcast %cst_125 : f32 to vector<64x128xf32>
    %261 = arith.addf %260, %259 : vector<64x128xf32>
    %262 = arith.mulf %256, %261 : vector<64x128xf32>
    %263 = arith.truncf %262 : vector<64x128xf32> to vector<64x128xbf16>
    %c0_126 = arith.constant 0 : index
    %c0_127 = arith.constant 0 : index
    %264 = vector.load %arg15[%c0_126, %c0_127] : memref<128x32xbf16, #tpu.memory_space<vmem>>, vector<128x32xbf16>
    %cst_128 = arith.constant dense<0.000000e+00> : vector<64x32xf32>
    %265 = tpu.matmul %263, %264, %cst_128 {dimension_numbers = #tpu.dot_dimension_numbers<[1], [0], [0], [1], [0, 0, 1, 1], [], []>} : vector<64x128xbf16>, vector<128x32xbf16>, vector<64x32xf32> -> vector<64x32xf32>
    %c0_129 = arith.constant 0 : index
    %c0_130 = arith.constant 0 : index
    %266 = vector.load %arg16[%c0_129, %c0_130] : memref<1x32xf32, #tpu.memory_space<vmem>>, vector<1x32xf32>
    %267 = vector.shape_cast %266 : vector<1x32xf32> to vector<32xf32>
    %268 = vector.shape_cast %267 : vector<32xf32> to vector<1x32xf32>
    %269 = vector.broadcast %268 : vector<1x32xf32> to vector<64x32xf32>
    %270 = arith.addf %265, %269 : vector<64x32xf32>
    %271 = arith.addf %218, %270 : vector<64x32xf32>
    %c0_131 = arith.constant 0 : index
    %c0_132 = arith.constant 0 : index
    %c0_133 = arith.constant 0 : index
    %272 = vector.load %arg17[%c0_131, %c0_132, %c0_133] : memref<1x64x32xf32, #tpu.memory_space<vmem>>, vector<1x64x32xf32>
    %273 = vector.shape_cast %272 : vector<1x64x32xf32> to vector<64x32xf32>
    %274 = vector.shape_cast %271 : vector<64x32xf32> to vector<1x64x32xf32>
    tpu.vector_store %arg17[%c0_131, %c0_132, %c0_133], %274 {strides = array<i32>} : memref<1x64x32xf32, #tpu.memory_space<vmem>>, vector<1x64x32xf32>,
    return
  }
  func.func @transform_0(%arg0: i32, %arg1: i32) -> (i32, i32, i32) {
    %c0_i32 = arith.constant 0 : i32
    %c0_i32_0 = arith.constant 0 : i32
    return %arg0, %arg1, %c0_i32 : i32, i32, i32
  }
  func.func @transform_1(%arg0: i32, %arg1: i32) -> (i32, i32, i32) {
    %c0_i32 = arith.constant 0 : i32
    %c0_i32_0 = arith.constant 0 : i32
    %c0_i32_1 = arith.constant 0 : i32
    return %arg0, %c0_i32, %c0_i32_0 : i32, i32, i32
  }
  func.func @transform_2(%arg0: i32, %arg1: i32) -> (i32, i32) {
    %c0_i32 = arith.constant 0 : i32
    %c0_i32_0 = arith.constant 0 : i32
    %c0_i32_1 = arith.constant 0 : i32
    return %c0_i32, %c0_i32_0 : i32, i32
  }
  func.func @transform_3(%arg0: i32, %arg1: i32) -> (i32, i32) {
    %c0_i32 = arith.constant 0 : i32
    %c0_i32_0 = arith.constant 0 : i32
    %c0_i32_1 = arith.constant 0 : i32
    return %c0_i32, %c0_i32_0 : i32, i32
  }
  func.func @transform_4(%arg0: i32, %arg1: i32) -> (i32, i32, i32) {
    %c0_i32 = arith.constant 0 : i32
    %c0_i32_0 = arith.constant 0 : i32
    %c0_i32_1 = arith.constant 0 : i32
    %c0_i32_2 = arith.constant 0 : i32
    return %c0_i32, %c0_i32_0, %c0_i32_1 : i32, i32, i32
  }
  func.func @transform_5(%arg0: i32, %arg1: i32) -> (i32, i32, i32) {
    %c0_i32 = arith.constant 0 : i32
    %c0_i32_0 = arith.constant 0 : i32
    %c0_i32_1 = arith.constant 0 : i32
    %c0_i32_2 = arith.constant 0 : i32
    return %c0_i32, %c0_i32_0, %c0_i32_1 : i32, i32, i32
  }
  func.func @transform_6(%arg0: i32, %arg1: i32) -> (i32, i32, i32) {
    %c0_i32 = arith.constant 0 : i32
    %c0_i32_0 = arith.constant 0 : i32
    %c0_i32_1 = arith.constant 0 : i32
    %c0_i32_2 = arith.constant 0 : i32
    return %c0_i32, %c0_i32_0, %c0_i32_1 : i32, i32, i32
  }
  func.func @transform_7(%arg0: i32, %arg1: i32) -> (i32, i32, i32) {
    %c0_i32 = arith.constant 0 : i32
    %c0_i32_0 = arith.constant 0 : i32
    %c0_i32_1 = arith.constant 0 : i32
    %c0_i32_2 = arith.constant 0 : i32
    return %c0_i32, %c0_i32_0, %c0_i32_1 : i32, i32, i32
  }
  func.func @transform_8(%arg0: i32, %arg1: i32) -> (i32, i32) {
    %c0_i32 = arith.constant 0 : i32
    %c0_i32_0 = arith.constant 0 : i32
    %c0_i32_1 = arith.constant 0 : i32
    return %c0_i32, %c0_i32_0 : i32, i32
  }
  func.func @transform_9(%arg0: i32, %arg1: i32) -> (i32, i32) {
    %c0_i32 = arith.constant 0 : i32
    %c0_i32_0 = arith.constant 0 : i32
    %c0_i32_1 = arith.constant 0 : i32
    return %c0_i32, %c0_i32_0 : i32, i32
  }
  func.func @transform_10(%arg0: i32, %arg1: i32) -> (i32, i32) {
    %c0_i32 = arith.constant 0 : i32
    %c0_i32_0 = arith.constant 0 : i32
    %c0_i32_1 = arith.constant 0 : i32
    return %c0_i32, %c0_i32_0 : i32, i32
  }
  func.func @transform_11(%arg0: i32, %arg1: i32) -> (i32, i32) {
    %c0_i32 = arith.constant 0 : i32
    %c0_i32_0 = arith.constant 0 : i32
    %c0_i32_1 = arith.constant 0 : i32
    return %c0_i32, %c0_i32_0 : i32, i32
  }
  func.func @transform_12(%arg0: i32, %arg1: i32) -> (i32, i32) {
    %c0_i32 = arith.constant 0 : i32
    %c0_i32_0 = arith.constant 0 : i32
    %c0_i32_1 = arith.constant 0 : i32
    return %c0_i32, %c0_i32_0 : i32, i32
  }
  func.func @transform_13(%arg0: i32, %arg1: i32) -> (i32, i32) {
    %c0_i32 = arith.constant 0 : i32
    %c0_i32_0 = arith.constant 0 : i32
    %c0_i32_1 = arith.constant 0 : i32
    return %c0_i32, %c0_i32_0 : i32, i32
  }
  func.func @transform_14(%arg0: i32, %arg1: i32) -> (i32, i32) {
    %c0_i32 = arith.constant 0 : i32
    %c0_i32_0 = arith.constant 0 : i32
    %c0_i32_1 = arith.constant 0 : i32
    return %c0_i32, %c0_i32_0 : i32, i32
  }
  func.func @transform_15(%arg0: i32, %arg1: i32) -> (i32, i32, i32) {
    %c0_i32 = arith.constant 0 : i32
    %c0_i32_0 = arith.constant 0 : i32
    return %arg0, %arg1, %c0_i32 : i32, i32, i32
  }
}

</mosaic_0001>

<llo_original>
// kernel: tpu_custom_call.1
$region0: #{tpu_custom_call.1}
  #allocation0 [shape = 'u32[]', space=smem, size = 0x4, offset = 0x4, fixed_abs, tag = 'smem constant byte address 0x4 - core index']
  #allocation1 [shape = 'u32[144,128]{1,0:T(1,128)}', space=vmem, size = 0x12000, scoped, tag = 'internal scratch']
  #allocation2 [shape = 'f32[64,32]{1,0:T(8,128)}', space=vmem, size = 0x8000, scoped, tag = 'scratch operand']
  %s0 = inlined_call_operand.vmem [shape: f32[2,64,32], index: 0, kind: input, shape index: {}]
  %s1 = inlined_call_operand.vmem [shape: f32[2,64,32], index: 1, kind: input, shape index: {}]
  %s2 = inlined_call_operand.vmem [shape: f32[1,32], index: 2, kind: input, shape index: {}]
  %s3 = inlined_call_operand.vmem [shape: f32[1,32], index: 3, kind: input, shape index: {}]
  %s4 = inlined_call_operand.vmem [shape: bf16[4,32,8], index: 4, kind: input, shape index: {}]
  %s5 = inlined_call_operand.vmem [shape: bf16[4,32,8], index: 5, kind: input, shape index: {}]
  %s6 = inlined_call_operand.vmem [shape: bf16[4,32,8], index: 6, kind: input, shape index: {}]
  %s7 = inlined_call_operand.vmem [shape: bf16[4,8,32], index: 7, kind: input, shape index: {}]
  %s8 = inlined_call_operand.vmem [shape: f32[1,32], index: 8, kind: input, shape index: {}]
  %s9 = inlined_call_operand.vmem [shape: f32[1,32], index: 9, kind: input, shape index: {}]
  %s10 = inlined_call_operand.vmem [shape: f32[1,32], index: 10, kind: input, shape index: {}]
  %s11 = inlined_call_operand.vmem [shape: bf16[32,128], index: 11, kind: input, shape index: {}]
  %s12 = inlined_call_operand.vmem [shape: f32[1,128], index: 12, kind: input, shape index: {}]
  %s13 = inlined_call_operand.vmem [shape: bf16[128,32], index: 13, kind: input, shape index: {}]
  %s14 = inlined_call_operand.vmem [shape: f32[1,32], index: 14, kind: input, shape index: {}]
  %s15 = inlined_call_operand.vmem [shape: f32[2,64,32], index: 15, kind: output, shape index: {}]
  %s16 = sld [smem:[#allocation0]]
  $region93: #{tpu_custom_call.1} parent=0
    _
  %s18 = ssub.s32 1, %s16
  %s19 = scalar_select 0, %s18, %s16
  loop: start=0, step=1, limit=4
  $region2: #{tpu_custom_call.1} parent=0 // loop_pre_header
    _
  $region3: #{tpu_custom_call.1} parent=0 // loop_header
    %s21 = sphi 0, %s25
    %p22 = scmp.ge.s32.totalorder %s21, 4
    %s28 = sphi 0, %s40
    %s29 = sphi 0, %s36
    %s30 = sphi 0, %s28
    %s31 = sphi 0, %s29
    %s32 = sphi 0, %s30
    %s33 = sphi 0, %s31
    %s45 = sphi 0, %s47
    %s48 = sphi 0, %s45
    %s49 = sphi 0, %s48
    %s65 = sphi 0, %s49
    %s71 = sphi 0, %s73
    %s74 = sphi 0, %s71
    %s75 = sphi 0, %s74
    %s91 = sphi 0, %s75
    %s95 = sphi 0, %s95
    %s97 = sphi 0, %s95
    %s98 = sphi 0, %s97
    %s112 = sphi 0, %s98
    %s116 = sphi 0, %s116
    %s118 = sphi 0, %s116
    %s119 = sphi 0, %s118
    %s133 = sphi 0, %s119
    %s137 = sphi 0, %s137
    %s139 = sphi 0, %s137
    %s140 = sphi 0, %s139
    %s154 = sphi 0, %s140
    %s158 = sphi 0, %s158
    %s160 = sphi 0, %s158
    %s161 = sphi 0, %s160
    %s175 = sphi 0, %s161
    %s179 = sphi 0, %s179
    %s181 = sphi 0, %s179
    %s182 = sphi 0, %s181
    %s196 = sphi 0, %s182
    %s200 = sphi 0, %s200
    %s202 = sphi 0, %s200
    %s203 = sphi 0, %s202
    %s217 = sphi 0, %s203
    %s221 = sphi 0, %s221
    %s223 = sphi 0, %s221
    %s224 = sphi 0, %s223
    %s238 = sphi 0, %s224
    %s242 = sphi 0, %s242
    %s244 = sphi 0, %s242
    %s245 = sphi 0, %s244
    %s259 = sphi 0, %s245
    %s263 = sphi 0, %s263
    %s265 = sphi 0, %s263
    %s266 = sphi 0, %s265
    %s280 = sphi 0, %s266
    %s284 = sphi 0, %s284
    %s286 = sphi 0, %s284
    %s287 = sphi 0, %s286
    %s301 = sphi 0, %s287
    %s305 = sphi 0, %s305
    %s307 = sphi 0, %s305
    %s308 = sphi 0, %s307
    %s322 = sphi 0, %s308
    %s326 = sphi 0, %s326
    %s328 = sphi 0, %s326
    %s329 = sphi 0, %s328
    %s343 = sphi 0, %s329
    %s347 = sphi 0, %s347
    %s349 = sphi 0, %s347
    %s350 = sphi 0, %s349
    %s364 = sphi 0, %s350
    %s372 = sphi 0, %s374
    %s375 = sphi 0, %s372
    %s376 = sphi 0, %s375
    %s392 = sphi 0, %s376
  $region4: #{tpu_custom_call.1} parent=0 // loop_header_branch
    %24 = sbr.rel (%p22) target = $region8
  $region5: #{tpu_custom_call.1} parent=0 // loop_body
    %s26 = ssub.s32 %s21, 1
    %s27 = ssub.s32 %s21, 2
    %s34 = sadd.s32 1, %s29
    %p35 = scmp.ge.s32.totalorder %s34, 1
    %s36 = scalar_select %p35, 0, %s34
    %s37 = sadd.s32 1, %s28
    %s38 = scalar_select %p35, %s37, %s28
    %p39 = scmp.ge.s32.totalorder %s38, 2
    %s40 = scalar_select %p39, 0, %s38
    %s41 = ssub.s32 %s28, %s40
    %s42 = ssub.s32 %s29, %s36
    %s43 = sor.u32 %s41, %s42
    %p44 = scmp.eq.s32.totalorder %s43, 0
    %s46 = sadd.s32 %s45, 1
    %s47 = scalar_select %p44, %s45, %s46
    %p50 = pneg %p44
    %p51 = scmp.eq.s32.totalorder %s21, 1
    %p52 = por %p50, %p51
    %p53 = scmp.ne.s32.totalorder %s45, %s48
    %p54 = scmp.eq.s32.totalorder %s21, 0
    %p55 = por %p53, %p54
    %p56 = scmp.ne.s32.totalorder %s45, %s48
    %p57 = scmp.eq.s32.totalorder %s26, 1
    %p58 = por %p56, %p57
    %p59 = scmp.ne.s32.totalorder %s48, %s49
    %p60 = scmp.eq.s32.totalorder %s26, 0
    %p61 = por %p59, %p60
    %p62 = scmp.ne.s32.totalorder %s48, %s49
    %p63 = scmp.eq.s32.totalorder %s27, 1
    %p64 = por %p62, %p63
    %p66 = scmp.ne.s32.totalorder %s49, %s65
    %p67 = scmp.eq.s32.totalorder %s27, 0
    %p68 = por %p66, %p67
    %s69 = ssub.s32 %s28, %s40
    %p70 = scmp.eq.s32.totalorder %s69, 0
    %s72 = sadd.s32 %s71, 1
    %s73 = scalar_select %p70, %s71, %s72
    %p76 = pneg %p70
    %p77 = scmp.eq.s32.totalorder %s21, 1
    %p78 = por %p76, %p77
    %p79 = scmp.ne.s32.totalorder %s71, %s74
    %p80 = scmp.eq.s32.totalorder %s21, 0
    %p81 = por %p79, %p80
    %p82 = scmp.ne.s32.totalorder %s71, %s74
    %p83 = scmp.eq.s32.totalorder %s26, 1
    %p84 = por %p82, %p83
    %p85 = scmp.ne.s32.totalorder %s74, %s75
    %p86 = scmp.eq.s32.totalorder %s26, 0
    %p87 = por %p85, %p86
    %p88 = scmp.ne.s32.totalorder %s74, %s75
    %p89 = scmp.eq.s32.totalorder %s27, 1
    %p90 = por %p88, %p89
    %p92 = scmp.ne.s32.totalorder %s75, %s91
    %p93 = scmp.eq.s32.totalorder %s27, 0
    %p94 = por %p92, %p93
    %s96 = sadd.s32 %s95, 1
    %p99 = scmp.eq.s32.totalorder %s21, 1
    %p100 = scmp.ne.s32.totalorder %s95, %s97
    %p101 = scmp.eq.s32.totalorder %s21, 0
    %p102 = por %p100, %p101
    %p103 = scmp.ne.s32.totalorder %s95, %s97
    %p104 = scmp.eq.s32.totalorder %s26, 1
    %p105 = por %p103, %p104
    %p106 = scmp.ne.s32.totalorder %s97, %s98
    %p107 = scmp.eq.s32.totalorder %s26, 0
    %p108 = por %p106, %p107
    %p109 = scmp.ne.s32.totalorder %s97, %s98
    %p110 = scmp.eq.s32.totalorder %s27, 1
    %p111 = por %p109, %p110
    %p113 = scmp.ne.s32.totalorder %s98, %s112
    %p114 = scmp.eq.s32.totalorder %s27, 0
    %p115 = por %p113, %p114
    %s117 = sadd.s32 %s116, 1
    %p120 = scmp.eq.s32.totalorder %s21, 1
    %p121 = scmp.ne.s32.totalorder %s116, %s118
    %p122 = scmp.eq.s32.totalorder %s21, 0
    %p123 = por %p121, %p122
    %p124 = scmp.ne.s32.totalorder %s116, %s118
    %p125 = scmp.eq.s32.totalorder %s26, 1
    %p126 = por %p124, %p125
    %p127 = scmp.ne.s32.totalorder %s118, %s119
    %p128 = scmp.eq.s32.totalorder %s26, 0
    %p129 = por %p127, %p128
    %p130 = scmp.ne.s32.totalorder %s118, %s119
    %p131 = scmp.eq.s32.totalorder %s27, 1
    %p132 = por %p130, %p131
    %p134 = scmp.ne.s32.totalorder %s119, %s133
    %p135 = scmp.eq.s32.totalorder %s27, 0
    %p136 = por %p134, %p135
    %s138 = sadd.s32 %s137, 1
    %p141 = scmp.eq.s32.totalorder %s21, 1
    %p142 = scmp.ne.s32.totalorder %s137, %s139
    %p143 = scmp.eq.s32.totalorder %s21, 0
    %p144 = por %p142, %p143
    %p145 = scmp.ne.s32.totalorder %s137, %s139
    %p146 = scmp.eq.s32.totalorder %s26, 1
    %p147 = por %p145, %p146
    %p148 = scmp.ne.s32.totalorder %s139, %s140
    %p149 = scmp.eq.s32.totalorder %s26, 0
    %p150 = por %p148, %p149
    %p151 = scmp.ne.s32.totalorder %s139, %s140
    %p152 = scmp.eq.s32.totalorder %s27, 1
    %p153 = por %p151, %p152
    %p155 = scmp.ne.s32.totalorder %s140, %s154
    %p156 = scmp.eq.s32.totalorder %s27, 0
    %p157 = por %p155, %p156
    %s159 = sadd.s32 %s158, 1
    %p162 = scmp.eq.s32.totalorder %s21, 1
    %p163 = scmp.ne.s32.totalorder %s158, %s160
    %p164 = scmp.eq.s32.totalorder %s21, 0
    %p165 = por %p163, %p164
    %p166 = scmp.ne.s32.totalorder %s158, %s160
    %p167 = scmp.eq.s32.totalorder %s26, 1
    %p168 = por %p166, %p167
    %p169 = scmp.ne.s32.totalorder %s160, %s161
    %p170 = scmp.eq.s32.totalorder %s26, 0
    %p171 = por %p169, %p170
    %p172 = scmp.ne.s32.totalorder %s160, %s161
    %p173 = scmp.eq.s32.totalorder %s27, 1
    %p174 = por %p172, %p173
    %p176 = scmp.ne.s32.totalorder %s161, %s175
    %p177 = scmp.eq.s32.totalorder %s27, 0
    %p178 = por %p176, %p177
    %s180 = sadd.s32 %s179, 1
    %p183 = scmp.eq.s32.totalorder %s21, 1
    %p184 = scmp.ne.s32.totalorder %s179, %s181
    %p185 = scmp.eq.s32.totalorder %s21, 0
    %p186 = por %p184, %p185
    %p187 = scmp.ne.s32.totalorder %s179, %s181
    %p188 = scmp.eq.s32.totalorder %s26, 1
    %p189 = por %p187, %p188
    %p190 = scmp.ne.s32.totalorder %s181, %s182
    %p191 = scmp.eq.s32.totalorder %s26, 0
    %p192 = por %p190, %p191
    %p193 = scmp.ne.s32.totalorder %s181, %s182
    %p194 = scmp.eq.s32.totalorder %s27, 1
    %p195 = por %p193, %p194
    %p197 = scmp.ne.s32.totalorder %s182, %s196
    %p198 = scmp.eq.s32.totalorder %s27, 0
    %p199 = por %p197, %p198
    %s201 = sadd.s32 %s200, 1
    %p204 = scmp.eq.s32.totalorder %s21, 1
    %p205 = scmp.ne.s32.totalorder %s200, %s202
    %p206 = scmp.eq.s32.totalorder %s21, 0
    %p207 = por %p205, %p206
    %p208 = scmp.ne.s32.totalorder %s200, %s202
    %p209 = scmp.eq.s32.totalorder %s26, 1
    %p210 = por %p208, %p209
    %p211 = scmp.ne.s32.totalorder %s202, %s203
    %p212 = scmp.eq.s32.totalorder %s26, 0
    %p213 = por %p211, %p212
    %p214 = scmp.ne.s32.totalorder %s202, %s203
    %p215 = scmp.eq.s32.totalorder %s27, 1
    %p216 = por %p214, %p215
    %p218 = scmp.ne.s32.totalorder %s203, %s217
    %p219 = scmp.eq.s32.totalorder %s27, 0
    %p220 = por %p218, %p219
    %s222 = sadd.s32 %s221, 1
    %p225 = scmp.eq.s32.totalorder %s21, 1
    %p226 = scmp.ne.s32.totalorder %s221, %s223
    %p227 = scmp.eq.s32.totalorder %s21, 0
    %p228 = por %p226, %p227
    %p229 = scmp.ne.s32.totalorder %s221, %s223
    %p230 = scmp.eq.s32.totalorder %s26, 1
    %p231 = por %p229, %p230
    %p232 = scmp.ne.s32.totalorder %s223, %s224
    %p233 = scmp.eq.s32.totalorder %s26, 0
    %p234 = por %p232, %p233
    %p235 = scmp.ne.s32.totalorder %s223, %s224
    %p236 = scmp.eq.s32.totalorder %s27, 1
    %p237 = por %p235, %p236
    %p239 = scmp.ne.s32.totalorder %s224, %s238
    %p240 = scmp.eq.s32.totalorder %s27, 0
    %p241 = por %p239, %p240
    %s243 = sadd.s32 %s242, 1
    %p246 = scmp.eq.s32.totalorder %s21, 1
    %p247 = scmp.ne.s32.totalorder %s242, %s244
    %p248 = scmp.eq.s32.totalorder %s21, 0
    %p249 = por %p247, %p248
    %p250 = scmp.ne.s32.totalorder %s242, %s244
    %p251 = scmp.eq.s32.totalorder %s26, 1
    %p252 = por %p250, %p251
    %p253 = scmp.ne.s32.totalorder %s244, %s245
    %p254 = scmp.eq.s32.totalorder %s26, 0
    %p255 = por %p253, %p254
    %p256 = scmp.ne.s32.totalorder %s244, %s245
    %p257 = scmp.eq.s32.totalorder %s27, 1
    %p258 = por %p256, %p257
    %p260 = scmp.ne.s32.totalorder %s245, %s259
    %p261 = scmp.eq.s32.totalorder %s27, 0
    %p262 = por %p260, %p261
    %s264 = sadd.s32 %s263, 1
    %p267 = scmp.eq.s32.totalorder %s21, 1
    %p268 = scmp.ne.s32.totalorder %s263, %s265
    %p269 = scmp.eq.s32.totalorder %s21, 0
    %p270 = por %p268, %p269
    %p271 = scmp.ne.s32.totalorder %s263, %s265
    %p272 = scmp.eq.s32.totalorder %s26, 1
    %p273 = por %p271, %p272
    %p274 = scmp.ne.s32.totalorder %s265, %s266
    %p275 = scmp.eq.s32.totalorder %s26, 0
    %p276 = por %p274, %p275
    %p277 = scmp.ne.s32.totalorder %s265, %s266
    %p278 = scmp.eq.s32.totalorder %s27, 1
    %p279 = por %p277, %p278
    %p281 = scmp.ne.s32.totalorder %s266, %s280
    %p282 = scmp.eq.s32.totalorder %s27, 0
    %p283 = por %p281, %p282
    %s285 = sadd.s32 %s284, 1
    %p288 = scmp.eq.s32.totalorder %s21, 1
    %p289 = scmp.ne.s32.totalorder %s284, %s286
    %p290 = scmp.eq.s32.totalorder %s21, 0
    %p291 = por %p289, %p290
    %p292 = scmp.ne.s32.totalorder %s284, %s286
    %p293 = scmp.eq.s32.totalorder %s26, 1
    %p294 = por %p292, %p293
    %p295 = scmp.ne.s32.totalorder %s286, %s287
    %p296 = scmp.eq.s32.totalorder %s26, 0
    %p297 = por %p295, %p296
    %p298 = scmp.ne.s32.totalorder %s286, %s287
    %p299 = scmp.eq.s32.totalorder %s27, 1
    %p300 = por %p298, %p299
    %p302 = scmp.ne.s32.totalorder %s287, %s301
    %p303 = scmp.eq.s32.totalorder %s27, 0
    %p304 = por %p302, %p303
    %s306 = sadd.s32 %s305, 1
    %p309 = scmp.eq.s32.totalorder %s21, 1
    %p310 = scmp.ne.s32.totalorder %s305, %s307
    %p311 = scmp.eq.s32.totalorder %s21, 0
    %p312 = por %p310, %p311
    %p313 = scmp.ne.s32.totalorder %s305, %s307
    %p314 = scmp.eq.s32.totalorder %s26, 1
    %p315 = por %p313, %p314
    %p316 = scmp.ne.s32.totalorder %s307, %s308
    %p317 = scmp.eq.s32.totalorder %s26, 0
    %p318 = por %p316, %p317
    %p319 = scmp.ne.s32.totalorder %s307, %s308
    %p320 = scmp.eq.s32.totalorder %s27, 1
    %p321 = por %p319, %p320
    %p323 = scmp.ne.s32.totalorder %s308, %s322
    %p324 = scmp.eq.s32.totalorder %s27, 0
    %p325 = por %p323, %p324
    %s327 = sadd.s32 %s326, 1
    %p330 = scmp.eq.s32.totalorder %s21, 1
    %p331 = scmp.ne.s32.totalorder %s326, %s328
    %p332 = scmp.eq.s32.totalorder %s21, 0
    %p333 = por %p331, %p332
    %p334 = scmp.ne.s32.totalorder %s326, %s328
    %p335 = scmp.eq.s32.totalorder %s26, 1
    %p336 = por %p334, %p335
    %p337 = scmp.ne.s32.totalorder %s328, %s329
    %p338 = scmp.eq.s32.totalorder %s26, 0
    %p339 = por %p337, %p338
    %p340 = scmp.ne.s32.totalorder %s328, %s329
    %p341 = scmp.eq.s32.totalorder %s27, 1
    %p342 = por %p340, %p341
    %p344 = scmp.ne.s32.totalorder %s329, %s343
    %p345 = scmp.eq.s32.totalorder %s27, 0
    %p346 = por %p344, %p345
    %s348 = sadd.s32 %s347, 1
    %p351 = scmp.eq.s32.totalorder %s21, 1
    %p352 = scmp.ne.s32.totalorder %s347, %s349
    %p353 = scmp.eq.s32.totalorder %s21, 0
    %p354 = por %p352, %p353
    %p355 = scmp.ne.s32.totalorder %s347, %s349
    %p356 = scmp.eq.s32.totalorder %s26, 1
    %p357 = por %p355, %p356
    %p358 = scmp.ne.s32.totalorder %s349, %s350
    %p359 = scmp.eq.s32.totalorder %s26, 0
    %p360 = por %p358, %p359
    %p361 = scmp.ne.s32.totalorder %s349, %s350
    %p362 = scmp.eq.s32.totalorder %s27, 1
    %p363 = por %p361, %p362
    %p365 = scmp.ne.s32.totalorder %s350, %s364
    %p366 = scmp.eq.s32.totalorder %s27, 0
    %p367 = por %p365, %p366
    %s368 = ssub.s32 %s28, %s40
    %s369 = ssub.s32 %s29, %s36
    %s370 = sor.u32 %s368, %s369
    %p371 = scmp.eq.s32.totalorder %s370, 0
    %s373 = sadd.s32 %s372, 1
    %s374 = scalar_select %p371, %s372, %s373
    %p377 = pneg %p371
    %p378 = scmp.eq.s32.totalorder %s21, 1
    %p379 = por %p377, %p378
    %p380 = scmp.ne.s32.totalorder %s372, %s375
    %p381 = scmp.eq.s32.totalorder %s21, 0
    %p382 = por %p380, %p381
    %p383 = scmp.ne.s32.totalorder %s372, %s375
    %p384 = scmp.eq.s32.totalorder %s26, 1
    %p385 = por %p383, %p384
    %p386 = scmp.ne.s32.totalorder %s375, %s376
    %p387 = scmp.eq.s32.totalorder %s26, 0
    %p388 = por %p386, %p387
    %p389 = scmp.ne.s32.totalorder %s375, %s376
    %p390 = scmp.eq.s32.totalorder %s27, 1
    %p391 = por %p389, %p390
    %p393 = scmp.ne.s32.totalorder %s376, %s392
    %p394 = scmp.eq.s32.totalorder %s27, 0
    %p395 = por %p393, %p394
    %p396 = scmp.le.s32.totalorder 1, %s21
    %p397 = scmp.lt.s32.totalorder %s21, 3
    %p398 = pnand %p396, %p397
    %p399 = pneg %p398
    // Predicated region
    $region9: #{tpu_custom_call.1} parent=5 // pred_check
      _
    $region10: #{tpu_custom_call.1} parent=5 // pred_check_branch
      %401 = sbr.rel (%p398) target = $region12
    $region11: #{tpu_custom_call.1} parent=5 // pred_region
      %s402 = ssub.s32 %s21, 1
      // Predicated region
      $region13: #{tpu_custom_call.1} parent=11 // pred_check
        %p403 = pneg %p108
      $region14: #{tpu_custom_call.1} parent=11 // pred_check_branch
        %405 = sbr.rel (%p403) target = $region16
      $region15: #{tpu_custom_call.1} parent=11 // pred_region
        _
      $region16: #{tpu_custom_call.1} parent=11 // pred_fallthru
        _
      // Predicated region
      $region17: #{tpu_custom_call.1} parent=11 // pred_check
        %p406 = pneg %p129
      $region18: #{tpu_custom_call.1} parent=11 // pred_check_branch
        %408 = sbr.rel (%p406) target = $region20
      $region19: #{tpu_custom_call.1} parent=11 // pred_region
        _
      $region20: #{tpu_custom_call.1} parent=11 // pred_fallthru
        _
      // Predicated region
      $region21: #{tpu_custom_call.1} parent=11 // pred_check
        %p409 = pneg %p150
      $region22: #{tpu_custom_call.1} parent=11 // pred_check_branch
        %411 = sbr.rel (%p409) target = $region24
      $region23: #{tpu_custom_call.1} parent=11 // pred_region
        _
      $region24: #{tpu_custom_call.1} parent=11 // pred_fallthru
        _
      // Predicated region
      $region25: #{tpu_custom_call.1} parent=11 // pred_check
        %p412 = pneg %p171
      $region26: #{tpu_custom_call.1} parent=11 // pred_check_branch
        %414 = sbr.rel (%p412) target = $region28
      $region27: #{tpu_custom_call.1} parent=11 // pred_region
        _
      $region28: #{tpu_custom_call.1} parent=11 // pred_fallthru
        _
      // Predicated region
      $region29: #{tpu_custom_call.1} parent=11 // pred_check
        %p415 = pneg %p192
      $region30: #{tpu_custom_call.1} parent=11 // pred_check_branch
        %417 = sbr.rel (%p415) target = $region32
      $region31: #{tpu_custom_call.1} parent=11 // pred_region
        _
      $region32: #{tpu_custom_call.1} parent=11 // pred_fallthru
        _
      // Predicated region
      $region33: #{tpu_custom_call.1} parent=11 // pred_check
        %p418 = pneg %p213
      $region34: #{tpu_custom_call.1} parent=11 // pred_check_branch
        %420 = sbr.rel (%p418) target = $region36
      $region35: #{tpu_custom_call.1} parent=11 // pred_region
        _
      $region36: #{tpu_custom_call.1} parent=11 // pred_fallthru
        _
      // Predicated region
      $region37: #{tpu_custom_call.1} parent=11 // pred_check
        %p421 = pneg %p234
      $region38: #{tpu_custom_call.1} parent=11 // pred_check_branch
        %423 = sbr.rel (%p421) target = $region40
      $region39: #{tpu_custom_call.1} parent=11 // pred_region
        _
      $region40: #{tpu_custom_call.1} parent=11 // pred_fallthru
        _
      // Predicated region
      $region41: #{tpu_custom_call.1} parent=11 // pred_check
        %p424 = pneg %p255
      $region42: #{tpu_custom_call.1} parent=11 // pred_check_branch
        %426 = sbr.rel (%p424) target = $region44
      $region43: #{tpu_custom_call.1} parent=11 // pred_region
        _
      $region44: #{tpu_custom_call.1} parent=11 // pred_fallthru
        _
      // Predicated region
      $region45: #{tpu_custom_call.1} parent=11 // pred_check
        %p427 = pneg %p276
      $region46: #{tpu_custom_call.1} parent=11 // pred_check_branch
        %429 = sbr.rel (%p427) target = $region48
      $region47: #{tpu_custom_call.1} parent=11 // pred_region
        _
      $region48: #{tpu_custom_call.1} parent=11 // pred_fallthru
        _
      // Predicated region
      $region49: #{tpu_custom_call.1} parent=11 // pred_check
        %p430 = pneg %p297
      $region50: #{tpu_custom_call.1} parent=11 // pred_check_branch
        %432 = sbr.rel (%p430) target = $region52
      $region51: #{tpu_custom_call.1} parent=11 // pred_region
        _
      $region52: #{tpu_custom_call.1} parent=11 // pred_fallthru
        _
      // Predicated region
      $region53: #{tpu_custom_call.1} parent=11 // pred_check
        %p433 = pneg %p318
      $region54: #{tpu_custom_call.1} parent=11 // pred_check_branch
        %435 = sbr.rel (%p433) target = $region56
      $region55: #{tpu_custom_call.1} parent=11 // pred_region
        _
      $region56: #{tpu_custom_call.1} parent=11 // pred_fallthru
        _
      // Predicated region
      $region57: #{tpu_custom_call.1} parent=11 // pred_check
        %p436 = pneg %p339
      $region58: #{tpu_custom_call.1} parent=11 // pred_check_branch
        %438 = sbr.rel (%p436) target = $region60
      $region59: #{tpu_custom_call.1} parent=11 // pred_region
        _
      $region60: #{tpu_custom_call.1} parent=11 // pred_fallthru
        _
      // Predicated region
      $region61: #{tpu_custom_call.1} parent=11 // pred_check
        %p439 = pneg %p360
      $region62: #{tpu_custom_call.1} parent=11 // pred_check_branch
        %441 = sbr.rel (%p439) target = $region64
      $region63: #{tpu_custom_call.1} parent=11 // pred_region
        _
      $region64: #{tpu_custom_call.1} parent=11 // pred_fallthru
        _
    $region12: #{tpu_custom_call.1} parent=5 // pred_fallthru
      _
    %p442 = scmp.lt.s32.totalorder %s21, 2
    // Predicated region
    $region65: #{tpu_custom_call.1} parent=5 // pred_check
      %p443 = pneg %p442
    $region66: #{tpu_custom_call.1} parent=5 // pred_check_branch
      %445 = sbr.rel (%p443) target = $region68
    $region67: #{tpu_custom_call.1} parent=5 // pred_region
      // Predicated region
      $region69: #{tpu_custom_call.1} parent=67 // pred_check
        %p446 = pneg %p55
      $region70: #{tpu_custom_call.1} parent=67 // pred_check_branch
        %448 = sbr.rel (%p446) target = $region72
      $region71: #{tpu_custom_call.1} parent=67 // pred_region
        %s449 = smul.u32 8, %s29
        %p450 = scmp.lt.s32.totalorder %s28, 1
        %s451 = scalar_select %p450, %s28, 1
        %p452 = scmp.lt.s32.totalorder %s449, 7
        %s453 = scalar_select %p452, %s449, 7
        %s454 = smul.addr %s451, 8
        %s455 = sadd.s32 %s453, %s454
        %s456 = smul.addr %s455, 8
        %s457 = scalar_lea.vmem %s0, %s456
        %s458 = smul.u32 8, %s29
      $region72: #{tpu_custom_call.1} parent=67 // pred_fallthru
        _
      // Predicated region
      $region73: #{tpu_custom_call.1} parent=67 // pred_check
        %p459 = pneg %p81
      $region74: #{tpu_custom_call.1} parent=67 // pred_check_branch
        %461 = sbr.rel (%p459) target = $region76
      $region75: #{tpu_custom_call.1} parent=67 // pred_region
        %p462 = scmp.lt.s32.totalorder %s28, 1
        %s463 = scalar_select %p462, %s28, 1
        %s464 = smul.addr %s463, 8
        %s465 = smul.addr %s464, 8
        %s466 = scalar_lea.vmem %s1, %s465
      $region76: #{tpu_custom_call.1} parent=67 // pred_fallthru
        _
    $region68: #{tpu_custom_call.1} parent=5 // pred_fallthru
      _
    %p467 = scmp.le.s32.totalorder 1, %s21
    %p468 = scmp.lt.s32.totalorder %s21, 3
    %p469 = pnand %p467, %p468
    %p470 = pneg %p469
    // Predicated region
    $region77: #{tpu_custom_call.1} parent=5 // pred_check
      _
    $region78: #{tpu_custom_call.1} parent=5 // pred_check_branch
      %472 = sbr.rel (%p469) target = $region80
    $region79: #{tpu_custom_call.1} parent=5 // pred_region
      %s473 = ssub.s32 %s21, 1
      %s474 = smul.u32 8, %s31
      %p475 = scmp.lt.s32.totalorder %s30, 1
      %s476 = scalar_select %p475, %s30, 1
      %p477 = scmp.lt.s32.totalorder %s474, 7
      %s478 = scalar_select %p477, %s474, 7
      %s479 = smul.addr %s476, 8
      %s480 = sadd.s32 %s478, %s479
      %s481 = smul.addr %s480, 8
      %s482 = scalar_lea.vmem %s0, %s481
      %p483 = pneg %p61
      %p484 = pneg %p58
      %p485 = scmp.lt.s32.totalorder %s30, 1
      %s486 = scalar_select %p485, %s30, 1
      %s487 = smul.addr %s486, 8
      %s488 = smul.addr %s487, 8
      %s489 = scalar_lea.vmem %s1, %s488
      %p490 = pneg %p87
      %p491 = pneg %p84
      %p492 = pneg %p108
      %p493 = pneg %p105
      %p494 = pneg %p129
      %p495 = pneg %p126
      %p496 = pneg %p150
      %p497 = pneg %p147
      %p498 = pneg %p171
      %p499 = pneg %p168
      %p500 = pneg %p192
      %p501 = pneg %p189
      %p502 = pneg %p213
      %p503 = pneg %p210
      %p504 = pneg %p234
      %p505 = pneg %p231
      %p506 = pneg %p255
      %p507 = pneg %p252
      %p508 = pneg %p276
      %p509 = pneg %p273
      %p510 = pneg %p297
      %p511 = pneg %p294
      %p512 = pneg %p318
      %p513 = pneg %p315
      %p514 = pneg %p339
      %p515 = pneg %p336
      %p516 = pneg %p360
      %p517 = pneg %p357
      %p518 = pneg %p388
      %p519 = pneg %p385
      %s520 = smul.u32 8, %s31
      %p521 = scmp.lt.s32.totalorder %s30, 1
      %s522 = scalar_select %p521, %s30, 1
      %p523 = scmp.lt.s32.totalorder %s520, 7
      %s524 = scalar_select %p523, %s520, 7
      %s525 = smul.addr %s522, 8
      %s526 = sadd.s32 %s524, %s525
      %s527 = smul.addr %s526, 8
      %s528 = scalar_lea.vmem %s15, %s527
      %s529 = smul.u32 8, %s31
      %p530 = scmp.lt.s32.totalorder %s30, 1
      %s531 = scalar_select %p530, %s30, 1
      %p532 = scmp.lt.s32.totalorder %s529, 7
      %s533 = scalar_select %p532, %s529, 7
      %s534 = smul.addr %s531, 8
      %s535 = sadd.s32 %s533, %s534
      %s536 = smul.addr %s535, 8
      %s537 = scalar_lea.vmem %s0, %s536
      %s538 = smul.u32 8, %s31
      %p539 = scmp.lt.s32.totalorder %s30, 1
      %s540 = scalar_select %p539, %s30, 1
      %s541 = smul.addr %s540, 8
      %s542 = smul.addr %s541, 8
      %s543 = scalar_lea.vmem %s1, %s542
      %s544 = smul.u32 8, %s31
      %p545 = scmp.lt.s32.totalorder %s30, 1
      %s546 = scalar_select %p545, %s30, 1
      %p547 = scmp.lt.s32.totalorder %s544, 7
      %s548 = scalar_select %p547, %s544, 7
      %s549 = smul.addr %s546, 8
      %s550 = sadd.s32 %s548, %s549
      %s551 = smul.addr %s550, 8
      %s552 = scalar_lea.vmem %s15, %s551
      %s553 = smul.u32 8, %s31
      %v555 = vld [vmem:[%s537] sm:$0xff]
      %v556 = vld [vmem:[%s537 + $0x8] sm:$0xff]
      %v557 = vld [vmem:[%s537 + $0x10] sm:$0xff]
      %v558 = vld [vmem:[%s537 + $0x18] sm:$0xff]
      %v559 = vld [vmem:[%s537 + $0x20] sm:$0xff]
      %v560 = vld [vmem:[%s537 + $0x28] sm:$0xff]
      %v561 = vld [vmem:[%s537 + $0x30] sm:$0xff]
      %v562 = vld [vmem:[%s537 + $0x38] sm:$0xff]
      %v563 = vld [vmem:[%s543] sm:$0xff]
      %v564 = vld [vmem:[%s543 + $0x8] sm:$0xff]
      %v565 = vld [vmem:[%s543 + $0x10] sm:$0xff]
      %v566 = vld [vmem:[%s543 + $0x18] sm:$0xff]
      %v567 = vld [vmem:[%s543 + $0x20] sm:$0xff]
      %v568 = vld [vmem:[%s543 + $0x28] sm:$0xff]
      %v569 = vld [vmem:[%s543 + $0x30] sm:$0xff]
      %v570 = vld [vmem:[%s543 + $0x38] sm:$0xff]
      %v571 = vld [vmem:[%s2] sm:$0x1]
      %v572 = vld [vmem:[%s3] sm:$0x1]
      %vm573 = vcmask 261120
      %v574 = vsel %vm573, %v555, 0.0
      %575 = vadd.xlane.f32.xlu0 %v574
      %v576 = vpop.xlane.xlu0 %575
      %v577 = vsel %vm573, %v556, 0.0
      %578 = vadd.xlane.f32.xlu0 %v577
      %v579 = vpop.xlane.xlu0 %578
      %v580 = vsel %vm573, %v557, 0.0
      %581 = vadd.xlane.f32.xlu0 %v580
      %v582 = vpop.xlane.xlu0 %581
      %v583 = vsel %vm573, %v558, 0.0
      %584 = vadd.xlane.f32.xlu0 %v583
      %v585 = vpop.xlane.xlu0 %584
      %v586 = vsel %vm573, %v559, 0.0
      %587 = vadd.xlane.f32.xlu0 %v586
      %v588 = vpop.xlane.xlu0 %587
      %v589 = vsel %vm573, %v560, 0.0
      %590 = vadd.xlane.f32.xlu0 %v589
      %v591 = vpop.xlane.xlu0 %590
      %v592 = vsel %vm573, %v561, 0.0
      %593 = vadd.xlane.f32.xlu0 %v592
      %v594 = vpop.xlane.xlu0 %593
      %v595 = vsel %vm573, %v562, 0.0
      %596 = vadd.xlane.f32.xlu0 %v595
      %v597 = vpop.xlane.xlu0 %596
      %v598 = vrcp.pop 32.0
      %v599 = vmul.f32 %v576, %v598
      %v600 = vmul.f32 %v579, %v598
      %v601 = vmul.f32 %v582, %v598
      %v602 = vmul.f32 %v585, %v598
      %v603 = vmul.f32 %v588, %v598
      %v604 = vmul.f32 %v591, %v598
      %v605 = vmul.f32 %v594, %v598
      %v606 = vmul.f32 %v597, %v598
      %v607 = vsub.f32 %v555, %v599
      %v608 = vsub.f32 %v556, %v600
      %v609 = vsub.f32 %v557, %v601
      %v610 = vsub.f32 %v558, %v602
      %v611 = vsub.f32 %v559, %v603
      %v612 = vsub.f32 %v560, %v604
      %v613 = vsub.f32 %v561, %v605
      %v614 = vsub.f32 %v562, %v606
      %v615 = vmul.f32 %v607, %v607
      %v616 = vmul.f32 %v608, %v608
      %v617 = vmul.f32 %v609, %v609
      %v618 = vmul.f32 %v610, %v610
      %v619 = vmul.f32 %v611, %v611
      %v620 = vmul.f32 %v612, %v612
      %v621 = vmul.f32 %v613, %v613
      %v622 = vmul.f32 %v614, %v614
      %v623 = vsel %vm573, %v615, 0.0
      %624 = vadd.xlane.f32.xlu0 %v623
      %v625 = vpop.xlane.xlu0 %624
      %v626 = vsel %vm573, %v616, 0.0
      %627 = vadd.xlane.f32.xlu0 %v626
      %v628 = vpop.xlane.xlu0 %627
      %v629 = vsel %vm573, %v617, 0.0
      %630 = vadd.xlane.f32.xlu0 %v629
      %v631 = vpop.xlane.xlu0 %630
      %v632 = vsel %vm573, %v618, 0.0
      %633 = vadd.xlane.f32.xlu0 %v632
      %v634 = vpop.xlane.xlu0 %633
      %v635 = vsel %vm573, %v619, 0.0
      %636 = vadd.xlane.f32.xlu0 %v635
      %v637 = vpop.xlane.xlu0 %636
      %v638 = vsel %vm573, %v620, 0.0
      %639 = vadd.xlane.f32.xlu0 %v638
      %v640 = vpop.xlane.xlu0 %639
      %v641 = vsel %vm573, %v621, 0.0
      %642 = vadd.xlane.f32.xlu0 %v641
      %v643 = vpop.xlane.xlu0 %642
      %v644 = vsel %vm573, %v622, 0.0
      %645 = vadd.xlane.f32.xlu0 %v644
      %v646 = vpop.xlane.xlu0 %645
      %v647 = vmul.f32 %v625, %v598
      %v648 = vmul.f32 %v628, %v598
      %v649 = vmul.f32 %v631, %v598
      %v650 = vmul.f32 %v634, %v598
      %v651 = vmul.f32 %v637, %v598
      %v652 = vmul.f32 %v640, %v598
      %v653 = vmul.f32 %v643, %v598
      %v654 = vmul.f32 %v646, %v598
      %v655 = vadd.f32 %v647, 1e-05
      %v656 = vadd.f32 %v648, 1e-05
      %v657 = vadd.f32 %v649, 1e-05
      %v658 = vadd.f32 %v650, 1e-05
      %v659 = vadd.f32 %v651, 1e-05
      %v660 = vadd.f32 %v652, 1e-05
      %v661 = vadd.f32 %v653, 1e-05
      %v662 = vadd.f32 %v654, 1e-05
      %v663 = vrsqrt.pop %v655
      %v664 = vrsqrt.pop %v656
      %v665 = vrsqrt.pop %v657
      %v666 = vrsqrt.pop %v658
      %v667 = vrsqrt.pop %v659
      %v668 = vrsqrt.pop %v660
      %v669 = vrsqrt.pop %v661
      %v670 = vrsqrt.pop %v662
      %v671 = vmul.f32 %v607, %v663
      %v672 = vmul.f32 %v608, %v664
      %v673 = vmul.f32 %v609, %v665
      %v674 = vmul.f32 %v610, %v666
      %v675 = vmul.f32 %v611, %v667
      %v676 = vmul.f32 %v612, %v668
      %v677 = vmul.f32 %v613, %v669
      %v678 = vmul.f32 %v614, %v670
      %v680 = vlaneseq
      %v681 = vshrl.u32 %v680, 7
      %v682 = vsub.s32 0, %v681
      %v683 = vrot.slane %v571, %v682
      %v685 = vmul.f32 %v671, %v683
      %v686 = vmul.f32 %v672, %v683
      %v687 = vmul.f32 %v673, %v683
      %v688 = vmul.f32 %v674, %v683
      %v689 = vmul.f32 %v675, %v683
      %v690 = vmul.f32 %v676, %v683
      %v691 = vmul.f32 %v677, %v683
      %v692 = vmul.f32 %v678, %v683
      %v694 = vlaneseq
      %v695 = vshrl.u32 %v694, 7
      %v696 = vsub.s32 0, %v695
      %v697 = vrot.slane %v572, %v696
      %v699 = vadd.f32 %v685, %v697
      %v700 = vadd.f32 %v686, %v697
      %v701 = vadd.f32 %v687, %v697
      %v702 = vadd.f32 %v688, %v697
      %v703 = vadd.f32 %v689, %v697
      %v704 = vadd.f32 %v690, %v697
      %v705 = vadd.f32 %v691, %v697
      %v706 = vadd.f32 %v692, %v697
      %v707 = vpack.c.bf16 %v700, %v699
      %v708 = vpack.c.bf16 %v702, %v701
      %v709 = vpack.c.bf16 %v704, %v703
      %v710 = vpack.c.bf16 %v706, %v705
      %v711 = vsel %vm573, %v563, 0.0
      %712 = vadd.xlane.f32.xlu0 %v711
      %v713 = vpop.xlane.xlu0 %712
      %v714 = vsel %vm573, %v564, 0.0
      %715 = vadd.xlane.f32.xlu0 %v714
      %v716 = vpop.xlane.xlu0 %715
      %v717 = vsel %vm573, %v565, 0.0
      %718 = vadd.xlane.f32.xlu0 %v717
      %v719 = vpop.xlane.xlu0 %718
      %v720 = vsel %vm573, %v566, 0.0
      %721 = vadd.xlane.f32.xlu0 %v720
      %v722 = vpop.xlane.xlu0 %721
      %v723 = vsel %vm573, %v567, 0.0
      %724 = vadd.xlane.f32.xlu0 %v723
      %v725 = vpop.xlane.xlu0 %724
      %v726 = vsel %vm573, %v568, 0.0
      %727 = vadd.xlane.f32.xlu0 %v726
      %v728 = vpop.xlane.xlu0 %727
      %v729 = vsel %vm573, %v569, 0.0
      %730 = vadd.xlane.f32.xlu0 %v729
      %v731 = vpop.xlane.xlu0 %730
      %v732 = vsel %vm573, %v570, 0.0
      %733 = vadd.xlane.f32.xlu0 %v732
      %v734 = vpop.xlane.xlu0 %733
      %v735 = vmul.f32 %v713, %v598
      %v736 = vmul.f32 %v716, %v598
      %v737 = vmul.f32 %v719, %v598
      %v738 = vmul.f32 %v722, %v598
      %v739 = vmul.f32 %v725, %v598
      %v740 = vmul.f32 %v728, %v598
      %v741 = vmul.f32 %v731, %v598
      %v742 = vmul.f32 %v734, %v598
      %v743 = vsub.f32 %v563, %v735
      %v744 = vsub.f32 %v564, %v736
      %v745 = vsub.f32 %v565, %v737
      %v746 = vsub.f32 %v566, %v738
      %v747 = vsub.f32 %v567, %v739
      %v748 = vsub.f32 %v568, %v740
      %v749 = vsub.f32 %v569, %v741
      %v750 = vsub.f32 %v570, %v742
      %v751 = vmul.f32 %v743, %v743
      %v752 = vmul.f32 %v744, %v744
      %v753 = vmul.f32 %v745, %v745
      %v754 = vmul.f32 %v746, %v746
      %v755 = vmul.f32 %v747, %v747
      %v756 = vmul.f32 %v748, %v748
      %v757 = vmul.f32 %v749, %v749
      %v758 = vmul.f32 %v750, %v750
      %v759 = vsel %vm573, %v751, 0.0
      %760 = vadd.xlane.f32.xlu0 %v759
      %v761 = vpop.xlane.xlu0 %760
      %v762 = vsel %vm573, %v752, 0.0
      %763 = vadd.xlane.f32.xlu0 %v762
      %v764 = vpop.xlane.xlu0 %763
      %v765 = vsel %vm573, %v753, 0.0
      %766 = vadd.xlane.f32.xlu0 %v765
      %v767 = vpop.xlane.xlu0 %766
      %v768 = vsel %vm573, %v754, 0.0
      %769 = vadd.xlane.f32.xlu0 %v768
      %v770 = vpop.xlane.xlu0 %769
      %v771 = vsel %vm573, %v755, 0.0
      %772 = vadd.xlane.f32.xlu0 %v771
      %v773 = vpop.xlane.xlu0 %772
      %v774 = vsel %vm573, %v756, 0.0
      %775 = vadd.xlane.f32.xlu0 %v774
      %v776 = vpop.xlane.xlu0 %775
      %v777 = vsel %vm573, %v757, 0.0
      %778 = vadd.xlane.f32.xlu0 %v777
      %v779 = vpop.xlane.xlu0 %778
      %v780 = vsel %vm573, %v758, 0.0
      %781 = vadd.xlane.f32.xlu0 %v780
      %v782 = vpop.xlane.xlu0 %781
      %v783 = vmul.f32 %v761, %v598
      %v784 = vmul.f32 %v764, %v598
      %v785 = vmul.f32 %v767, %v598
      %v786 = vmul.f32 %v770, %v598
      %v787 = vmul.f32 %v773, %v598
      %v788 = vmul.f32 %v776, %v598
      %v789 = vmul.f32 %v779, %v598
      %v790 = vmul.f32 %v782, %v598
      %v791 = vadd.f32 %v783, 1e-05
      %v792 = vadd.f32 %v784, 1e-05
      %v793 = vadd.f32 %v785, 1e-05
      %v794 = vadd.f32 %v786, 1e-05
      %v795 = vadd.f32 %v787, 1e-05
      %v796 = vadd.f32 %v788, 1e-05
      %v797 = vadd.f32 %v789, 1e-05
      %v798 = vadd.f32 %v790, 1e-05
      %v799 = vrsqrt.pop %v791
      %v800 = vrsqrt.pop %v792
      %v801 = vrsqrt.pop %v793
      %v802 = vrsqrt.pop %v794
      %v803 = vrsqrt.pop %v795
      %v804 = vrsqrt.pop %v796
      %v805 = vrsqrt.pop %v797
      %v806 = vrsqrt.pop %v798
      %v807 = vmul.f32 %v743, %v799
      %v808 = vmul.f32 %v744, %v800
      %v809 = vmul.f32 %v745, %v801
      %v810 = vmul.f32 %v746, %v802
      %v811 = vmul.f32 %v747, %v803
      %v812 = vmul.f32 %v748, %v804
      %v813 = vmul.f32 %v749, %v805
      %v814 = vmul.f32 %v750, %v806
      %v815 = vmul.f32 %v807, %v683
      %v816 = vmul.f32 %v808, %v683
      %v817 = vmul.f32 %v809, %v683
      %v818 = vmul.f32 %v810, %v683
      %v819 = vmul.f32 %v811, %v683
      %v820 = vmul.f32 %v812, %v683
      %v821 = vmul.f32 %v813, %v683
      %v822 = vmul.f32 %v814, %v683
      %v823 = vadd.f32 %v815, %v697
      %v824 = vadd.f32 %v816, %v697
      %v825 = vadd.f32 %v817, %v697
      %v826 = vadd.f32 %v818, %v697
      %v827 = vadd.f32 %v819, %v697
      %v828 = vadd.f32 %v820, %v697
      %v829 = vadd.f32 %v821, %v697
      %v830 = vadd.f32 %v822, %v697
      %v831 = vpack.c.bf16 %v824, %v823
      %v832 = vpack.c.bf16 %v826, %v825
      %v833 = vpack.c.bf16 %v828, %v827
      %v834 = vpack.c.bf16 %v830, %v829
      %835 = vst.msk [vmem:[#allocation2] sm:$0xff] %vm573, 0.0
      %836 = vst.msk [vmem:[#allocation2 + $0x8] sm:$0xff] %vm573, 0.0
      %837 = vst.msk [vmem:[#allocation2 + $0x10] sm:$0xff] %vm573, 0.0
      %838 = vst.msk [vmem:[#allocation2 + $0x18] sm:$0xff] %vm573, 0.0
      %839 = vst.msk [vmem:[#allocation2 + $0x20] sm:$0xff] %vm573, 0.0
      %840 = vst.msk [vmem:[#allocation2 + $0x28] sm:$0xff] %vm573, 0.0
      %841 = vst.msk [vmem:[#allocation2 + $0x30] sm:$0xff] %vm573, 0.0
      %842 = vst.msk [vmem:[#allocation2 + $0x38] sm:$0xff] %vm573, 0.0
      %v843 = vld [vmem:[%s4] sm:$0xf]
      %v844 = vld [vmem:[%s4 + $0x4] sm:$0xf]
      %v845 = vld [vmem:[%s4 + $0x8] sm:$0xf]
      %v846 = vld [vmem:[%s4 + $0xc] sm:$0xf]
      %v851 = vunpack.c.l.b16 %v843
      %v852 = vunpack.c.l.b16 %v844
      %v853 = vunpack.c.l.b16 %v845
      %v854 = vunpack.c.l.b16 %v846
      %v855 = vpack.c.b16 %v852, %v851
      %v856 = vpack.c.b16 %v854, %v853
      %v860 = vsel %vm573, %v707, 0
      %v863 = vsel %vm573, %v708, 0
      %v866 = vsel %vm573, %v709, 0
      %v869 = vsel %vm573, %v710, 0
      %871 = vmatprep.subr.bf16.mxu0 0
      %872 = vmatpush1.bf16.msra.mxu0 0
      %873 = vmatprep.subr.bf16.mxu0 0
      %874 = vmatpush1.bf16.msra.mxu0 0
      %875 = vmatprep.subr.bf16.mxu0 0
      %876 = vmatpush1.bf16.msra.mxu0 0
      %877 = vmatprep.subr.bf16.mxu0 0
      %878 = vmatpush1.bf16.msra.mxu0 0
      %879 = vmatprep.subr.bf16.mxu0 0
      %880 = vmatpush1.bf16.msra.mxu0 0
      %881 = vmatprep.subr.bf16.mxu0 0
      %882 = vmatpush1.bf16.msra.mxu0 0
      %883 = vmatprep.subr.bf16.mxu0 0
      %884 = vmatpush1.bf16.msra.mxu0 %v856
      %885 = vmatprep.subr.bf16.mxu0 0
      %886 = vmatpush1.bf16.msra.mxu0 %v855
      %887 = vmatprep.subr.bf16.mxu0 0
      %888 = vmatpush2.bf16.msra.mxu0 0
      %889 = vmatprep.subr.bf16.mxu0 0
      %890 = vmatpush2.bf16.msra.mxu0 0
      %891 = vmatprep.subr.bf16.mxu0 0
      %892 = vmatpush2.bf16.msra.mxu0 0
      %893 = vmatprep.subr.bf16.mxu0 0
      %894 = vmatpush2.bf16.msra.mxu0 0
      %895 = vmatprep.subr.bf16.mxu0 0
      %896 = vmatpush2.bf16.msra.mxu0 0
      %897 = vmatprep.subr.bf16.mxu0 0
      %898 = vmatpush2.bf16.msra.mxu0 0
      %899 = vmatprep.subr.bf16.mxu0 0
      %900 = vmatpush2.bf16.msra.mxu0 0
      %901 = vmatprep.subr.bf16.mxu0 0
      %902 = vmatpush2.bf16.msra.mxu0 0
      %903 = vmatprep.mubr.bf16.mxu0 0
      %904 = vmatmul.mubr.bf16.gmra.mxu0 %v860
      %v905 = vpop.f32.mrf.mxu0
      %v906 = vadd.f32 0.0, %v905
      %v907 = vpop.f32.mrf.mxu0
      %v908 = vpop.f32.mrf.mxu0
      %v909 = vadd.f32 0.0, %v908
      %v910 = vpop.f32.mrf.mxu0
      %911 = vmatprep.mubr.bf16.mxu0 0
      %912 = vmatmul.mubr.bf16.gmra.mxu0 %v863
      %v913 = vpop.f32.mrf.mxu0
      %v914 = vadd.f32 0.0, %v913
      %v915 = vpop.f32.mrf.mxu0
      %v916 = vpop.f32.mrf.mxu0
      %v917 = vadd.f32 0.0, %v916
      %v918 = vpop.f32.mrf.mxu0
      %919 = vmatprep.mubr.bf16.mxu0 0
      %920 = vmatmul.mubr.bf16.gmra.mxu0 %v866
      %v921 = vpop.f32.mrf.mxu0
      %v922 = vadd.f32 0.0, %v921
      %v923 = vpop.f32.mrf.mxu0
      %v924 = vpop.f32.mrf.mxu0
      %v925 = vadd.f32 0.0, %v924
      %v926 = vpop.f32.mrf.mxu0
      %927 = vmatprep.mubr.bf16.mxu0 0
      %928 = vmatmul.mubr.bf16.gmra.mxu0 %v869
      %v929 = vpop.f32.mrf.mxu0
      %v930 = vadd.f32 0.0, %v929
      %v931 = vpop.f32.mrf.mxu0
      %v932 = vpop.f32.mrf.mxu0
      %v933 = vadd.f32 0.0, %v932
      %v934 = vpop.f32.mrf.mxu0
      %935 = vdwg.mxu0
      %v936 = vld [vmem:[%s5] sm:$0xf]
      %v937 = vld [vmem:[%s5 + $0x4] sm:$0xf]
      %v938 = vld [vmem:[%s5 + $0x8] sm:$0xf]
      %v939 = vld [vmem:[%s5 + $0xc] sm:$0xf]
      %v944 = vunpack.c.l.b16 %v936
      %v945 = vunpack.c.l.b16 %v937
      %v946 = vunpack.c.l.b16 %v938
      %v947 = vunpack.c.l.b16 %v939
      %v948 = vpack.c.b16 %v945, %v944
      %v949 = vpack.c.b16 %v947, %v946
      %v953 = vsel %vm573, %v831, 0
      %v956 = vsel %vm573, %v832, 0
      %v959 = vsel %vm573, %v833, 0
      %v962 = vsel %vm573, %v834, 0
      %964 = vmatprep.subr.bf16.mxu0 0
      %965 = vmatpush1.bf16.msra.mxu0 0
      %966 = vmatprep.subr.bf16.mxu0 0
      %967 = vmatpush1.bf16.msra.mxu0 0
      %968 = vmatprep.subr.bf16.mxu0 0
      %969 = vmatpush1.bf16.msra.mxu0 0
      %970 = vmatprep.subr.bf16.mxu0 0
      %971 = vmatpush1.bf16.msra.mxu0 0
      %972 = vmatprep.subr.bf16.mxu0 0
      %973 = vmatpush1.bf16.msra.mxu0 0
      %974 = vmatprep.subr.bf16.mxu0 0
      %975 = vmatpush1.bf16.msra.mxu0 0
      %976 = vmatprep.subr.bf16.mxu0 0
      %977 = vmatpush1.bf16.msra.mxu0 %v949
      %978 = vmatprep.subr.bf16.mxu0 0
      %979 = vmatpush1.bf16.msra.mxu0 %v948
      %980 = vmatprep.subr.bf16.mxu0 0
      %981 = vmatpush2.bf16.msra.mxu0 0
      %982 = vmatprep.subr.bf16.mxu0 0
      %983 = vmatpush2.bf16.msra.mxu0 0
      %984 = vmatprep.subr.bf16.mxu0 0
      %985 = vmatpush2.bf16.msra.mxu0 0
      %986 = vmatprep.subr.bf16.mxu0 0
      %987 = vmatpush2.bf16.msra.mxu0 0
      %988 = vmatprep.subr.bf16.mxu0 0
      %989 = vmatpush2.bf16.msra.mxu0 0
      %990 = vmatprep.subr.bf16.mxu0 0
      %991 = vmatpush2.bf16.msra.mxu0 0
      %992 = vmatprep.subr.bf16.mxu0 0
      %993 = vmatpush2.bf16.msra.mxu0 0
      %994 = vmatprep.subr.bf16.mxu0 0
      %995 = vmatpush2.bf16.msra.mxu0 0
      %996 = vmatprep.mubr.bf16.mxu0 0
      %997 = vmatmul.mubr.bf16.gmra.mxu0 %v953
      %v998 = vpop.f32.mrf.mxu0
      %v999 = vadd.f32 0.0, %v998
      %v1000 = vpop.f32.mrf.mxu0
      %v1001 = vpop.f32.mrf.mxu0
      %v1002 = vadd.f32 0.0, %v1001
      %v1003 = vpop.f32.mrf.mxu0
      %1004 = vmatprep.mubr.bf16.mxu0 0
      %1005 = vmatmul.mubr.bf16.gmra.mxu0 %v956
      %v1006 = vpop.f32.mrf.mxu0
      %v1007 = vadd.f32 0.0, %v1006
      %v1008 = vpop.f32.mrf.mxu0
      %v1009 = vpop.f32.mrf.mxu0
      %v1010 = vadd.f32 0.0, %v1009
      %v1011 = vpop.f32.mrf.mxu0
      %1012 = vmatprep.mubr.bf16.mxu0 0
      %1013 = vmatmul.mubr.bf16.gmra.mxu0 %v959
      %v1014 = vpop.f32.mrf.mxu0
      %v1015 = vadd.f32 0.0, %v1014
      %v1016 = vpop.f32.mrf.mxu0
      %v1017 = vpop.f32.mrf.mxu0
      %v1018 = vadd.f32 0.0, %v1017
      %v1019 = vpop.f32.mrf.mxu0
      %1020 = vmatprep.mubr.bf16.mxu0 0
      %1021 = vmatmul.mubr.bf16.gmra.mxu0 %v962
      %v1022 = vpop.f32.mrf.mxu0
      %v1023 = vadd.f32 0.0, %v1022
      %v1024 = vpop.f32.mrf.mxu0
      %v1025 = vpop.f32.mrf.mxu0
      %v1026 = vadd.f32 0.0, %v1025
      %v1027 = vpop.f32.mrf.mxu0
      %1028 = vdwg.mxu0
      %v1029 = vld [vmem:[%s6] sm:$0xf]
      %v1030 = vld [vmem:[%s6 + $0x4] sm:$0xf]
      %v1031 = vld [vmem:[%s6 + $0x8] sm:$0xf]
      %v1032 = vld [vmem:[%s6 + $0xc] sm:$0xf]
      %v1037 = vunpack.c.l.b16 %v1029
      %v1038 = vunpack.c.l.b16 %v1030
      %v1039 = vunpack.c.l.b16 %v1031
      %v1040 = vunpack.c.l.b16 %v1032
      %v1041 = vpack.c.b16 %v1038, %v1037
      %v1042 = vpack.c.b16 %v1040, %v1039
      %1045 = vmatprep.subr.bf16.mxu0 0
      %1046 = vmatpush1.bf16.msra.mxu0 0
      %1047 = vmatprep.subr.bf16.mxu0 0
      %1048 = vmatpush1.bf16.msra.mxu0 0
      %1049 = vmatprep.subr.bf16.mxu0 0
      %1050 = vmatpush1.bf16.msra.mxu0 0
      %1051 = vmatprep.subr.bf16.mxu0 0
      %1052 = vmatpush1.bf16.msra.mxu0 0
      %1053 = vmatprep.subr.bf16.mxu0 0
      %1054 = vmatpush1.bf16.msra.mxu0 0
      %1055 = vmatprep.subr.bf16.mxu0 0
      %1056 = vmatpush1.bf16.msra.mxu0 0
      %1057 = vmatprep.subr.bf16.mxu0 0
      %1058 = vmatpush1.bf16.msra.mxu0 %v1042
      %1059 = vmatprep.subr.bf16.mxu0 0
      %1060 = vmatpush1.bf16.msra.mxu0 %v1041
      %1061 = vmatprep.subr.bf16.mxu0 0
      %1062 = vmatpush2.bf16.msra.mxu0 0
      %1063 = vmatprep.subr.bf16.mxu0 0
      %1064 = vmatpush2.bf16.msra.mxu0 0
      %1065 = vmatprep.subr.bf16.mxu0 0
      %1066 = vmatpush2.bf16.msra.mxu0 0
      %1067 = vmatprep.subr.bf16.mxu0 0
      %1068 = vmatpush2.bf16.msra.mxu0 0
      %1069 = vmatprep.subr.bf16.mxu0 0
      %1070 = vmatpush2.bf16.msra.mxu0 0
      %1071 = vmatprep.subr.bf16.mxu0 0
      %1072 = vmatpush2.bf16.msra.mxu0 0
      %1073 = vmatprep.subr.bf16.mxu0 0
      %1074 = vmatpush2.bf16.msra.mxu0 0
      %1075 = vmatprep.subr.bf16.mxu0 0
      %1076 = vmatpush2.bf16.msra.mxu0 0
      %1077 = vmatprep.mubr.bf16.mxu0 0
      %1078 = vmatmul.mubr.bf16.gmra.mxu0 %v953
      %v1079 = vpop.f32.mrf.mxu0
      %v1080 = vadd.f32 0.0, %v1079
      %v1081 = vpop.f32.mrf.mxu0
      %v1082 = vpop.f32.mrf.mxu0
      %v1083 = vadd.f32 0.0, %v1082
      %v1084 = vpop.f32.mrf.mxu0
      %1085 = vmatprep.mubr.bf16.mxu0 0
      %1086 = vmatmul.mubr.bf16.gmra.mxu0 %v956
      %v1087 = vpop.f32.mrf.mxu0
      %v1088 = vadd.f32 0.0, %v1087
      %v1089 = vpop.f32.mrf.mxu0
      %v1090 = vpop.f32.mrf.mxu0
      %v1091 = vadd.f32 0.0, %v1090
      %v1092 = vpop.f32.mrf.mxu0
      %1093 = vmatprep.mubr.bf16.mxu0 0
      %1094 = vmatmul.mubr.bf16.gmra.mxu0 %v959
      %v1095 = vpop.f32.mrf.mxu0
      %v1096 = vadd.f32 0.0, %v1095
      %v1097 = vpop.f32.mrf.mxu0
      %v1098 = vpop.f32.mrf.mxu0
      %v1099 = vadd.f32 0.0, %v1098
      %v1100 = vpop.f32.mrf.mxu0
      %1101 = vmatprep.mubr.bf16.mxu0 0
      %1102 = vmatmul.mubr.bf16.gmra.mxu0 %v962
      %v1103 = vpop.f32.mrf.mxu0
      %v1104 = vadd.f32 0.0, %v1103
      %v1105 = vpop.f32.mrf.mxu0
      %v1106 = vpop.f32.mrf.mxu0
      %v1107 = vadd.f32 0.0, %v1106
      %v1108 = vpop.f32.mrf.mxu0
      %1109 = vdwg.mxu0
      %v1110 = vpack.c.bf16 %v909, %v906
      %v1111 = vpack.c.bf16 %v917, %v914
      %v1112 = vpack.c.bf16 %v925, %v922
      %v1113 = vpack.c.bf16 %v933, %v930
      %v1114 = vpack.c.bf16 %v1002, %v999
      %v1115 = vpack.c.bf16 %v1010, %v1007
      %v1116 = vpack.c.bf16 %v1018, %v1015
      %v1117 = vpack.c.bf16 %v1026, %v1023
      %vm1118 = vcmask 64512
      %v1120 = vsel %vm1118, %v1110, 0
      %v1123 = vsel %vm1118, %v1111, 0
      %v1126 = vsel %vm1118, %v1112, 0
      %v1129 = vsel %vm1118, %v1113, 0
      %v1132 = vsel %vm1118, %v1114, 0
      %v1135 = vsel %vm1118, %v1115, 0
      %v1138 = vsel %vm1118, %v1116, 0
      %v1141 = vsel %vm1118, %v1117, 0
      %1143 = vmatprep.subr.bf16.mxu0 0
      %1144 = vmatpush1.bf16.xpose.msra.mxu0 0
      %1145 = vmatprep.subr.bf16.mxu0 0
      %1146 = vmatpush1.bf16.xpose.msra.mxu0 0
      %1147 = vmatprep.subr.bf16.mxu0 0
      %1148 = vmatpush1.bf16.xpose.msra.mxu0 0
      %1149 = vmatprep.subr.bf16.mxu0 0
      %1150 = vmatpush1.bf16.xpose.msra.mxu0 0
      %1151 = vmatprep.subr.bf16.mxu0 0
      %1152 = vmatpush1.bf16.xpose.msra.mxu0 %v1141
      %1153 = vmatprep.subr.bf16.mxu0 0
      %1154 = vmatpush1.bf16.xpose.msra.mxu0 %v1138
      %1155 = vmatprep.subr.bf16.mxu0 0
      %1156 = vmatpush1.bf16.xpose.msra.mxu0 %v1135
      %1157 = vmatprep.subr.bf16.mxu0 0
      %1158 = vmatpush1.bf16.xpose.msra.mxu0 %v1132
      %1159 = vmatprep.subr.bf16.mxu0 0
      %1160 = vmatpush2.bf16.xpose.msra.mxu0 0
      %1161 = vmatprep.subr.bf16.mxu0 0
      %1162 = vmatpush2.bf16.xpose.msra.mxu0 0
      %1163 = vmatprep.subr.bf16.mxu0 0
      %1164 = vmatpush2.bf16.xpose.msra.mxu0 0
      %1165 = vmatprep.subr.bf16.mxu0 0
      %1166 = vmatpush2.bf16.xpose.msra.mxu0 0
      %1167 = vmatprep.subr.bf16.mxu0 0
      %1168 = vmatpush2.bf16.xpose.msra.mxu0 0
      %1169 = vmatprep.subr.bf16.mxu0 0
      %1170 = vmatpush2.bf16.xpose.msra.mxu0 0
      %1171 = vmatprep.subr.bf16.mxu0 0
      %1172 = vmatpush2.bf16.xpose.msra.mxu0 0
      %1173 = vmatprep.subr.bf16.mxu0 0
      %1174 = vmatpush2.bf16.xpose.msra.mxu0 0
      %1175 = vmatprep.mubr.bf16.mxu0 0
      %1176 = vmatmul.mubr.bf16.gmra.mxu0 %v1120
      %v1177 = vpop.f32.mrf.mxu0
      %v1178 = vadd.f32 0.0, %v1177
      %v1179 = vpop.f32.mrf.mxu0
      %v1180 = vpop.f32.mrf.mxu0
      %v1181 = vadd.f32 0.0, %v1180
      %v1182 = vpop.f32.mrf.mxu0
      %1183 = vmatprep.mubr.bf16.mxu0 0
      %1184 = vmatmul.mubr.bf16.gmra.mxu0 %v1123
      %v1185 = vpop.f32.mrf.mxu0
      %v1186 = vadd.f32 0.0, %v1185
      %v1187 = vpop.f32.mrf.mxu0
      %v1188 = vpop.f32.mrf.mxu0
      %v1189 = vadd.f32 0.0, %v1188
      %v1190 = vpop.f32.mrf.mxu0
      %1191 = vmatprep.mubr.bf16.mxu0 0
      %1192 = vmatmul.mubr.bf16.gmra.mxu0 %v1126
      %v1193 = vpop.f32.mrf.mxu0
      %v1194 = vadd.f32 0.0, %v1193
      %v1195 = vpop.f32.mrf.mxu0
      %v1196 = vpop.f32.mrf.mxu0
      %v1197 = vadd.f32 0.0, %v1196
      %v1198 = vpop.f32.mrf.mxu0
      %1199 = vmatprep.mubr.bf16.mxu0 0
      %1200 = vmatmul.mubr.bf16.gmra.mxu0 %v1129
      %v1201 = vpop.f32.mrf.mxu0
      %v1202 = vadd.f32 0.0, %v1201
      %v1203 = vpop.f32.mrf.mxu0
      %v1204 = vpop.f32.mrf.mxu0
      %v1205 = vadd.f32 0.0, %v1204
      %v1206 = vpop.f32.mrf.mxu0
      %1207 = vdwg.mxu0
      %vm1208 = vcmask 523264
      %v1209 = vsel %vm1208, %v1178, -inf
      %1210 = vmax.xlane.f32.xlu0 %v1209
      %v1211 = vpop.xlane.xlu0 %1210
      %v1212 = vsel %vm1208, %v1181, -inf
      %1213 = vmax.xlane.f32.xlu0 %v1212
      %v1214 = vpop.xlane.xlu0 %1213
      %v1215 = vsel %vm1208, %v1186, -inf
      %1216 = vmax.xlane.f32.xlu0 %v1215
      %v1217 = vpop.xlane.xlu0 %1216
      %v1218 = vsel %vm1208, %v1189, -inf
      %1219 = vmax.xlane.f32.xlu0 %v1218
      %v1220 = vpop.xlane.xlu0 %1219
      %v1221 = vsel %vm1208, %v1194, -inf
      %1222 = vmax.xlane.f32.xlu0 %v1221
      %v1223 = vpop.xlane.xlu0 %1222
      %v1224 = vsel %vm1208, %v1197, -inf
      %1225 = vmax.xlane.f32.xlu0 %v1224
      %v1226 = vpop.xlane.xlu0 %1225
      %v1227 = vsel %vm1208, %v1202, -inf
      %1228 = vmax.xlane.f32.xlu0 %v1227
      %v1229 = vpop.xlane.xlu0 %1228
      %v1230 = vsel %vm1208, %v1205, -inf
      %1231 = vmax.xlane.f32.xlu0 %v1230
      %v1232 = vpop.xlane.xlu0 %1231
      %v1233 = vsub.f32 %v1178, %v1211
      %v1234 = vsub.f32 %v1181, %v1214
      %v1235 = vsub.f32 %v1186, %v1217
      %v1236 = vsub.f32 %v1189, %v1220
      %v1237 = vsub.f32 %v1194, %v1223
      %v1238 = vsub.f32 %v1197, %v1226
      %v1239 = vsub.f32 %v1202, %v1229
      %v1240 = vsub.f32 %v1205, %v1232
      %v1241 = vmul.f32 %v1233, 1.442695
      %v1242 = vpow.pop %v1241
      %v1243 = vmul.f32 %v1234, 1.442695
      %v1244 = vpow.pop %v1243
      %v1245 = vmul.f32 %v1235, 1.442695
      %v1246 = vpow.pop %v1245
      %v1247 = vmul.f32 %v1236, 1.442695
      %v1248 = vpow.pop %v1247
      %v1249 = vmul.f32 %v1237, 1.442695
      %v1250 = vpow.pop %v1249
      %v1251 = vmul.f32 %v1238, 1.442695
      %v1252 = vpow.pop %v1251
      %v1253 = vmul.f32 %v1239, 1.442695
      %v1254 = vpow.pop %v1253
      %v1255 = vmul.f32 %v1240, 1.442695
      %v1256 = vpow.pop %v1255
      %v1257 = vsel %vm1208, %v1242, 0.0
      %1258 = vadd.xlane.f32.xlu0 %v1257
      %v1259 = vpop.xlane.xlu0 %1258
      %v1260 = vsel %vm1208, %v1244, 0.0
      %1261 = vadd.xlane.f32.xlu0 %v1260
      %v1262 = vpop.xlane.xlu0 %1261
      %v1263 = vsel %vm1208, %v1246, 0.0
      %1264 = vadd.xlane.f32.xlu0 %v1263
      %v1265 = vpop.xlane.xlu0 %1264
      %v1266 = vsel %vm1208, %v1248, 0.0
      %1267 = vadd.xlane.f32.xlu0 %v1266
      %v1268 = vpop.xlane.xlu0 %1267
      %v1269 = vsel %vm1208, %v1250, 0.0
      %1270 = vadd.xlane.f32.xlu0 %v1269
      %v1271 = vpop.xlane.xlu0 %1270
      %v1272 = vsel %vm1208, %v1252, 0.0
      %1273 = vadd.xlane.f32.xlu0 %v1272
      %v1274 = vpop.xlane.xlu0 %1273
      %v1275 = vsel %vm1208, %v1254, 0.0
      %1276 = vadd.xlane.f32.xlu0 %v1275
      %v1277 = vpop.xlane.xlu0 %1276
      %v1278 = vsel %vm1208, %v1256, 0.0
      %1279 = vadd.xlane.f32.xlu0 %v1278
      %v1280 = vpop.xlane.xlu0 %1279
      %v1281 = vpack.c.bf16 %v1244, %v1242
      %v1282 = vpack.c.bf16 %v1248, %v1246
      %v1283 = vpack.c.bf16 %v1252, %v1250
      %v1284 = vpack.c.bf16 %v1256, %v1254
      %v1285 = vpack.c.bf16 %v1083, %v1080
      %v1286 = vpack.c.bf16 %v1091, %v1088
      %v1287 = vpack.c.bf16 %v1099, %v1096
      %v1288 = vpack.c.bf16 %v1107, %v1104
      %v1290 = vsel %vm1208, %v1281, 0
      %v1293 = vsel %vm1208, %v1282, 0
      %v1296 = vsel %vm1208, %v1283, 0
      %v1299 = vsel %vm1208, %v1284, 0
      %1301 = vmatprep.subr.bf16.mxu0 0
      %1302 = vmatpush1.bf16.msra.mxu0 0
      %1303 = vmatprep.subr.bf16.mxu0 0
      %1304 = vmatpush1.bf16.msra.mxu0 0
      %1305 = vmatprep.subr.bf16.mxu0 0
      %1306 = vmatpush1.bf16.msra.mxu0 0
      %1307 = vmatprep.subr.bf16.mxu0 0
      %1308 = vmatpush1.bf16.msra.mxu0 0
      %1309 = vmatprep.subr.bf16.mxu0 0
      %1310 = vmatpush1.bf16.msra.mxu0 %v1288
      %1311 = vmatprep.subr.bf16.mxu0 0
      %1312 = vmatpush1.bf16.msra.mxu0 %v1287
      %1313 = vmatprep.subr.bf16.mxu0 0
      %1314 = vmatpush1.bf16.msra.mxu0 %v1286
      %1315 = vmatprep.subr.bf16.mxu0 0
      %1316 = vmatpush1.bf16.msra.mxu0 %v1285
      %1317 = vmatprep.subr.bf16.mxu0 0
      %1318 = vmatpush2.bf16.msra.mxu0 0
      %1319 = vmatprep.subr.bf16.mxu0 0
      %1320 = vmatpush2.bf16.msra.mxu0 0
      %1321 = vmatprep.subr.bf16.mxu0 0
      %1322 = vmatpush2.bf16.msra.mxu0 0
      %1323 = vmatprep.subr.bf16.mxu0 0
      %1324 = vmatpush2.bf16.msra.mxu0 0
      %1325 = vmatprep.subr.bf16.mxu0 0
      %1326 = vmatpush2.bf16.msra.mxu0 0
      %1327 = vmatprep.subr.bf16.mxu0 0
      %1328 = vmatpush2.bf16.msra.mxu0 0
      %1329 = vmatprep.subr.bf16.mxu0 0
      %1330 = vmatpush2.bf16.msra.mxu0 0
      %1331 = vmatprep.subr.bf16.mxu0 0
      %1332 = vmatpush2.bf16.msra.mxu0 0
      %1333 = vmatprep.mubr.bf16.mxu0 0
      %1334 = vmatmul.mubr.bf16.gmra.mxu0 %v1290
      %v1335 = vpop.f32.mrf.mxu0
      %v1336 = vadd.f32 0.0, %v1335
      %v1337 = vpop.f32.mrf.mxu0
      %v1338 = vpop.f32.mrf.mxu0
      %v1339 = vadd.f32 0.0, %v1338
      %v1340 = vpop.f32.mrf.mxu0
      %1341 = vmatprep.mubr.bf16.mxu0 0
      %1342 = vmatmul.mubr.bf16.gmra.mxu0 %v1293
      %v1343 = vpop.f32.mrf.mxu0
      %v1344 = vadd.f32 0.0, %v1343
      %v1345 = vpop.f32.mrf.mxu0
      %v1346 = vpop.f32.mrf.mxu0
      %v1347 = vadd.f32 0.0, %v1346
      %v1348 = vpop.f32.mrf.mxu0
      %1349 = vmatprep.mubr.bf16.mxu0 0
      %1350 = vmatmul.mubr.bf16.gmra.mxu0 %v1296
      %v1351 = vpop.f32.mrf.mxu0
      %v1352 = vadd.f32 0.0, %v1351
      %v1353 = vpop.f32.mrf.mxu0
      %v1354 = vpop.f32.mrf.mxu0
      %v1355 = vadd.f32 0.0, %v1354
      %v1356 = vpop.f32.mrf.mxu0
      %1357 = vmatprep.mubr.bf16.mxu0 0
      %1358 = vmatmul.mubr.bf16.gmra.mxu0 %v1299
      %v1359 = vpop.f32.mrf.mxu0
      %v1360 = vadd.f32 0.0, %v1359
      %v1361 = vpop.f32.mrf.mxu0
      %v1362 = vpop.f32.mrf.mxu0
      %v1363 = vadd.f32 0.0, %v1362
      %v1364 = vpop.f32.mrf.mxu0
      %1365 = vdwg.mxu0
      %v1366 = vrcp.pop %v1259
      %v1367 = vrcp.pop %v1262
      %v1368 = vrcp.pop %v1265
      %v1369 = vrcp.pop %v1268
      %v1370 = vrcp.pop %v1271
      %v1371 = vrcp.pop %v1274
      %v1372 = vrcp.pop %v1277
      %v1373 = vrcp.pop %v1280
      %v1374 = vmul.f32 %v1336, %v1366
      %v1375 = vmul.f32 %v1339, %v1367
      %v1376 = vmul.f32 %v1344, %v1368
      %v1377 = vmul.f32 %v1347, %v1369
      %v1378 = vmul.f32 %v1352, %v1370
      %v1379 = vmul.f32 %v1355, %v1371
      %v1380 = vmul.f32 %v1360, %v1372
      %v1381 = vmul.f32 %v1363, %v1373
      %v1382 = vld [vmem:[#allocation2] sm:$0xff]
      %v1383 = vld [vmem:[#allocation2 + $0x8] sm:$0xff]
      %v1384 = vld [vmem:[#allocation2 + $0x10] sm:$0xff]
      %v1385 = vld [vmem:[#allocation2 + $0x18] sm:$0xff]
      %v1386 = vld [vmem:[#allocation2 + $0x20] sm:$0xff]
      %v1387 = vld [vmem:[#allocation2 + $0x28] sm:$0xff]
      %v1388 = vld [vmem:[#allocation2 + $0x30] sm:$0xff]
      %v1389 = vld [vmem:[#allocation2 + $0x38] sm:$0xff]
      %v1390 = vpack.c.bf16 %v1375, %v1374
      %v1391 = vpack.c.bf16 %v1377, %v1376
      %v1392 = vpack.c.bf16 %v1379, %v1378
      %v1393 = vpack.c.bf16 %v1381, %v1380
      %v1394 = vld [vmem:[%s7] sm:$0xf]
      %v1396 = vsel %vm1118, %v1390, 0
      %v1399 = vsel %vm1118, %v1391, 0
      %v1402 = vsel %vm1118, %v1392, 0
      %v1405 = vsel %vm1118, %v1393, 0
      %vm1407 = vcmask 1043456
      %v1409 = vsel %vm1407, %v1394, 0
      %1411 = vmatprep.subr.bf16.mxu0 0
      %1412 = vmatpush1.bf16.msra.mxu0 0
      %1413 = vmatprep.subr.bf16.mxu0 0
      %1414 = vmatpush1.bf16.msra.mxu0 0
      %1415 = vmatprep.subr.bf16.mxu0 0
      %1416 = vmatpush1.bf16.msra.mxu0 0
      %1417 = vmatprep.subr.bf16.mxu0 0
      %1418 = vmatpush1.bf16.msra.mxu0 0
      %1419 = vmatprep.subr.bf16.mxu0 0
      %1420 = vmatpush1.bf16.msra.mxu0 0
      %1421 = vmatprep.subr.bf16.mxu0 0
      %1422 = vmatpush1.bf16.msra.mxu0 0
      %1423 = vmatprep.subr.bf16.mxu0 0
      %1424 = vmatpush1.bf16.msra.mxu0 0
      %1425 = vmatprep.subr.bf16.mxu0 0
      %1426 = vmatpush1.bf16.msra.mxu0 %v1409
      %1427 = vmatprep.subr.bf16.mxu0 0
      %1428 = vmatpush2.bf16.msra.mxu0 0
      %1429 = vmatprep.subr.bf16.mxu0 0
      %1430 = vmatpush2.bf16.msra.mxu0 0
      %1431 = vmatprep.subr.bf16.mxu0 0
      %1432 = vmatpush2.bf16.msra.mxu0 0
      %1433 = vmatprep.subr.bf16.mxu0 0
      %1434 = vmatpush2.bf16.msra.mxu0 0
      %1435 = vmatprep.subr.bf16.mxu0 0
      %1436 = vmatpush2.bf16.msra.mxu0 0
      %1437 = vmatprep.subr.bf16.mxu0 0
      %1438 = vmatpush2.bf16.msra.mxu0 0
      %1439 = vmatprep.subr.bf16.mxu0 0
      %1440 = vmatpush2.bf16.msra.mxu0 0
      %1441 = vmatprep.subr.bf16.mxu0 0
      %1442 = vmatpush2.bf16.msra.mxu0 0
      %1443 = vmatprep.mubr.bf16.mxu0 0
      %1444 = vmatmul.mubr.bf16.gmra.mxu0 %v1396
      %v1445 = vpop.f32.mrf.mxu0
      %v1446 = vadd.f32 0.0, %v1445
      %v1447 = vpop.f32.mrf.mxu0
      %v1448 = vpop.f32.mrf.mxu0
      %v1449 = vadd.f32 0.0, %v1448
      %v1450 = vpop.f32.mrf.mxu0
      %1451 = vmatprep.mubr.bf16.mxu0 0
      %1452 = vmatmul.mubr.bf16.gmra.mxu0 %v1399
      %v1453 = vpop.f32.mrf.mxu0
      %v1454 = vadd.f32 0.0, %v1453
      %v1455 = vpop.f32.mrf.mxu0
      %v1456 = vpop.f32.mrf.mxu0
      %v1457 = vadd.f32 0.0, %v1456
      %v1458 = vpop.f32.mrf.mxu0
      %1459 = vmatprep.mubr.bf16.mxu0 0
      %1460 = vmatmul.mubr.bf16.gmra.mxu0 %v1402
      %v1461 = vpop.f32.mrf.mxu0
      %v1462 = vadd.f32 0.0, %v1461
      %v1463 = vpop.f32.mrf.mxu0
      %v1464 = vpop.f32.mrf.mxu0
      %v1465 = vadd.f32 0.0, %v1464
      %v1466 = vpop.f32.mrf.mxu0
      %1467 = vmatprep.mubr.bf16.mxu0 0
      %1468 = vmatmul.mubr.bf16.gmra.mxu0 %v1405
      %v1469 = vpop.f32.mrf.mxu0
      %v1470 = vadd.f32 0.0, %v1469
      %v1471 = vpop.f32.mrf.mxu0
      %v1472 = vpop.f32.mrf.mxu0
      %v1473 = vadd.f32 0.0, %v1472
      %v1474 = vpop.f32.mrf.mxu0
      %1475 = vdwg.mxu0
      %v1476 = vadd.f32 %v1382, %v1446
      %v1477 = vadd.f32 %v1383, %v1449
      %v1478 = vadd.f32 %v1384, %v1454
      %v1479 = vadd.f32 %v1385, %v1457
      %v1480 = vadd.f32 %v1386, %v1462
      %v1481 = vadd.f32 %v1387, %v1465
      %v1482 = vadd.f32 %v1388, %v1470
      %v1483 = vadd.f32 %v1389, %v1473
      %1484 = vst.msk [vmem:[#allocation2] sm:$0xff] %vm573, %v1476
      %1485 = vst.msk [vmem:[#allocation2 + $0x8] sm:$0xff] %vm573, %v1477
      %1486 = vst.msk [vmem:[#allocation2 + $0x10] sm:$0xff] %vm573, %v1478
      %1487 = vst.msk [vmem:[#allocation2 + $0x18] sm:$0xff] %vm573, %v1479
      %1488 = vst.msk [vmem:[#allocation2 + $0x20] sm:$0xff] %vm573, %v1480
      %1489 = vst.msk [vmem:[#allocation2 + $0x28] sm:$0xff] %vm573, %v1481
      %1490 = vst.msk [vmem:[#allocation2 + $0x30] sm:$0xff] %vm573, %v1482
      %1491 = vst.msk [vmem:[#allocation2 + $0x38] sm:$0xff] %vm573, %v1483
      %s1492 = scalar_lea.vmem %s4, 16
      %v1493 = vld [vmem:[%s1492] sm:$0xf]
      %v1494 = vld [vmem:[%s1492 + $0x4] sm:$0xf]
      %v1495 = vld [vmem:[%s1492 + $0x8] sm:$0xf]
      %v1496 = vld [vmem:[%s1492 + $0xc] sm:$0xf]
      %v1501 = vunpack.c.l.b16 %v1493
      %v1502 = vunpack.c.l.b16 %v1494
      %v1503 = vunpack.c.l.b16 %v1495
      %v1504 = vunpack.c.l.b16 %v1496
      %v1505 = vpack.c.b16 %v1502, %v1501
      %v1506 = vpack.c.b16 %v1504, %v1503
      %1509 = vmatprep.subr.bf16.mxu0 0
      %1510 = vmatpush1.bf16.msra.mxu0 0
      %1511 = vmatprep.subr.bf16.mxu0 0
      %1512 = vmatpush1.bf16.msra.mxu0 0
      %1513 = vmatprep.subr.bf16.mxu0 0
      %1514 = vmatpush1.bf16.msra.mxu0 0
      %1515 = vmatprep.subr.bf16.mxu0 0
      %1516 = vmatpush1.bf16.msra.mxu0 0
      %1517 = vmatprep.subr.bf16.mxu0 0
      %1518 = vmatpush1.bf16.msra.mxu0 0
      %1519 = vmatprep.subr.bf16.mxu0 0
      %1520 = vmatpush1.bf16.msra.mxu0 0
      %1521 = vmatprep.subr.bf16.mxu0 0
      %1522 = vmatpush1.bf16.msra.mxu0 %v1506
      %1523 = vmatprep.subr.bf16.mxu0 0
      %1524 = vmatpush1.bf16.msra.mxu0 %v1505
      %1525 = vmatprep.subr.bf16.mxu0 0
      %1526 = vmatpush2.bf16.msra.mxu0 0
      %1527 = vmatprep.subr.bf16.mxu0 0
      %1528 = vmatpush2.bf16.msra.mxu0 0
      %1529 = vmatprep.subr.bf16.mxu0 0
      %1530 = vmatpush2.bf16.msra.mxu0 0
      %1531 = vmatprep.subr.bf16.mxu0 0
      %1532 = vmatpush2.bf16.msra.mxu0 0
      %1533 = vmatprep.subr.bf16.mxu0 0
      %1534 = vmatpush2.bf16.msra.mxu0 0
      %1535 = vmatprep.subr.bf16.mxu0 0
      %1536 = vmatpush2.bf16.msra.mxu0 0
      %1537 = vmatprep.subr.bf16.mxu0 0
      %1538 = vmatpush2.bf16.msra.mxu0 0
      %1539 = vmatprep.subr.bf16.mxu0 0
      %1540 = vmatpush2.bf16.msra.mxu0 0
      %1541 = vmatprep.mubr.bf16.mxu0 0
      %1542 = vmatmul.mubr.bf16.gmra.mxu0 %v860
      %v1543 = vpop.f32.mrf.mxu0
      %v1544 = vadd.f32 0.0, %v1543
      %v1545 = vpop.f32.mrf.mxu0
      %v1546 = vpop.f32.mrf.mxu0
      %v1547 = vadd.f32 0.0, %v1546
      %v1548 = vpop.f32.mrf.mxu0
      %1549 = vmatprep.mubr.bf16.mxu0 0
      %1550 = vmatmul.mubr.bf16.gmra.mxu0 %v863
      %v1551 = vpop.f32.mrf.mxu0
      %v1552 = vadd.f32 0.0, %v1551
      %v1553 = vpop.f32.mrf.mxu0
      %v1554 = vpop.f32.mrf.mxu0
      %v1555 = vadd.f32 0.0, %v1554
      %v1556 = vpop.f32.mrf.mxu0
      %1557 = vmatprep.mubr.bf16.mxu0 0
      %1558 = vmatmul.mubr.bf16.gmra.mxu0 %v866
      %v1559 = vpop.f32.mrf.mxu0
      %v1560 = vadd.f32 0.0, %v1559
      %v1561 = vpop.f32.mrf.mxu0
      %v1562 = vpop.f32.mrf.mxu0
      %v1563 = vadd.f32 0.0, %v1562
      %v1564 = vpop.f32.mrf.mxu0
      %1565 = vmatprep.mubr.bf16.mxu0 0
      %1566 = vmatmul.mubr.bf16.gmra.mxu0 %v869
      %v1567 = vpop.f32.mrf.mxu0
      %v1568 = vadd.f32 0.0, %v1567
      %v1569 = vpop.f32.mrf.mxu0
      %v1570 = vpop.f32.mrf.mxu0
      %v1571 = vadd.f32 0.0, %v1570
      %v1572 = vpop.f32.mrf.mxu0
      %1573 = vdwg.mxu0
      %s1574 = scalar_lea.vmem %s5, 16
      %v1575 = vld [vmem:[%s1574] sm:$0xf]
      %v1576 = vld [vmem:[%s1574 + $0x4] sm:$0xf]
      %v1577 = vld [vmem:[%s1574 + $0x8] sm:$0xf]
      %v1578 = vld [vmem:[%s1574 + $0xc] sm:$0xf]
      %v1583 = vunpack.c.l.b16 %v1575
      %v1584 = vunpack.c.l.b16 %v1576
      %v1585 = vunpack.c.l.b16 %v1577
      %v1586 = vunpack.c.l.b16 %v1578
      %v1587 = vpack.c.b16 %v1584, %v1583
      %v1588 = vpack.c.b16 %v1586, %v1585
      %1591 = vmatprep.subr.bf16.mxu0 0
      %1592 = vmatpush1.bf16.msra.mxu0 0
      %1593 = vmatprep.subr.bf16.mxu0 0
      %1594 = vmatpush1.bf16.msra.mxu0 0
      %1595 = vmatprep.subr.bf16.mxu0 0
      %1596 = vmatpush1.bf16.msra.mxu0 0
      %1597 = vmatprep.subr.bf16.mxu0 0
      %1598 = vmatpush1.bf16.msra.mxu0 0
      %1599 = vmatprep.subr.bf16.mxu0 0
      %1600 = vmatpush1.bf16.msra.mxu0 0
      %1601 = vmatprep.subr.bf16.mxu0 0
      %1602 = vmatpush1.bf16.msra.mxu0 0
      %1603 = vmatprep.subr.bf16.mxu0 0
      %1604 = vmatpush1.bf16.msra.mxu0 %v1588
      %1605 = vmatprep.subr.bf16.mxu0 0
      %1606 = vmatpush1.bf16.msra.mxu0 %v1587
      %1607 = vmatprep.subr.bf16.mxu0 0
      %1608 = vmatpush2.bf16.msra.mxu0 0
      %1609 = vmatprep.subr.bf16.mxu0 0
      %1610 = vmatpush2.bf16.msra.mxu0 0
      %1611 = vmatprep.subr.bf16.mxu0 0
      %1612 = vmatpush2.bf16.msra.mxu0 0
      %1613 = vmatprep.subr.bf16.mxu0 0
      %1614 = vmatpush2.bf16.msra.mxu0 0
      %1615 = vmatprep.subr.bf16.mxu0 0
      %1616 = vmatpush2.bf16.msra.mxu0 0
      %1617 = vmatprep.subr.bf16.mxu0 0
      %1618 = vmatpush2.bf16.msra.mxu0 0
      %1619 = vmatprep.subr.bf16.mxu0 0
      %1620 = vmatpush2.bf16.msra.mxu0 0
      %1621 = vmatprep.subr.bf16.mxu0 0
      %1622 = vmatpush2.bf16.msra.mxu0 0
      %1623 = vmatprep.mubr.bf16.mxu0 0
      %1624 = vmatmul.mubr.bf16.gmra.mxu0 %v953
      %v1625 = vpop.f32.mrf.mxu0
      %v1626 = vadd.f32 0.0, %v1625
      %v1627 = vpop.f32.mrf.mxu0
      %v1628 = vpop.f32.mrf.mxu0
      %v1629 = vadd.f32 0.0, %v1628
      %v1630 = vpop.f32.mrf.mxu0
      %1631 = vmatprep.mubr.bf16.mxu0 0
      %1632 = vmatmul.mubr.bf16.gmra.mxu0 %v956
      %v1633 = vpop.f32.mrf.mxu0
      %v1634 = vadd.f32 0.0, %v1633
      %v1635 = vpop.f32.mrf.mxu0
      %v1636 = vpop.f32.mrf.mxu0
      %v1637 = vadd.f32 0.0, %v1636
      %v1638 = vpop.f32.mrf.mxu0
      %1639 = vmatprep.mubr.bf16.mxu0 0
      %1640 = vmatmul.mubr.bf16.gmra.mxu0 %v959
      %v1641 = vpop.f32.mrf.mxu0
      %v1642 = vadd.f32 0.0, %v1641
      %v1643 = vpop.f32.mrf.mxu0
      %v1644 = vpop.f32.mrf.mxu0
      %v1645 = vadd.f32 0.0, %v1644
      %v1646 = vpop.f32.mrf.mxu0
      %1647 = vmatprep.mubr.bf16.mxu0 0
      %1648 = vmatmul.mubr.bf16.gmra.mxu0 %v962
      %v1649 = vpop.f32.mrf.mxu0
      %v1650 = vadd.f32 0.0, %v1649
      %v1651 = vpop.f32.mrf.mxu0
      %v1652 = vpop.f32.mrf.mxu0
      %v1653 = vadd.f32 0.0, %v1652
      %v1654 = vpop.f32.mrf.mxu0
      %1655 = vdwg.mxu0
      %s1656 = scalar_lea.vmem %s6, 16
      %v1657 = vld [vmem:[%s1656] sm:$0xf]
      %v1658 = vld [vmem:[%s1656 + $0x4] sm:$0xf]
      %v1659 = vld [vmem:[%s1656 + $0x8] sm:$0xf]
      %v1660 = vld [vmem:[%s1656 + $0xc] sm:$0xf]
      %v1665 = vunpack.c.l.b16 %v1657
      %v1666 = vunpack.c.l.b16 %v1658
      %v1667 = vunpack.c.l.b16 %v1659
      %v1668 = vunpack.c.l.b16 %v1660
      %v1669 = vpack.c.b16 %v1666, %v1665
      %v1670 = vpack.c.b16 %v1668, %v1667
      %1673 = vmatprep.subr.bf16.mxu0 0
      %1674 = vmatpush1.bf16.msra.mxu0 0
      %1675 = vmatprep.subr.bf16.mxu0 0
      %1676 = vmatpush1.bf16.msra.mxu0 0
      %1677 = vmatprep.subr.bf16.mxu0 0
      %1678 = vmatpush1.bf16.msra.mxu0 0
      %1679 = vmatprep.subr.bf16.mxu0 0
      %1680 = vmatpush1.bf16.msra.mxu0 0
      %1681 = vmatprep.subr.bf16.mxu0 0
      %1682 = vmatpush1.bf16.msra.mxu0 0
      %1683 = vmatprep.subr.bf16.mxu0 0
      %1684 = vmatpush1.bf16.msra.mxu0 0
      %1685 = vmatprep.subr.bf16.mxu0 0
      %1686 = vmatpush1.bf16.msra.mxu0 %v1670
      %1687 = vmatprep.subr.bf16.mxu0 0
      %1688 = vmatpush1.bf16.msra.mxu0 %v1669
      %1689 = vmatprep.subr.bf16.mxu0 0
      %1690 = vmatpush2.bf16.msra.mxu0 0
      %1691 = vmatprep.subr.bf16.mxu0 0
      %1692 = vmatpush2.bf16.msra.mxu0 0
      %1693 = vmatprep.subr.bf16.mxu0 0
      %1694 = vmatpush2.bf16.msra.mxu0 0
      %1695 = vmatprep.subr.bf16.mxu0 0
      %1696 = vmatpush2.bf16.msra.mxu0 0
      %1697 = vmatprep.subr.bf16.mxu0 0
      %1698 = vmatpush2.bf16.msra.mxu0 0
      %1699 = vmatprep.subr.bf16.mxu0 0
      %1700 = vmatpush2.bf16.msra.mxu0 0
      %1701 = vmatprep.subr.bf16.mxu0 0
      %1702 = vmatpush2.bf16.msra.mxu0 0
      %1703 = vmatprep.subr.bf16.mxu0 0
      %1704 = vmatpush2.bf16.msra.mxu0 0
      %1705 = vmatprep.mubr.bf16.mxu0 0
      %1706 = vmatmul.mubr.bf16.gmra.mxu0 %v953
      %v1707 = vpop.f32.mrf.mxu0
      %v1708 = vadd.f32 0.0, %v1707
      %v1709 = vpop.f32.mrf.mxu0
      %v1710 = vpop.f32.mrf.mxu0
      %v1711 = vadd.f32 0.0, %v1710
      %v1712 = vpop.f32.mrf.mxu0
      %1713 = vmatprep.mubr.bf16.mxu0 0
      %1714 = vmatmul.mubr.bf16.gmra.mxu0 %v956
      %v1715 = vpop.f32.mrf.mxu0
      %v1716 = vadd.f32 0.0, %v1715
      %v1717 = vpop.f32.mrf.mxu0
      %v1718 = vpop.f32.mrf.mxu0
      %v1719 = vadd.f32 0.0, %v1718
      %v1720 = vpop.f32.mrf.mxu0
      %1721 = vmatprep.mubr.bf16.mxu0 0
      %1722 = vmatmul.mubr.bf16.gmra.mxu0 %v959
      %v1723 = vpop.f32.mrf.mxu0
      %v1724 = vadd.f32 0.0, %v1723
      %v1725 = vpop.f32.mrf.mxu0
      %v1726 = vpop.f32.mrf.mxu0
      %v1727 = vadd.f32 0.0, %v1726
      %v1728 = vpop.f32.mrf.mxu0
      %1729 = vmatprep.mubr.bf16.mxu0 0
      %1730 = vmatmul.mubr.bf16.gmra.mxu0 %v962
      %v1731 = vpop.f32.mrf.mxu0
      %v1732 = vadd.f32 0.0, %v1731
      %v1733 = vpop.f32.mrf.mxu0
      %v1734 = vpop.f32.mrf.mxu0
      %v1735 = vadd.f32 0.0, %v1734
      %v1736 = vpop.f32.mrf.mxu0
      %1737 = vdwg.mxu0
      %v1738 = vpack.c.bf16 %v1547, %v1544
      %v1739 = vpack.c.bf16 %v1555, %v1552
      %v1740 = vpack.c.bf16 %v1563, %v1560
      %v1741 = vpack.c.bf16 %v1571, %v1568
      %v1742 = vpack.c.bf16 %v1629, %v1626
      %v1743 = vpack.c.bf16 %v1637, %v1634
      %v1744 = vpack.c.bf16 %v1645, %v1642
      %v1745 = vpack.c.bf16 %v1653, %v1650
      %v1747 = vsel %vm1118, %v1738, 0
      %v1750 = vsel %vm1118, %v1739, 0
      %v1753 = vsel %vm1118, %v1740, 0
      %v1756 = vsel %vm1118, %v1741, 0
      %v1759 = vsel %vm1118, %v1742, 0
      %v1762 = vsel %vm1118, %v1743, 0
      %v1765 = vsel %vm1118, %v1744, 0
      %v1768 = vsel %vm1118, %v1745, 0
      %1770 = vmatprep.subr.bf16.mxu0 0
      %1771 = vmatpush1.bf16.xpose.msra.mxu0 0
      %1772 = vmatprep.subr.bf16.mxu0 0
      %1773 = vmatpush1.bf16.xpose.msra.mxu0 0
      %1774 = vmatprep.subr.bf16.mxu0 0
      %1775 = vmatpush1.bf16.xpose.msra.mxu0 0
      %1776 = vmatprep.subr.bf16.mxu0 0
      %1777 = vmatpush1.bf16.xpose.msra.mxu0 0
      %1778 = vmatprep.subr.bf16.mxu0 0
      %1779 = vmatpush1.bf16.xpose.msra.mxu0 %v1768
      %1780 = vmatprep.subr.bf16.mxu0 0
      %1781 = vmatpush1.bf16.xpose.msra.mxu0 %v1765
      %1782 = vmatprep.subr.bf16.mxu0 0
      %1783 = vmatpush1.bf16.xpose.msra.mxu0 %v1762
      %1784 = vmatprep.subr.bf16.mxu0 0
      %1785 = vmatpush1.bf16.xpose.msra.mxu0 %v1759
      %1786 = vmatprep.subr.bf16.mxu0 0
      %1787 = vmatpush2.bf16.xpose.msra.mxu0 0
      %1788 = vmatprep.subr.bf16.mxu0 0
      %1789 = vmatpush2.bf16.xpose.msra.mxu0 0
      %1790 = vmatprep.subr.bf16.mxu0 0
      %1791 = vmatpush2.bf16.xpose.msra.mxu0 0
      %1792 = vmatprep.subr.bf16.mxu0 0
      %1793 = vmatpush2.bf16.xpose.msra.mxu0 0
      %1794 = vmatprep.subr.bf16.mxu0 0
      %1795 = vmatpush2.bf16.xpose.msra.mxu0 0
      %1796 = vmatprep.subr.bf16.mxu0 0
      %1797 = vmatpush2.bf16.xpose.msra.mxu0 0
      %1798 = vmatprep.subr.bf16.mxu0 0
      %1799 = vmatpush2.bf16.xpose.msra.mxu0 0
      %1800 = vmatprep.subr.bf16.mxu0 0
      %1801 = vmatpush2.bf16.xpose.msra.mxu0 0
      %1802 = vmatprep.mubr.bf16.mxu0 0
      %1803 = vmatmul.mubr.bf16.gmra.mxu0 %v1747
      %v1804 = vpop.f32.mrf.mxu0
      %v1805 = vadd.f32 0.0, %v1804
      %v1806 = vpop.f32.mrf.mxu0
      %v1807 = vpop.f32.mrf.mxu0
      %v1808 = vadd.f32 0.0, %v1807
      %v1809 = vpop.f32.mrf.mxu0
      %1810 = vmatprep.mubr.bf16.mxu0 0
      %1811 = vmatmul.mubr.bf16.gmra.mxu0 %v1750
      %v1812 = vpop.f32.mrf.mxu0
      %v1813 = vadd.f32 0.0, %v1812
      %v1814 = vpop.f32.mrf.mxu0
      %v1815 = vpop.f32.mrf.mxu0
      %v1816 = vadd.f32 0.0, %v1815
      %v1817 = vpop.f32.mrf.mxu0
      %1818 = vmatprep.mubr.bf16.mxu0 0
      %1819 = vmatmul.mubr.bf16.gmra.mxu0 %v1753
      %v1820 = vpop.f32.mrf.mxu0
      %v1821 = vadd.f32 0.0, %v1820
      %v1822 = vpop.f32.mrf.mxu0
      %v1823 = vpop.f32.mrf.mxu0
      %v1824 = vadd.f32 0.0, %v1823
      %v1825 = vpop.f32.mrf.mxu0
      %1826 = vmatprep.mubr.bf16.mxu0 0
      %1827 = vmatmul.mubr.bf16.gmra.mxu0 %v1756
      %v1828 = vpop.f32.mrf.mxu0
      %v1829 = vadd.f32 0.0, %v1828
      %v1830 = vpop.f32.mrf.mxu0
      %v1831 = vpop.f32.mrf.mxu0
      %v1832 = vadd.f32 0.0, %v1831
      %v1833 = vpop.f32.mrf.mxu0
      %1834 = vdwg.mxu0
      %v1835 = vsel %vm1208, %v1805, -inf
      %1836 = vmax.xlane.f32.xlu0 %v1835
      %v1837 = vpop.xlane.xlu0 %1836
      %v1838 = vsel %vm1208, %v1808, -inf
      %1839 = vmax.xlane.f32.xlu0 %v1838
      %v1840 = vpop.xlane.xlu0 %1839
      %v1841 = vsel %vm1208, %v1813, -inf
      %1842 = vmax.xlane.f32.xlu0 %v1841
      %v1843 = vpop.xlane.xlu0 %1842
      %v1844 = vsel %vm1208, %v1816, -inf
      %1845 = vmax.xlane.f32.xlu0 %v1844
      %v1846 = vpop.xlane.xlu0 %1845
      %v1847 = vsel %vm1208, %v1821, -inf
      %1848 = vmax.xlane.f32.xlu0 %v1847
      %v1849 = vpop.xlane.xlu0 %1848
      %v1850 = vsel %vm1208, %v1824, -inf
      %1851 = vmax.xlane.f32.xlu0 %v1850
      %v1852 = vpop.xlane.xlu0 %1851
      %v1853 = vsel %vm1208, %v1829, -inf
      %1854 = vmax.xlane.f32.xlu0 %v1853
      %v1855 = vpop.xlane.xlu0 %1854
      %v1856 = vsel %vm1208, %v1832, -inf
      %1857 = vmax.xlane.f32.xlu0 %v1856
      %v1858 = vpop.xlane.xlu0 %1857
      %v1859 = vsub.f32 %v1805, %v1837
      %v1860 = vsub.f32 %v1808, %v1840
      %v1861 = vsub.f32 %v1813, %v1843
      %v1862 = vsub.f32 %v1816, %v1846
      %v1863 = vsub.f32 %v1821, %v1849
      %v1864 = vsub.f32 %v1824, %v1852
      %v1865 = vsub.f32 %v1829, %v1855
      %v1866 = vsub.f32 %v1832, %v1858
      %v1867 = vmul.f32 %v1859, 1.442695
      %v1868 = vpow.pop %v1867
      %v1869 = vmul.f32 %v1860, 1.442695
      %v1870 = vpow.pop %v1869
      %v1871 = vmul.f32 %v1861, 1.442695
      %v1872 = vpow.pop %v1871
      %v1873 = vmul.f32 %v1862, 1.442695
      %v1874 = vpow.pop %v1873
      %v1875 = vmul.f32 %v1863, 1.442695
      %v1876 = vpow.pop %v1875
      %v1877 = vmul.f32 %v1864, 1.442695
      %v1878 = vpow.pop %v1877
      %v1879 = vmul.f32 %v1865, 1.442695
      %v1880 = vpow.pop %v1879
      %v1881 = vmul.f32 %v1866, 1.442695
      %v1882 = vpow.pop %v1881
      %v1883 = vsel %vm1208, %v1868, 0.0
      %1884 = vadd.xlane.f32.xlu0 %v1883
      %v1885 = vpop.xlane.xlu0 %1884
      %v1886 = vsel %vm1208, %v1870, 0.0
      %1887 = vadd.xlane.f32.xlu0 %v1886
      %v1888 = vpop.xlane.xlu0 %1887
      %v1889 = vsel %vm1208, %v1872, 0.0
      %1890 = vadd.xlane.f32.xlu0 %v1889
      %v1891 = vpop.xlane.xlu0 %1890
      %v1892 = vsel %vm1208, %v1874, 0.0
      %1893 = vadd.xlane.f32.xlu0 %v1892
      %v1894 = vpop.xlane.xlu0 %1893
      %v1895 = vsel %vm1208, %v1876, 0.0
      %1896 = vadd.xlane.f32.xlu0 %v1895
      %v1897 = vpop.xlane.xlu0 %1896
      %v1898 = vsel %vm1208, %v1878, 0.0
      %1899 = vadd.xlane.f32.xlu0 %v1898
      %v1900 = vpop.xlane.xlu0 %1899
      %v1901 = vsel %vm1208, %v1880, 0.0
      %1902 = vadd.xlane.f32.xlu0 %v1901
      %v1903 = vpop.xlane.xlu0 %1902
      %v1904 = vsel %vm1208, %v1882, 0.0
      %1905 = vadd.xlane.f32.xlu0 %v1904
      %v1906 = vpop.xlane.xlu0 %1905
      %v1907 = vpack.c.bf16 %v1870, %v1868
      %v1908 = vpack.c.bf16 %v1874, %v1872
      %v1909 = vpack.c.bf16 %v1878, %v1876
      %v1910 = vpack.c.bf16 %v1882, %v1880
      %v1911 = vpack.c.bf16 %v1711, %v1708
      %v1912 = vpack.c.bf16 %v1719, %v1716
      %v1913 = vpack.c.bf16 %v1727, %v1724
      %v1914 = vpack.c.bf16 %v1735, %v1732
      %v1916 = vsel %vm1208, %v1907, 0
      %v1919 = vsel %vm1208, %v1908, 0
      %v1922 = vsel %vm1208, %v1909, 0
      %v1925 = vsel %vm1208, %v1910, 0
      %1927 = vmatprep.subr.bf16.mxu0 0
      %1928 = vmatpush1.bf16.msra.mxu0 0
      %1929 = vmatprep.subr.bf16.mxu0 0
      %1930 = vmatpush1.bf16.msra.mxu0 0
      %1931 = vmatprep.subr.bf16.mxu0 0
      %1932 = vmatpush1.bf16.msra.mxu0 0
      %1933 = vmatprep.subr.bf16.mxu0 0
      %1934 = vmatpush1.bf16.msra.mxu0 0
      %1935 = vmatprep.subr.bf16.mxu0 0
      %1936 = vmatpush1.bf16.msra.mxu0 %v1914
      %1937 = vmatprep.subr.bf16.mxu0 0
      %1938 = vmatpush1.bf16.msra.mxu0 %v1913
      %1939 = vmatprep.subr.bf16.mxu0 0
      %1940 = vmatpush1.bf16.msra.mxu0 %v1912
      %1941 = vmatprep.subr.bf16.mxu0 0
      %1942 = vmatpush1.bf16.msra.mxu0 %v1911
      %1943 = vmatprep.subr.bf16.mxu0 0
      %1944 = vmatpush2.bf16.msra.mxu0 0
      %1945 = vmatprep.subr.bf16.mxu0 0
      %1946 = vmatpush2.bf16.msra.mxu0 0
      %1947 = vmatprep.subr.bf16.mxu0 0
      %1948 = vmatpush2.bf16.msra.mxu0 0
      %1949 = vmatprep.subr.bf16.mxu0 0
      %1950 = vmatpush2.bf16.msra.mxu0 0
      %1951 = vmatprep.subr.bf16.mxu0 0
      %1952 = vmatpush2.bf16.msra.mxu0 0
      %1953 = vmatprep.subr.bf16.mxu0 0
      %1954 = vmatpush2.bf16.msra.mxu0 0
      %1955 = vmatprep.subr.bf16.mxu0 0
      %1956 = vmatpush2.bf16.msra.mxu0 0
      %1957 = vmatprep.subr.bf16.mxu0 0
      %1958 = vmatpush2.bf16.msra.mxu0 0
      %1959 = vmatprep.mubr.bf16.mxu0 0
      %1960 = vmatmul.mubr.bf16.gmra.mxu0 %v1916
      %v1961 = vpop.f32.mrf.mxu0
      %v1962 = vadd.f32 0.0, %v1961
      %v1963 = vpop.f32.mrf.mxu0
      %v1964 = vpop.f32.mrf.mxu0
      %v1965 = vadd.f32 0.0, %v1964
      %v1966 = vpop.f32.mrf.mxu0
      %1967 = vmatprep.mubr.bf16.mxu0 0
      %1968 = vmatmul.mubr.bf16.gmra.mxu0 %v1919
      %v1969 = vpop.f32.mrf.mxu0
      %v1970 = vadd.f32 0.0, %v1969
      %v1971 = vpop.f32.mrf.mxu0
      %v1972 = vpop.f32.mrf.mxu0
      %v1973 = vadd.f32 0.0, %v1972
      %v1974 = vpop.f32.mrf.mxu0
      %1975 = vmatprep.mubr.bf16.mxu0 0
      %1976 = vmatmul.mubr.bf16.gmra.mxu0 %v1922
      %v1977 = vpop.f32.mrf.mxu0
      %v1978 = vadd.f32 0.0, %v1977
      %v1979 = vpop.f32.mrf.mxu0
      %v1980 = vpop.f32.mrf.mxu0
      %v1981 = vadd.f32 0.0, %v1980
      %v1982 = vpop.f32.mrf.mxu0
      %1983 = vmatprep.mubr.bf16.mxu0 0
      %1984 = vmatmul.mubr.bf16.gmra.mxu0 %v1925
      %v1985 = vpop.f32.mrf.mxu0
      %v1986 = vadd.f32 0.0, %v1985
      %v1987 = vpop.f32.mrf.mxu0
      %v1988 = vpop.f32.mrf.mxu0
      %v1989 = vadd.f32 0.0, %v1988
      %v1990 = vpop.f32.mrf.mxu0
      %1991 = vdwg.mxu0
      %v1992 = vrcp.pop %v1885
      %v1993 = vrcp.pop %v1888
      %v1994 = vrcp.pop %v1891
      %v1995 = vrcp.pop %v1894
      %v1996 = vrcp.pop %v1897
      %v1997 = vrcp.pop %v1900
      %v1998 = vrcp.pop %v1903
      %v1999 = vrcp.pop %v1906
      %v2000 = vmul.f32 %v1962, %v1992
      %v2001 = vmul.f32 %v1965, %v1993
      %v2002 = vmul.f32 %v1970, %v1994
      %v2003 = vmul.f32 %v1973, %v1995
      %v2004 = vmul.f32 %v1978, %v1996
      %v2005 = vmul.f32 %v1981, %v1997
      %v2006 = vmul.f32 %v1986, %v1998
      %v2007 = vmul.f32 %v1989, %v1999
      %v2008 = vld [vmem:[#allocation2] sm:$0xff]
      %v2009 = vld [vmem:[#allocation2 + $0x8] sm:$0xff]
      %v2010 = vld [vmem:[#allocation2 + $0x10] sm:$0xff]
      %v2011 = vld [vmem:[#allocation2 + $0x18] sm:$0xff]
      %v2012 = vld [vmem:[#allocation2 + $0x20] sm:$0xff]
      %v2013 = vld [vmem:[#allocation2 + $0x28] sm:$0xff]
      %v2014 = vld [vmem:[#allocation2 + $0x30] sm:$0xff]
      %v2015 = vld [vmem:[#allocation2 + $0x38] sm:$0xff]
      %v2016 = vpack.c.bf16 %v2001, %v2000
      %v2017 = vpack.c.bf16 %v2003, %v2002
      %v2018 = vpack.c.bf16 %v2005, %v2004
      %v2019 = vpack.c.bf16 %v2007, %v2006
      %s2020 = scalar_lea.vmem %s7, 4
      %v2021 = vld [vmem:[%s2020] sm:$0xf]
      %v2023 = vsel %vm1118, %v2016, 0
      %v2026 = vsel %vm1118, %v2017, 0
      %v2029 = vsel %vm1118, %v2018, 0
      %v2032 = vsel %vm1118, %v2019, 0
      %v2035 = vsel %vm1407, %v2021, 0
      %2037 = vmatprep.subr.bf16.mxu0 0
      %2038 = vmatpush1.bf16.msra.mxu0 0
      %2039 = vmatprep.subr.bf16.mxu0 0
      %2040 = vmatpush1.bf16.msra.mxu0 0
      %2041 = vmatprep.subr.bf16.mxu0 0
      %2042 = vmatpush1.bf16.msra.mxu0 0
      %2043 = vmatprep.subr.bf16.mxu0 0
      %2044 = vmatpush1.bf16.msra.mxu0 0
      %2045 = vmatprep.subr.bf16.mxu0 0
      %2046 = vmatpush1.bf16.msra.mxu0 0
      %2047 = vmatprep.subr.bf16.mxu0 0
      %2048 = vmatpush1.bf16.msra.mxu0 0
      %2049 = vmatprep.subr.bf16.mxu0 0
      %2050 = vmatpush1.bf16.msra.mxu0 0
      %2051 = vmatprep.subr.bf16.mxu0 0
      %2052 = vmatpush1.bf16.msra.mxu0 %v2035
      %2053 = vmatprep.subr.bf16.mxu0 0
      %2054 = vmatpush2.bf16.msra.mxu0 0
      %2055 = vmatprep.subr.bf16.mxu0 0
      %2056 = vmatpush2.bf16.msra.mxu0 0
      %2057 = vmatprep.subr.bf16.mxu0 0
      %2058 = vmatpush2.bf16.msra.mxu0 0
      %2059 = vmatprep.subr.bf16.mxu0 0
      %2060 = vmatpush2.bf16.msra.mxu0 0
      %2061 = vmatprep.subr.bf16.mxu0 0
      %2062 = vmatpush2.bf16.msra.mxu0 0
      %2063 = vmatprep.subr.bf16.mxu0 0
      %2064 = vmatpush2.bf16.msra.mxu0 0
      %2065 = vmatprep.subr.bf16.mxu0 0
      %2066 = vmatpush2.bf16.msra.mxu0 0
      %2067 = vmatprep.subr.bf16.mxu0 0
      %2068 = vmatpush2.bf16.msra.mxu0 0
      %2069 = vmatprep.mubr.bf16.mxu0 0
      %2070 = vmatmul.mubr.bf16.gmra.mxu0 %v2023
      %v2071 = vpop.f32.mrf.mxu0
      %v2072 = vadd.f32 0.0, %v2071
      %v2073 = vpop.f32.mrf.mxu0
      %v2074 = vpop.f32.mrf.mxu0
      %v2075 = vadd.f32 0.0, %v2074
      %v2076 = vpop.f32.mrf.mxu0
      %2077 = vmatprep.mubr.bf16.mxu0 0
      %2078 = vmatmul.mubr.bf16.gmra.mxu0 %v2026
      %v2079 = vpop.f32.mrf.mxu0
      %v2080 = vadd.f32 0.0, %v2079
      %v2081 = vpop.f32.mrf.mxu0
      %v2082 = vpop.f32.mrf.mxu0
      %v2083 = vadd.f32 0.0, %v2082
      %v2084 = vpop.f32.mrf.mxu0
      %2085 = vmatprep.mubr.bf16.mxu0 0
      %2086 = vmatmul.mubr.bf16.gmra.mxu0 %v2029
      %v2087 = vpop.f32.mrf.mxu0
      %v2088 = vadd.f32 0.0, %v2087
      %v2089 = vpop.f32.mrf.mxu0
      %v2090 = vpop.f32.mrf.mxu0
      %v2091 = vadd.f32 0.0, %v2090
      %v2092 = vpop.f32.mrf.mxu0
      %2093 = vmatprep.mubr.bf16.mxu0 0
      %2094 = vmatmul.mubr.bf16.gmra.mxu0 %v2032
      %v2095 = vpop.f32.mrf.mxu0
      %v2096 = vadd.f32 0.0, %v2095
      %v2097 = vpop.f32.mrf.mxu0
      %v2098 = vpop.f32.mrf.mxu0
      %v2099 = vadd.f32 0.0, %v2098
      %v2100 = vpop.f32.mrf.mxu0
      %2101 = vdwg.mxu0
      %v2102 = vadd.f32 %v2008, %v2072
      %v2103 = vadd.f32 %v2009, %v2075
      %v2104 = vadd.f32 %v2010, %v2080
      %v2105 = vadd.f32 %v2011, %v2083
      %v2106 = vadd.f32 %v2012, %v2088
      %v2107 = vadd.f32 %v2013, %v2091
      %v2108 = vadd.f32 %v2014, %v2096
      %v2109 = vadd.f32 %v2015, %v2099
      %2110 = vst.msk [vmem:[#allocation2] sm:$0xff] %vm573, %v2102
      %2111 = vst.msk [vmem:[#allocation2 + $0x8] sm:$0xff] %vm573, %v2103
      %2112 = vst.msk [vmem:[#allocation2 + $0x10] sm:$0xff] %vm573, %v2104
      %2113 = vst.msk [vmem:[#allocation2 + $0x18] sm:$0xff] %vm573, %v2105
      %2114 = vst.msk [vmem:[#allocation2 + $0x20] sm:$0xff] %vm573, %v2106
      %2115 = vst.msk [vmem:[#allocation2 + $0x28] sm:$0xff] %vm573, %v2107
      %2116 = vst.msk [vmem:[#allocation2 + $0x30] sm:$0xff] %vm573, %v2108
      %2117 = vst.msk [vmem:[#allocation2 + $0x38] sm:$0xff] %vm573, %v2109
      %s2118 = scalar_lea.vmem %s4, 32
      %v2119 = vld [vmem:[%s2118] sm:$0xf]
      %v2120 = vld [vmem:[%s2118 + $0x4] sm:$0xf]
      %v2121 = vld [vmem:[%s2118 + $0x8] sm:$0xf]
      %v2122 = vld [vmem:[%s2118 + $0xc] sm:$0xf]
      %v2127 = vunpack.c.l.b16 %v2119
      %v2128 = vunpack.c.l.b16 %v2120
      %v2129 = vunpack.c.l.b16 %v2121
      %v2130 = vunpack.c.l.b16 %v2122
      %v2131 = vpack.c.b16 %v2128, %v2127
      %v2132 = vpack.c.b16 %v2130, %v2129
      %2135 = vmatprep.subr.bf16.mxu0 0
      %2136 = vmatpush1.bf16.msra.mxu0 0
      %2137 = vmatprep.subr.bf16.mxu0 0
      %2138 = vmatpush1.bf16.msra.mxu0 0
      %2139 = vmatprep.subr.bf16.mxu0 0
      %2140 = vmatpush1.bf16.msra.mxu0 0
      %2141 = vmatprep.subr.bf16.mxu0 0
      %2142 = vmatpush1.bf16.msra.mxu0 0
      %2143 = vmatprep.subr.bf16.mxu0 0
      %2144 = vmatpush1.bf16.msra.mxu0 0
      %2145 = vmatprep.subr.bf16.mxu0 0
      %2146 = vmatpush1.bf16.msra.mxu0 0
      %2147 = vmatprep.subr.bf16.mxu0 0
      %2148 = vmatpush1.bf16.msra.mxu0 %v2132
      %2149 = vmatprep.subr.bf16.mxu0 0
      %2150 = vmatpush1.bf16.msra.mxu0 %v2131
      %2151 = vmatprep.subr.bf16.mxu0 0
      %2152 = vmatpush2.bf16.msra.mxu0 0
      %2153 = vmatprep.subr.bf16.mxu0 0
      %2154 = vmatpush2.bf16.msra.mxu0 0
      %2155 = vmatprep.subr.bf16.mxu0 0
      %2156 = vmatpush2.bf16.msra.mxu0 0
      %2157 = vmatprep.subr.bf16.mxu0 0
      %2158 = vmatpush2.bf16.msra.mxu0 0
      %2159 = vmatprep.subr.bf16.mxu0 0
      %2160 = vmatpush2.bf16.msra.mxu0 0
      %2161 = vmatprep.subr.bf16.mxu0 0
      %2162 = vmatpush2.bf16.msra.mxu0 0
      %2163 = vmatprep.subr.bf16.mxu0 0
      %2164 = vmatpush2.bf16.msra.mxu0 0
      %2165 = vmatprep.subr.bf16.mxu0 0
      %2166 = vmatpush2.bf16.msra.mxu0 0
      %2167 = vmatprep.mubr.bf16.mxu0 0
      %2168 = vmatmul.mubr.bf16.gmra.mxu0 %v860
      %v2169 = vpop.f32.mrf.mxu0
      %v2170 = vadd.f32 0.0, %v2169
      %v2171 = vpop.f32.mrf.mxu0
      %v2172 = vpop.f32.mrf.mxu0
      %v2173 = vadd.f32 0.0, %v2172
      %v2174 = vpop.f32.mrf.mxu0
      %2175 = vmatprep.mubr.bf16.mxu0 0
      %2176 = vmatmul.mubr.bf16.gmra.mxu0 %v863
      %v2177 = vpop.f32.mrf.mxu0
      %v2178 = vadd.f32 0.0, %v2177
      %v2179 = vpop.f32.mrf.mxu0
      %v2180 = vpop.f32.mrf.mxu0
      %v2181 = vadd.f32 0.0, %v2180
      %v2182 = vpop.f32.mrf.mxu0
      %2183 = vmatprep.mubr.bf16.mxu0 0
      %2184 = vmatmul.mubr.bf16.gmra.mxu0 %v866
      %v2185 = vpop.f32.mrf.mxu0
      %v2186 = vadd.f32 0.0, %v2185
      %v2187 = vpop.f32.mrf.mxu0
      %v2188 = vpop.f32.mrf.mxu0
      %v2189 = vadd.f32 0.0, %v2188
      %v2190 = vpop.f32.mrf.mxu0
      %2191 = vmatprep.mubr.bf16.mxu0 0
      %2192 = vmatmul.mubr.bf16.gmra.mxu0 %v869
      %v2193 = vpop.f32.mrf.mxu0
      %v2194 = vadd.f32 0.0, %v2193
      %v2195 = vpop.f32.mrf.mxu0
      %v2196 = vpop.f32.mrf.mxu0
      %v2197 = vadd.f32 0.0, %v2196
      %v2198 = vpop.f32.mrf.mxu0
      %2199 = vdwg.mxu0
      %s2200 = scalar_lea.vmem %s5, 32
      %v2201 = vld [vmem:[%s2200] sm:$0xf]
      %v2202 = vld [vmem:[%s2200 + $0x4] sm:$0xf]
      %v2203 = vld [vmem:[%s2200 + $0x8] sm:$0xf]
      %v2204 = vld [vmem:[%s2200 + $0xc] sm:$0xf]
      %v2209 = vunpack.c.l.b16 %v2201
      %v2210 = vunpack.c.l.b16 %v2202
      %v2211 = vunpack.c.l.b16 %v2203
      %v2212 = vunpack.c.l.b16 %v2204
      %v2213 = vpack.c.b16 %v2210, %v2209
      %v2214 = vpack.c.b16 %v2212, %v2211
      %2217 = vmatprep.subr.bf16.mxu0 0
      %2218 = vmatpush1.bf16.msra.mxu0 0
      %2219 = vmatprep.subr.bf16.mxu0 0
      %2220 = vmatpush1.bf16.msra.mxu0 0
      %2221 = vmatprep.subr.bf16.mxu0 0
      %2222 = vmatpush1.bf16.msra.mxu0 0
      %2223 = vmatprep.subr.bf16.mxu0 0
      %2224 = vmatpush1.bf16.msra.mxu0 0
      %2225 = vmatprep.subr.bf16.mxu0 0
      %2226 = vmatpush1.bf16.msra.mxu0 0
      %2227 = vmatprep.subr.bf16.mxu0 0
      %2228 = vmatpush1.bf16.msra.mxu0 0
      %2229 = vmatprep.subr.bf16.mxu0 0
      %2230 = vmatpush1.bf16.msra.mxu0 %v2214
      %2231 = vmatprep.subr.bf16.mxu0 0
      %2232 = vmatpush1.bf16.msra.mxu0 %v2213
      %2233 = vmatprep.subr.bf16.mxu0 0
      %2234 = vmatpush2.bf16.msra.mxu0 0
      %2235 = vmatprep.subr.bf16.mxu0 0
      %2236 = vmatpush2.bf16.msra.mxu0 0
      %2237 = vmatprep.subr.bf16.mxu0 0
      %2238 = vmatpush2.bf16.msra.mxu0 0
      %2239 = vmatprep.subr.bf16.mxu0 0
      %2240 = vmatpush2.bf16.msra.mxu0 0
      %2241 = vmatprep.subr.bf16.mxu0 0
      %2242 = vmatpush2.bf16.msra.mxu0 0
      %2243 = vmatprep.subr.bf16.mxu0 0
      %2244 = vmatpush2.bf16.msra.mxu0 0
      %2245 = vmatprep.subr.bf16.mxu0 0
      %2246 = vmatpush2.bf16.msra.mxu0 0
      %2247 = vmatprep.subr.bf16.mxu0 0
      %2248 = vmatpush2.bf16.msra.mxu0 0
      %2249 = vmatprep.mubr.bf16.mxu0 0
      %2250 = vmatmul.mubr.bf16.gmra.mxu0 %v953
      %v2251 = vpop.f32.mrf.mxu0
      %v2252 = vadd.f32 0.0, %v2251
      %v2253 = vpop.f32.mrf.mxu0
      %v2254 = vpop.f32.mrf.mxu0
      %v2255 = vadd.f32 0.0, %v2254
      %v2256 = vpop.f32.mrf.mxu0
      %2257 = vmatprep.mubr.bf16.mxu0 0
      %2258 = vmatmul.mubr.bf16.gmra.mxu0 %v956
      %v2259 = vpop.f32.mrf.mxu0
      %v2260 = vadd.f32 0.0, %v2259
      %v2261 = vpop.f32.mrf.mxu0
      %v2262 = vpop.f32.mrf.mxu0
      %v2263 = vadd.f32 0.0, %v2262
      %v2264 = vpop.f32.mrf.mxu0
      %2265 = vmatprep.mubr.bf16.mxu0 0
      %2266 = vmatmul.mubr.bf16.gmra.mxu0 %v959
      %v2267 = vpop.f32.mrf.mxu0
      %v2268 = vadd.f32 0.0, %v2267
      %v2269 = vpop.f32.mrf.mxu0
      %v2270 = vpop.f32.mrf.mxu0
      %v2271 = vadd.f32 0.0, %v2270
      %v2272 = vpop.f32.mrf.mxu0
      %2273 = vmatprep.mubr.bf16.mxu0 0
      %2274 = vmatmul.mubr.bf16.gmra.mxu0 %v962
      %v2275 = vpop.f32.mrf.mxu0
      %v2276 = vadd.f32 0.0, %v2275
      %v2277 = vpop.f32.mrf.mxu0
      %v2278 = vpop.f32.mrf.mxu0
      %v2279 = vadd.f32 0.0, %v2278
      %v2280 = vpop.f32.mrf.mxu0
      %2281 = vdwg.mxu0
      %s2282 = scalar_lea.vmem %s6, 32
      %v2283 = vld [vmem:[%s2282] sm:$0xf]
      %v2284 = vld [vmem:[%s2282 + $0x4] sm:$0xf]
      %v2285 = vld [vmem:[%s2282 + $0x8] sm:$0xf]
      %v2286 = vld [vmem:[%s2282 + $0xc] sm:$0xf]
      %v2291 = vunpack.c.l.b16 %v2283
      %v2292 = vunpack.c.l.b16 %v2284
      %v2293 = vunpack.c.l.b16 %v2285
      %v2294 = vunpack.c.l.b16 %v2286
      %v2295 = vpack.c.b16 %v2292, %v2291
      %v2296 = vpack.c.b16 %v2294, %v2293
      %2299 = vmatprep.subr.bf16.mxu0 0
      %2300 = vmatpush1.bf16.msra.mxu0 0
      %2301 = vmatprep.subr.bf16.mxu0 0
      %2302 = vmatpush1.bf16.msra.mxu0 0
      %2303 = vmatprep.subr.bf16.mxu0 0
      %2304 = vmatpush1.bf16.msra.mxu0 0
      %2305 = vmatprep.subr.bf16.mxu0 0
      %2306 = vmatpush1.bf16.msra.mxu0 0
      %2307 = vmatprep.subr.bf16.mxu0 0
      %2308 = vmatpush1.bf16.msra.mxu0 0
      %2309 = vmatprep.subr.bf16.mxu0 0
      %2310 = vmatpush1.bf16.msra.mxu0 0
      %2311 = vmatprep.subr.bf16.mxu0 0
      %2312 = vmatpush1.bf16.msra.mxu0 %v2296
      %2313 = vmatprep.subr.bf16.mxu0 0
      %2314 = vmatpush1.bf16.msra.mxu0 %v2295
      %2315 = vmatprep.subr.bf16.mxu0 0
      %2316 = vmatpush2.bf16.msra.mxu0 0
      %2317 = vmatprep.subr.bf16.mxu0 0
      %2318 = vmatpush2.bf16.msra.mxu0 0
      %2319 = vmatprep.subr.bf16.mxu0 0
      %2320 = vmatpush2.bf16.msra.mxu0 0
      %2321 = vmatprep.subr.bf16.mxu0 0
      %2322 = vmatpush2.bf16.msra.mxu0 0
      %2323 = vmatprep.subr.bf16.mxu0 0
      %2324 = vmatpush2.bf16.msra.mxu0 0
      %2325 = vmatprep.subr.bf16.mxu0 0
      %2326 = vmatpush2.bf16.msra.mxu0 0
      %2327 = vmatprep.subr.bf16.mxu0 0
      %2328 = vmatpush2.bf16.msra.mxu0 0
      %2329 = vmatprep.subr.bf16.mxu0 0
      %2330 = vmatpush2.bf16.msra.mxu0 0
      %2331 = vmatprep.mubr.bf16.mxu0 0
      %2332 = vmatmul.mubr.bf16.gmra.mxu0 %v953
      %v2333 = vpop.f32.mrf.mxu0
      %v2334 = vadd.f32 0.0, %v2333
      %v2335 = vpop.f32.mrf.mxu0
      %v2336 = vpop.f32.mrf.mxu0
      %v2337 = vadd.f32 0.0, %v2336
      %v2338 = vpop.f32.mrf.mxu0
      %2339 = vmatprep.mubr.bf16.mxu0 0
      %2340 = vmatmul.mubr.bf16.gmra.mxu0 %v956
      %v2341 = vpop.f32.mrf.mxu0
      %v2342 = vadd.f32 0.0, %v2341
      %v2343 = vpop.f32.mrf.mxu0
      %v2344 = vpop.f32.mrf.mxu0
      %v2345 = vadd.f32 0.0, %v2344
      %v2346 = vpop.f32.mrf.mxu0
      %2347 = vmatprep.mubr.bf16.mxu0 0
      %2348 = vmatmul.mubr.bf16.gmra.mxu0 %v959
      %v2349 = vpop.f32.mrf.mxu0
      %v2350 = vadd.f32 0.0, %v2349
      %v2351 = vpop.f32.mrf.mxu0
      %v2352 = vpop.f32.mrf.mxu0
      %v2353 = vadd.f32 0.0, %v2352
      %v2354 = vpop.f32.mrf.mxu0
      %2355 = vmatprep.mubr.bf16.mxu0 0
      %2356 = vmatmul.mubr.bf16.gmra.mxu0 %v962
      %v2357 = vpop.f32.mrf.mxu0
      %v2358 = vadd.f32 0.0, %v2357
      %v2359 = vpop.f32.mrf.mxu0
      %v2360 = vpop.f32.mrf.mxu0
      %v2361 = vadd.f32 0.0, %v2360
      %v2362 = vpop.f32.mrf.mxu0
      %2363 = vdwg.mxu0
      %v2364 = vpack.c.bf16 %v2173, %v2170
      %v2365 = vpack.c.bf16 %v2181, %v2178
      %v2366 = vpack.c.bf16 %v2189, %v2186
      %v2367 = vpack.c.bf16 %v2197, %v2194
      %v2368 = vpack.c.bf16 %v2255, %v2252
      %v2369 = vpack.c.bf16 %v2263, %v2260
      %v2370 = vpack.c.bf16 %v2271, %v2268
      %v2371 = vpack.c.bf16 %v2279, %v2276
      %v2373 = vsel %vm1118, %v2364, 0
      %v2376 = vsel %vm1118, %v2365, 0
      %v2379 = vsel %vm1118, %v2366, 0
      %v2382 = vsel %vm1118, %v2367, 0
      %v2385 = vsel %vm1118, %v2368, 0
      %v2388 = vsel %vm1118, %v2369, 0
      %v2391 = vsel %vm1118, %v2370, 0
      %v2394 = vsel %vm1118, %v2371, 0
      %2396 = vmatprep.subr.bf16.mxu0 0
      %2397 = vmatpush1.bf16.xpose.msra.mxu0 0
      %2398 = vmatprep.subr.bf16.mxu0 0
      %2399 = vmatpush1.bf16.xpose.msra.mxu0 0
      %2400 = vmatprep.subr.bf16.mxu0 0
      %2401 = vmatpush1.bf16.xpose.msra.mxu0 0
      %2402 = vmatprep.subr.bf16.mxu0 0
      %2403 = vmatpush1.bf16.xpose.msra.mxu0 0
      %2404 = vmatprep.subr.bf16.mxu0 0
      %2405 = vmatpush1.bf16.xpose.msra.mxu0 %v2394
      %2406 = vmatprep.subr.bf16.mxu0 0
      %2407 = vmatpush1.bf16.xpose.msra.mxu0 %v2391
      %2408 = vmatprep.subr.bf16.mxu0 0
      %2409 = vmatpush1.bf16.xpose.msra.mxu0 %v2388
      %2410 = vmatprep.subr.bf16.mxu0 0
      %2411 = vmatpush1.bf16.xpose.msra.mxu0 %v2385
      %2412 = vmatprep.subr.bf16.mxu0 0
      %2413 = vmatpush2.bf16.xpose.msra.mxu0 0
      %2414 = vmatprep.subr.bf16.mxu0 0
      %2415 = vmatpush2.bf16.xpose.msra.mxu0 0
      %2416 = vmatprep.subr.bf16.mxu0 0
      %2417 = vmatpush2.bf16.xpose.msra.mxu0 0
      %2418 = vmatprep.subr.bf16.mxu0 0
      %2419 = vmatpush2.bf16.xpose.msra.mxu0 0
      %2420 = vmatprep.subr.bf16.mxu0 0
      %2421 = vmatpush2.bf16.xpose.msra.mxu0 0
      %2422 = vmatprep.subr.bf16.mxu0 0
      %2423 = vmatpush2.bf16.xpose.msra.mxu0 0
      %2424 = vmatprep.subr.bf16.mxu0 0
      %2425 = vmatpush2.bf16.xpose.msra.mxu0 0
      %2426 = vmatprep.subr.bf16.mxu0 0
      %2427 = vmatpush2.bf16.xpose.msra.mxu0 0
      %2428 = vmatprep.mubr.bf16.mxu0 0
      %2429 = vmatmul.mubr.bf16.gmra.mxu0 %v2373
      %v2430 = vpop.f32.mrf.mxu0
      %v2431 = vadd.f32 0.0, %v2430
      %v2432 = vpop.f32.mrf.mxu0
      %v2433 = vpop.f32.mrf.mxu0
      %v2434 = vadd.f32 0.0, %v2433
      %v2435 = vpop.f32.mrf.mxu0
      %2436 = vmatprep.mubr.bf16.mxu0 0
      %2437 = vmatmul.mubr.bf16.gmra.mxu0 %v2376
      %v2438 = vpop.f32.mrf.mxu0
      %v2439 = vadd.f32 0.0, %v2438
      %v2440 = vpop.f32.mrf.mxu0
      %v2441 = vpop.f32.mrf.mxu0
      %v2442 = vadd.f32 0.0, %v2441
      %v2443 = vpop.f32.mrf.mxu0
      %2444 = vmatprep.mubr.bf16.mxu0 0
      %2445 = vmatmul.mubr.bf16.gmra.mxu0 %v2379
      %v2446 = vpop.f32.mrf.mxu0
      %v2447 = vadd.f32 0.0, %v2446
      %v2448 = vpop.f32.mrf.mxu0
      %v2449 = vpop.f32.mrf.mxu0
      %v2450 = vadd.f32 0.0, %v2449
      %v2451 = vpop.f32.mrf.mxu0
      %2452 = vmatprep.mubr.bf16.mxu0 0
      %2453 = vmatmul.mubr.bf16.gmra.mxu0 %v2382
      %v2454 = vpop.f32.mrf.mxu0
      %v2455 = vadd.f32 0.0, %v2454
      %v2456 = vpop.f32.mrf.mxu0
      %v2457 = vpop.f32.mrf.mxu0
      %v2458 = vadd.f32 0.0, %v2457
      %v2459 = vpop.f32.mrf.mxu0
      %2460 = vdwg.mxu0
      %v2461 = vsel %vm1208, %v2431, -inf
      %2462 = vmax.xlane.f32.xlu0 %v2461
      %v2463 = vpop.xlane.xlu0 %2462
      %v2464 = vsel %vm1208, %v2434, -inf
      %2465 = vmax.xlane.f32.xlu0 %v2464
      %v2466 = vpop.xlane.xlu0 %2465
      %v2467 = vsel %vm1208, %v2439, -inf
      %2468 = vmax.xlane.f32.xlu0 %v2467
      %v2469 = vpop.xlane.xlu0 %2468
      %v2470 = vsel %vm1208, %v2442, -inf
      %2471 = vmax.xlane.f32.xlu0 %v2470
      %v2472 = vpop.xlane.xlu0 %2471
      %v2473 = vsel %vm1208, %v2447, -inf
      %2474 = vmax.xlane.f32.xlu0 %v2473
      %v2475 = vpop.xlane.xlu0 %2474
      %v2476 = vsel %vm1208, %v2450, -inf
      %2477 = vmax.xlane.f32.xlu0 %v2476
      %v2478 = vpop.xlane.xlu0 %2477
      %v2479 = vsel %vm1208, %v2455, -inf
      %2480 = vmax.xlane.f32.xlu0 %v2479
      %v2481 = vpop.xlane.xlu0 %2480
      %v2482 = vsel %vm1208, %v2458, -inf
      %2483 = vmax.xlane.f32.xlu0 %v2482
      %v2484 = vpop.xlane.xlu0 %2483
      %v2485 = vsub.f32 %v2431, %v2463
      %v2486 = vsub.f32 %v2434, %v2466
      %v2487 = vsub.f32 %v2439, %v2469
      %v2488 = vsub.f32 %v2442, %v2472
      %v2489 = vsub.f32 %v2447, %v2475
      %v2490 = vsub.f32 %v2450, %v2478
      %v2491 = vsub.f32 %v2455, %v2481
      %v2492 = vsub.f32 %v2458, %v2484
      %v2493 = vmul.f32 %v2485, 1.442695
      %v2494 = vpow.pop %v2493
      %v2495 = vmul.f32 %v2486, 1.442695
      %v2496 = vpow.pop %v2495
      %v2497 = vmul.f32 %v2487, 1.442695
      %v2498 = vpow.pop %v2497
      %v2499 = vmul.f32 %v2488, 1.442695
      %v2500 = vpow.pop %v2499
      %v2501 = vmul.f32 %v2489, 1.442695
      %v2502 = vpow.pop %v2501
      %v2503 = vmul.f32 %v2490, 1.442695
      %v2504 = vpow.pop %v2503
      %v2505 = vmul.f32 %v2491, 1.442695
      %v2506 = vpow.pop %v2505
      %v2507 = vmul.f32 %v2492, 1.442695
      %v2508 = vpow.pop %v2507
      %v2509 = vsel %vm1208, %v2494, 0.0
      %2510 = vadd.xlane.f32.xlu0 %v2509
      %v2511 = vpop.xlane.xlu0 %2510
      %v2512 = vsel %vm1208, %v2496, 0.0
      %2513 = vadd.xlane.f32.xlu0 %v2512
      %v2514 = vpop.xlane.xlu0 %2513
      %v2515 = vsel %vm1208, %v2498, 0.0
      %2516 = vadd.xlane.f32.xlu0 %v2515
      %v2517 = vpop.xlane.xlu0 %2516
      %v2518 = vsel %vm1208, %v2500, 0.0
      %2519 = vadd.xlane.f32.xlu0 %v2518
      %v2520 = vpop.xlane.xlu0 %2519
      %v2521 = vsel %vm1208, %v2502, 0.0
      %2522 = vadd.xlane.f32.xlu0 %v2521
      %v2523 = vpop.xlane.xlu0 %2522
      %v2524 = vsel %vm1208, %v2504, 0.0
      %2525 = vadd.xlane.f32.xlu0 %v2524
      %v2526 = vpop.xlane.xlu0 %2525
      %v2527 = vsel %vm1208, %v2506, 0.0
      %2528 = vadd.xlane.f32.xlu0 %v2527
      %v2529 = vpop.xlane.xlu0 %2528
      %v2530 = vsel %vm1208, %v2508, 0.0
      %2531 = vadd.xlane.f32.xlu0 %v2530
      %v2532 = vpop.xlane.xlu0 %2531
      %v2533 = vpack.c.bf16 %v2496, %v2494
      %v2534 = vpack.c.bf16 %v2500, %v2498
      %v2535 = vpack.c.bf16 %v2504, %v2502
      %v2536 = vpack.c.bf16 %v2508, %v2506
      %v2537 = vpack.c.bf16 %v2337, %v2334
      %v2538 = vpack.c.bf16 %v2345, %v2342
      %v2539 = vpack.c.bf16 %v2353, %v2350
      %v2540 = vpack.c.bf16 %v2361, %v2358
      %v2542 = vsel %vm1208, %v2533, 0
      %v2545 = vsel %vm1208, %v2534, 0
      %v2548 = vsel %vm1208, %v2535, 0
      %v2551 = vsel %vm1208, %v2536, 0
      %2553 = vmatprep.subr.bf16.mxu0 0
      %2554 = vmatpush1.bf16.msra.mxu0 0
      %2555 = vmatprep.subr.bf16.mxu0 0
      %2556 = vmatpush1.bf16.msra.mxu0 0
      %2557 = vmatprep.subr.bf16.mxu0 0
      %2558 = vmatpush1.bf16.msra.mxu0 0
      %2559 = vmatprep.subr.bf16.mxu0 0
      %2560 = vmatpush1.bf16.msra.mxu0 0
      %2561 = vmatprep.subr.bf16.mxu0 0
      %2562 = vmatpush1.bf16.msra.mxu0 %v2540
      %2563 = vmatprep.subr.bf16.mxu0 0
      %2564 = vmatpush1.bf16.msra.mxu0 %v2539
      %2565 = vmatprep.subr.bf16.mxu0 0
      %2566 = vmatpush1.bf16.msra.mxu0 %v2538
      %2567 = vmatprep.subr.bf16.mxu0 0
      %2568 = vmatpush1.bf16.msra.mxu0 %v2537
      %2569 = vmatprep.subr.bf16.mxu0 0
      %2570 = vmatpush2.bf16.msra.mxu0 0
      %2571 = vmatprep.subr.bf16.mxu0 0
      %2572 = vmatpush2.bf16.msra.mxu0 0
      %2573 = vmatprep.subr.bf16.mxu0 0
      %2574 = vmatpush2.bf16.msra.mxu0 0
      %2575 = vmatprep.subr.bf16.mxu0 0
      %2576 = vmatpush2.bf16.msra.mxu0 0
      %2577 = vmatprep.subr.bf16.mxu0 0
      %2578 = vmatpush2.bf16.msra.mxu0 0
      %2579 = vmatprep.subr.bf16.mxu0 0
      %2580 = vmatpush2.bf16.msra.mxu0 0
      %2581 = vmatprep.subr.bf16.mxu0 0
      %2582 = vmatpush2.bf16.msra.mxu0 0
      %2583 = vmatprep.subr.bf16.mxu0 0
      %2584 = vmatpush2.bf16.msra.mxu0 0
      %2585 = vmatprep.mubr.bf16.mxu0 0
      %2586 = vmatmul.mubr.bf16.gmra.mxu0 %v2542
      %v2587 = vpop.f32.mrf.mxu0
      %v2588 = vadd.f32 0.0, %v2587
      %v2589 = vpop.f32.mrf.mxu0
      %v2590 = vpop.f32.mrf.mxu0
      %v2591 = vadd.f32 0.0, %v2590
      %v2592 = vpop.f32.mrf.mxu0
      %2593 = vmatprep.mubr.bf16.mxu0 0
      %2594 = vmatmul.mubr.bf16.gmra.mxu0 %v2545
      %v2595 = vpop.f32.mrf.mxu0
      %v2596 = vadd.f32 0.0, %v2595
      %v2597 = vpop.f32.mrf.mxu0
      %v2598 = vpop.f32.mrf.mxu0
      %v2599 = vadd.f32 0.0, %v2598
      %v2600 = vpop.f32.mrf.mxu0
      %2601 = vmatprep.mubr.bf16.mxu0 0
      %2602 = vmatmul.mubr.bf16.gmra.mxu0 %v2548
      %v2603 = vpop.f32.mrf.mxu0
      %v2604 = vadd.f32 0.0, %v2603
      %v2605 = vpop.f32.mrf.mxu0
      %v2606 = vpop.f32.mrf.mxu0
      %v2607 = vadd.f32 0.0, %v2606
      %v2608 = vpop.f32.mrf.mxu0
      %2609 = vmatprep.mubr.bf16.mxu0 0
      %2610 = vmatmul.mubr.bf16.gmra.mxu0 %v2551
      %v2611 = vpop.f32.mrf.mxu0
      %v2612 = vadd.f32 0.0, %v2611
      %v2613 = vpop.f32.mrf.mxu0
      %v2614 = vpop.f32.mrf.mxu0
      %v2615 = vadd.f32 0.0, %v2614
      %v2616 = vpop.f32.mrf.mxu0
      %2617 = vdwg.mxu0
      %v2618 = vrcp.pop %v2511
      %v2619 = vrcp.pop %v2514
      %v2620 = vrcp.pop %v2517
      %v2621 = vrcp.pop %v2520
      %v2622 = vrcp.pop %v2523
      %v2623 = vrcp.pop %v2526
      %v2624 = vrcp.pop %v2529
      %v2625 = vrcp.pop %v2532
      %v2626 = vmul.f32 %v2588, %v2618
      %v2627 = vmul.f32 %v2591, %v2619
      %v2628 = vmul.f32 %v2596, %v2620
      %v2629 = vmul.f32 %v2599, %v2621
      %v2630 = vmul.f32 %v2604, %v2622
      %v2631 = vmul.f32 %v2607, %v2623
      %v2632 = vmul.f32 %v2612, %v2624
      %v2633 = vmul.f32 %v2615, %v2625
      %v2634 = vld [vmem:[#allocation2] sm:$0xff]
      %v2635 = vld [vmem:[#allocation2 + $0x8] sm:$0xff]
      %v2636 = vld [vmem:[#allocation2 + $0x10] sm:$0xff]
      %v2637 = vld [vmem:[#allocation2 + $0x18] sm:$0xff]
      %v2638 = vld [vmem:[#allocation2 + $0x20] sm:$0xff]
      %v2639 = vld [vmem:[#allocation2 + $0x28] sm:$0xff]
      %v2640 = vld [vmem:[#allocation2 + $0x30] sm:$0xff]
      %v2641 = vld [vmem:[#allocation2 + $0x38] sm:$0xff]
      %v2642 = vpack.c.bf16 %v2627, %v2626
      %v2643 = vpack.c.bf16 %v2629, %v2628
      %v2644 = vpack.c.bf16 %v2631, %v2630
      %v2645 = vpack.c.bf16 %v2633, %v2632
      %s2646 = scalar_lea.vmem %s7, 8
      %v2647 = vld [vmem:[%s2646] sm:$0xf]
      %v2649 = vsel %vm1118, %v2642, 0
      %v2652 = vsel %vm1118, %v2643, 0
      %v2655 = vsel %vm1118, %v2644, 0
      %v2658 = vsel %vm1118, %v2645, 0
      %v2661 = vsel %vm1407, %v2647, 0
      %2663 = vmatprep.subr.bf16.mxu0 0
      %2664 = vmatpush1.bf16.msra.mxu0 0
      %2665 = vmatprep.subr.bf16.mxu0 0
      %2666 = vmatpush1.bf16.msra.mxu0 0
      %2667 = vmatprep.subr.bf16.mxu0 0
      %2668 = vmatpush1.bf16.msra.mxu0 0
      %2669 = vmatprep.subr.bf16.mxu0 0
      %2670 = vmatpush1.bf16.msra.mxu0 0
      %2671 = vmatprep.subr.bf16.mxu0 0
      %2672 = vmatpush1.bf16.msra.mxu0 0
      %2673 = vmatprep.subr.bf16.mxu0 0
      %2674 = vmatpush1.bf16.msra.mxu0 0
      %2675 = vmatprep.subr.bf16.mxu0 0
      %2676 = vmatpush1.bf16.msra.mxu0 0
      %2677 = vmatprep.subr.bf16.mxu0 0
      %2678 = vmatpush1.bf16.msra.mxu0 %v2661
      %2679 = vmatprep.subr.bf16.mxu0 0
      %2680 = vmatpush2.bf16.msra.mxu0 0
      %2681 = vmatprep.subr.bf16.mxu0 0
      %2682 = vmatpush2.bf16.msra.mxu0 0
      %2683 = vmatprep.subr.bf16.mxu0 0
      %2684 = vmatpush2.bf16.msra.mxu0 0
      %2685 = vmatprep.subr.bf16.mxu0 0
      %2686 = vmatpush2.bf16.msra.mxu0 0
      %2687 = vmatprep.subr.bf16.mxu0 0
      %2688 = vmatpush2.bf16.msra.mxu0 0
      %2689 = vmatprep.subr.bf16.mxu0 0
      %2690 = vmatpush2.bf16.msra.mxu0 0
      %2691 = vmatprep.subr.bf16.mxu0 0
      %2692 = vmatpush2.bf16.msra.mxu0 0
      %2693 = vmatprep.subr.bf16.mxu0 0
      %2694 = vmatpush2.bf16.msra.mxu0 0
      %2695 = vmatprep.mubr.bf16.mxu0 0
      %2696 = vmatmul.mubr.bf16.gmra.mxu0 %v2649
      %v2697 = vpop.f32.mrf.mxu0
      %v2698 = vadd.f32 0.0, %v2697
      %v2699 = vpop.f32.mrf.mxu0
      %v2700 = vpop.f32.mrf.mxu0
      %v2701 = vadd.f32 0.0, %v2700
      %v2702 = vpop.f32.mrf.mxu0
      %2703 = vmatprep.mubr.bf16.mxu0 0
      %2704 = vmatmul.mubr.bf16.gmra.mxu0 %v2652
      %v2705 = vpop.f32.mrf.mxu0
      %v2706 = vadd.f32 0.0, %v2705
      %v2707 = vpop.f32.mrf.mxu0
      %v2708 = vpop.f32.mrf.mxu0
      %v2709 = vadd.f32 0.0, %v2708
      %v2710 = vpop.f32.mrf.mxu0
      %2711 = vmatprep.mubr.bf16.mxu0 0
      %2712 = vmatmul.mubr.bf16.gmra.mxu0 %v2655
      %v2713 = vpop.f32.mrf.mxu0
      %v2714 = vadd.f32 0.0, %v2713
      %v2715 = vpop.f32.mrf.mxu0
      %v2716 = vpop.f32.mrf.mxu0
      %v2717 = vadd.f32 0.0, %v2716
      %v2718 = vpop.f32.mrf.mxu0
      %2719 = vmatprep.mubr.bf16.mxu0 0
      %2720 = vmatmul.mubr.bf16.gmra.mxu0 %v2658
      %v2721 = vpop.f32.mrf.mxu0
      %v2722 = vadd.f32 0.0, %v2721
      %v2723 = vpop.f32.mrf.mxu0
      %v2724 = vpop.f32.mrf.mxu0
      %v2725 = vadd.f32 0.0, %v2724
      %v2726 = vpop.f32.mrf.mxu0
      %2727 = vdwg.mxu0
      %v2728 = vadd.f32 %v2634, %v2698
      %v2729 = vadd.f32 %v2635, %v2701
      %v2730 = vadd.f32 %v2636, %v2706
      %v2731 = vadd.f32 %v2637, %v2709
      %v2732 = vadd.f32 %v2638, %v2714
      %v2733 = vadd.f32 %v2639, %v2717
      %v2734 = vadd.f32 %v2640, %v2722
      %v2735 = vadd.f32 %v2641, %v2725
      %2736 = vst.msk [vmem:[#allocation2] sm:$0xff] %vm573, %v2728
      %2737 = vst.msk [vmem:[#allocation2 + $0x8] sm:$0xff] %vm573, %v2729
      %2738 = vst.msk [vmem:[#allocation2 + $0x10] sm:$0xff] %vm573, %v2730
      %2739 = vst.msk [vmem:[#allocation2 + $0x18] sm:$0xff] %vm573, %v2731
      %2740 = vst.msk [vmem:[#allocation2 + $0x20] sm:$0xff] %vm573, %v2732
      %2741 = vst.msk [vmem:[#allocation2 + $0x28] sm:$0xff] %vm573, %v2733
      %2742 = vst.msk [vmem:[#allocation2 + $0x30] sm:$0xff] %vm573, %v2734
      %2743 = vst.msk [vmem:[#allocation2 + $0x38] sm:$0xff] %vm573, %v2735
      %s2744 = scalar_lea.vmem %s4, 48
      %v2745 = vld [vmem:[%s2744] sm:$0xf]
      %v2746 = vld [vmem:[%s2744 + $0x4] sm:$0xf]
      %v2747 = vld [vmem:[%s2744 + $0x8] sm:$0xf]
      %v2748 = vld [vmem:[%s2744 + $0xc] sm:$0xf]
      %v2753 = vunpack.c.l.b16 %v2745
      %v2754 = vunpack.c.l.b16 %v2746
      %v2755 = vunpack.c.l.b16 %v2747
      %v2756 = vunpack.c.l.b16 %v2748
      %v2757 = vpack.c.b16 %v2754, %v2753
      %v2758 = vpack.c.b16 %v2756, %v2755
      %2761 = vmatprep.subr.bf16.mxu0 0
      %2762 = vmatpush1.bf16.msra.mxu0 0
      %2763 = vmatprep.subr.bf16.mxu0 0
      %2764 = vmatpush1.bf16.msra.mxu0 0
      %2765 = vmatprep.subr.bf16.mxu0 0
      %2766 = vmatpush1.bf16.msra.mxu0 0
      %2767 = vmatprep.subr.bf16.mxu0 0
      %2768 = vmatpush1.bf16.msra.mxu0 0
      %2769 = vmatprep.subr.bf16.mxu0 0
      %2770 = vmatpush1.bf16.msra.mxu0 0
      %2771 = vmatprep.subr.bf16.mxu0 0
      %2772 = vmatpush1.bf16.msra.mxu0 0
      %2773 = vmatprep.subr.bf16.mxu0 0
      %2774 = vmatpush1.bf16.msra.mxu0 %v2758
      %2775 = vmatprep.subr.bf16.mxu0 0
      %2776 = vmatpush1.bf16.msra.mxu0 %v2757
      %2777 = vmatprep.subr.bf16.mxu0 0
      %2778 = vmatpush2.bf16.msra.mxu0 0
      %2779 = vmatprep.subr.bf16.mxu0 0
      %2780 = vmatpush2.bf16.msra.mxu0 0
      %2781 = vmatprep.subr.bf16.mxu0 0
      %2782 = vmatpush2.bf16.msra.mxu0 0
      %2783 = vmatprep.subr.bf16.mxu0 0
      %2784 = vmatpush2.bf16.msra.mxu0 0
      %2785 = vmatprep.subr.bf16.mxu0 0
      %2786 = vmatpush2.bf16.msra.mxu0 0
      %2787 = vmatprep.subr.bf16.mxu0 0
      %2788 = vmatpush2.bf16.msra.mxu0 0
      %2789 = vmatprep.subr.bf16.mxu0 0
      %2790 = vmatpush2.bf16.msra.mxu0 0
      %2791 = vmatprep.subr.bf16.mxu0 0
      %2792 = vmatpush2.bf16.msra.mxu0 0
      %2793 = vmatprep.mubr.bf16.mxu0 0
      %2794 = vmatmul.mubr.bf16.gmra.mxu0 %v860
      %v2795 = vpop.f32.mrf.mxu0
      %v2796 = vadd.f32 0.0, %v2795
      %v2797 = vpop.f32.mrf.mxu0
      %v2798 = vpop.f32.mrf.mxu0
      %v2799 = vadd.f32 0.0, %v2798
      %v2800 = vpop.f32.mrf.mxu0
      %2801 = vmatprep.mubr.bf16.mxu0 0
      %2802 = vmatmul.mubr.bf16.gmra.mxu0 %v863
      %v2803 = vpop.f32.mrf.mxu0
      %v2804 = vadd.f32 0.0, %v2803
      %v2805 = vpop.f32.mrf.mxu0
      %v2806 = vpop.f32.mrf.mxu0
      %v2807 = vadd.f32 0.0, %v2806
      %v2808 = vpop.f32.mrf.mxu0
      %2809 = vmatprep.mubr.bf16.mxu0 0
      %2810 = vmatmul.mubr.bf16.gmra.mxu0 %v866
      %v2811 = vpop.f32.mrf.mxu0
      %v2812 = vadd.f32 0.0, %v2811
      %v2813 = vpop.f32.mrf.mxu0
      %v2814 = vpop.f32.mrf.mxu0
      %v2815 = vadd.f32 0.0, %v2814
      %v2816 = vpop.f32.mrf.mxu0
      %2817 = vmatprep.mubr.bf16.mxu0 0
      %2818 = vmatmul.mubr.bf16.gmra.mxu0 %v869
      %v2819 = vpop.f32.mrf.mxu0
      %v2820 = vadd.f32 0.0, %v2819
      %v2821 = vpop.f32.mrf.mxu0
      %v2822 = vpop.f32.mrf.mxu0
      %v2823 = vadd.f32 0.0, %v2822
      %v2824 = vpop.f32.mrf.mxu0
      %2825 = vdwg.mxu0
      %s2826 = scalar_lea.vmem %s5, 48
      %v2827 = vld [vmem:[%s2826] sm:$0xf]
      %v2828 = vld [vmem:[%s2826 + $0x4] sm:$0xf]
      %v2829 = vld [vmem:[%s2826 + $0x8] sm:$0xf]
      %v2830 = vld [vmem:[%s2826 + $0xc] sm:$0xf]
      %v2835 = vunpack.c.l.b16 %v2827
      %v2836 = vunpack.c.l.b16 %v2828
      %v2837 = vunpack.c.l.b16 %v2829
      %v2838 = vunpack.c.l.b16 %v2830
      %v2839 = vpack.c.b16 %v2836, %v2835
      %v2840 = vpack.c.b16 %v2838, %v2837
      %2843 = vmatprep.subr.bf16.mxu0 0
      %2844 = vmatpush1.bf16.msra.mxu0 0
      %2845 = vmatprep.subr.bf16.mxu0 0
      %2846 = vmatpush1.bf16.msra.mxu0 0
      %2847 = vmatprep.subr.bf16.mxu0 0
      %2848 = vmatpush1.bf16.msra.mxu0 0
      %2849 = vmatprep.subr.bf16.mxu0 0
      %2850 = vmatpush1.bf16.msra.mxu0 0
      %2851 = vmatprep.subr.bf16.mxu0 0
      %2852 = vmatpush1.bf16.msra.mxu0 0
      %2853 = vmatprep.subr.bf16.mxu0 0
      %2854 = vmatpush1.bf16.msra.mxu0 0
      %2855 = vmatprep.subr.bf16.mxu0 0
      %2856 = vmatpush1.bf16.msra.mxu0 %v2840
      %2857 = vmatprep.subr.bf16.mxu0 0
      %2858 = vmatpush1.bf16.msra.mxu0 %v2839
      %2859 = vmatprep.subr.bf16.mxu0 0
      %2860 = vmatpush2.bf16.msra.mxu0 0
      %2861 = vmatprep.subr.bf16.mxu0 0
      %2862 = vmatpush2.bf16.msra.mxu0 0
      %2863 = vmatprep.subr.bf16.mxu0 0
      %2864 = vmatpush2.bf16.msra.mxu0 0
      %2865 = vmatprep.subr.bf16.mxu0 0
      %2866 = vmatpush2.bf16.msra.mxu0 0
      %2867 = vmatprep.subr.bf16.mxu0 0
      %2868 = vmatpush2.bf16.msra.mxu0 0
      %2869 = vmatprep.subr.bf16.mxu0 0
      %2870 = vmatpush2.bf16.msra.mxu0 0
      %2871 = vmatprep.subr.bf16.mxu0 0
      %2872 = vmatpush2.bf16.msra.mxu0 0
      %2873 = vmatprep.subr.bf16.mxu0 0
      %2874 = vmatpush2.bf16.msra.mxu0 0
      %2875 = vmatprep.mubr.bf16.mxu0 0
      %2876 = vmatmul.mubr.bf16.gmra.mxu0 %v953
      %v2877 = vpop.f32.mrf.mxu0
      %v2878 = vadd.f32 0.0, %v2877
      %v2879 = vpop.f32.mrf.mxu0
      %v2880 = vpop.f32.mrf.mxu0
      %v2881 = vadd.f32 0.0, %v2880
      %v2882 = vpop.f32.mrf.mxu0
      %2883 = vmatprep.mubr.bf16.mxu0 0
      %2884 = vmatmul.mubr.bf16.gmra.mxu0 %v956
      %v2885 = vpop.f32.mrf.mxu0
      %v2886 = vadd.f32 0.0, %v2885
      %v2887 = vpop.f32.mrf.mxu0
      %v2888 = vpop.f32.mrf.mxu0
      %v2889 = vadd.f32 0.0, %v2888
      %v2890 = vpop.f32.mrf.mxu0
      %2891 = vmatprep.mubr.bf16.mxu0 0
      %2892 = vmatmul.mubr.bf16.gmra.mxu0 %v959
      %v2893 = vpop.f32.mrf.mxu0
      %v2894 = vadd.f32 0.0, %v2893
      %v2895 = vpop.f32.mrf.mxu0
      %v2896 = vpop.f32.mrf.mxu0
      %v2897 = vadd.f32 0.0, %v2896
      %v2898 = vpop.f32.mrf.mxu0
      %2899 = vmatprep.mubr.bf16.mxu0 0
      %2900 = vmatmul.mubr.bf16.gmra.mxu0 %v962
      %v2901 = vpop.f32.mrf.mxu0
      %v2902 = vadd.f32 0.0, %v2901
      %v2903 = vpop.f32.mrf.mxu0
      %v2904 = vpop.f32.mrf.mxu0
      %v2905 = vadd.f32 0.0, %v2904
      %v2906 = vpop.f32.mrf.mxu0
      %2907 = vdwg.mxu0
      %s2908 = scalar_lea.vmem %s6, 48
      %v2909 = vld [vmem:[%s2908] sm:$0xf]
      %v2910 = vld [vmem:[%s2908 + $0x4] sm:$0xf]
      %v2911 = vld [vmem:[%s2908 + $0x8] sm:$0xf]
      %v2912 = vld [vmem:[%s2908 + $0xc] sm:$0xf]
      %v2917 = vunpack.c.l.b16 %v2909
      %v2918 = vunpack.c.l.b16 %v2910
      %v2919 = vunpack.c.l.b16 %v2911
      %v2920 = vunpack.c.l.b16 %v2912
      %v2921 = vpack.c.b16 %v2918, %v2917
      %v2922 = vpack.c.b16 %v2920, %v2919
      %2925 = vmatprep.subr.bf16.mxu0 0
      %2926 = vmatpush1.bf16.msra.mxu0 0
      %2927 = vmatprep.subr.bf16.mxu0 0
      %2928 = vmatpush1.bf16.msra.mxu0 0
      %2929 = vmatprep.subr.bf16.mxu0 0
      %2930 = vmatpush1.bf16.msra.mxu0 0
      %2931 = vmatprep.subr.bf16.mxu0 0
      %2932 = vmatpush1.bf16.msra.mxu0 0
      %2933 = vmatprep.subr.bf16.mxu0 0
      %2934 = vmatpush1.bf16.msra.mxu0 0
      %2935 = vmatprep.subr.bf16.mxu0 0
      %2936 = vmatpush1.bf16.msra.mxu0 0
      %2937 = vmatprep.subr.bf16.mxu0 0
      %2938 = vmatpush1.bf16.msra.mxu0 %v2922
      %2939 = vmatprep.subr.bf16.mxu0 0
      %2940 = vmatpush1.bf16.msra.mxu0 %v2921
      %2941 = vmatprep.subr.bf16.mxu0 0
      %2942 = vmatpush2.bf16.msra.mxu0 0
      %2943 = vmatprep.subr.bf16.mxu0 0
      %2944 = vmatpush2.bf16.msra.mxu0 0
      %2945 = vmatprep.subr.bf16.mxu0 0
      %2946 = vmatpush2.bf16.msra.mxu0 0
      %2947 = vmatprep.subr.bf16.mxu0 0
      %2948 = vmatpush2.bf16.msra.mxu0 0
      %2949 = vmatprep.subr.bf16.mxu0 0
      %2950 = vmatpush2.bf16.msra.mxu0 0
      %2951 = vmatprep.subr.bf16.mxu0 0
      %2952 = vmatpush2.bf16.msra.mxu0 0
      %2953 = vmatprep.subr.bf16.mxu0 0
      %2954 = vmatpush2.bf16.msra.mxu0 0
      %2955 = vmatprep.subr.bf16.mxu0 0
      %2956 = vmatpush2.bf16.msra.mxu0 0
      %2957 = vmatprep.mubr.bf16.mxu0 0
      %2958 = vmatmul.mubr.bf16.gmra.mxu0 %v953
      %v2959 = vpop.f32.mrf.mxu0
      %v2960 = vadd.f32 0.0, %v2959
      %v2961 = vpop.f32.mrf.mxu0
      %v2962 = vpop.f32.mrf.mxu0
      %v2963 = vadd.f32 0.0, %v2962
      %v2964 = vpop.f32.mrf.mxu0
      %2965 = vmatprep.mubr.bf16.mxu0 0
      %2966 = vmatmul.mubr.bf16.gmra.mxu0 %v956
      %v2967 = vpop.f32.mrf.mxu0
      %v2968 = vadd.f32 0.0, %v2967
      %v2969 = vpop.f32.mrf.mxu0
      %v2970 = vpop.f32.mrf.mxu0
      %v2971 = vadd.f32 0.0, %v2970
      %v2972 = vpop.f32.mrf.mxu0
      %2973 = vmatprep.mubr.bf16.mxu0 0
      %2974 = vmatmul.mubr.bf16.gmra.mxu0 %v959
      %v2975 = vpop.f32.mrf.mxu0
      %v2976 = vadd.f32 0.0, %v2975
      %v2977 = vpop.f32.mrf.mxu0
      %v2978 = vpop.f32.mrf.mxu0
      %v2979 = vadd.f32 0.0, %v2978
      %v2980 = vpop.f32.mrf.mxu0
      %2981 = vmatprep.mubr.bf16.mxu0 0
      %2982 = vmatmul.mubr.bf16.gmra.mxu0 %v962
      %v2983 = vpop.f32.mrf.mxu0
      %v2984 = vadd.f32 0.0, %v2983
      %v2985 = vpop.f32.mrf.mxu0
      %v2986 = vpop.f32.mrf.mxu0
      %v2987 = vadd.f32 0.0, %v2986
      %v2988 = vpop.f32.mrf.mxu0
      %2989 = vdwg.mxu0
      %v2990 = vpack.c.bf16 %v2799, %v2796
      %v2991 = vpack.c.bf16 %v2807, %v2804
      %v2992 = vpack.c.bf16 %v2815, %v2812
      %v2993 = vpack.c.bf16 %v2823, %v2820
      %v2994 = vpack.c.bf16 %v2881, %v2878
      %v2995 = vpack.c.bf16 %v2889, %v2886
      %v2996 = vpack.c.bf16 %v2897, %v2894
      %v2997 = vpack.c.bf16 %v2905, %v2902
      %v2999 = vsel %vm1118, %v2990, 0
      %v3002 = vsel %vm1118, %v2991, 0
      %v3005 = vsel %vm1118, %v2992, 0
      %v3008 = vsel %vm1118, %v2993, 0
      %v3011 = vsel %vm1118, %v2994, 0
      %v3014 = vsel %vm1118, %v2995, 0
      %v3017 = vsel %vm1118, %v2996, 0
      %v3020 = vsel %vm1118, %v2997, 0
      %3022 = vmatprep.subr.bf16.mxu0 0
      %3023 = vmatpush1.bf16.xpose.msra.mxu0 0
      %3024 = vmatprep.subr.bf16.mxu0 0
      %3025 = vmatpush1.bf16.xpose.msra.mxu0 0
      %3026 = vmatprep.subr.bf16.mxu0 0
      %3027 = vmatpush1.bf16.xpose.msra.mxu0 0
      %3028 = vmatprep.subr.bf16.mxu0 0
      %3029 = vmatpush1.bf16.xpose.msra.mxu0 0
      %3030 = vmatprep.subr.bf16.mxu0 0
      %3031 = vmatpush1.bf16.xpose.msra.mxu0 %v3020
      %3032 = vmatprep.subr.bf16.mxu0 0
      %3033 = vmatpush1.bf16.xpose.msra.mxu0 %v3017
      %3034 = vmatprep.subr.bf16.mxu0 0
      %3035 = vmatpush1.bf16.xpose.msra.mxu0 %v3014
      %3036 = vmatprep.subr.bf16.mxu0 0
      %3037 = vmatpush1.bf16.xpose.msra.mxu0 %v3011
      %3038 = vmatprep.subr.bf16.mxu0 0
      %3039 = vmatpush2.bf16.xpose.msra.mxu0 0
      %3040 = vmatprep.subr.bf16.mxu0 0
      %3041 = vmatpush2.bf16.xpose.msra.mxu0 0
      %3042 = vmatprep.subr.bf16.mxu0 0
      %3043 = vmatpush2.bf16.xpose.msra.mxu0 0
      %3044 = vmatprep.subr.bf16.mxu0 0
      %3045 = vmatpush2.bf16.xpose.msra.mxu0 0
      %3046 = vmatprep.subr.bf16.mxu0 0
      %3047 = vmatpush2.bf16.xpose.msra.mxu0 0
      %3048 = vmatprep.subr.bf16.mxu0 0
      %3049 = vmatpush2.bf16.xpose.msra.mxu0 0
      %3050 = vmatprep.subr.bf16.mxu0 0
      %3051 = vmatpush2.bf16.xpose.msra.mxu0 0
      %3052 = vmatprep.subr.bf16.mxu0 0
      %3053 = vmatpush2.bf16.xpose.msra.mxu0 0
      %3054 = vmatprep.mubr.bf16.mxu0 0
      %3055 = vmatmul.mubr.bf16.gmra.mxu0 %v2999
      %v3056 = vpop.f32.mrf.mxu0
      %v3057 = vadd.f32 0.0, %v3056
      %v3058 = vpop.f32.mrf.mxu0
      %v3059 = vpop.f32.mrf.mxu0
      %v3060 = vadd.f32 0.0, %v3059
      %v3061 = vpop.f32.mrf.mxu0
      %3062 = vmatprep.mubr.bf16.mxu0 0
      %3063 = vmatmul.mubr.bf16.gmra.mxu0 %v3002
      %v3064 = vpop.f32.mrf.mxu0
      %v3065 = vadd.f32 0.0, %v3064
      %v3066 = vpop.f32.mrf.mxu0
      %v3067 = vpop.f32.mrf.mxu0
      %v3068 = vadd.f32 0.0, %v3067
      %v3069 = vpop.f32.mrf.mxu0
      %3070 = vmatprep.mubr.bf16.mxu0 0
      %3071 = vmatmul.mubr.bf16.gmra.mxu0 %v3005
      %v3072 = vpop.f32.mrf.mxu0
      %v3073 = vadd.f32 0.0, %v3072
      %v3074 = vpop.f32.mrf.mxu0
      %v3075 = vpop.f32.mrf.mxu0
      %v3076 = vadd.f32 0.0, %v3075
      %v3077 = vpop.f32.mrf.mxu0
      %3078 = vmatprep.mubr.bf16.mxu0 0
      %3079 = vmatmul.mubr.bf16.gmra.mxu0 %v3008
      %v3080 = vpop.f32.mrf.mxu0
      %v3081 = vadd.f32 0.0, %v3080
      %v3082 = vpop.f32.mrf.mxu0
      %v3083 = vpop.f32.mrf.mxu0
      %v3084 = vadd.f32 0.0, %v3083
      %v3085 = vpop.f32.mrf.mxu0
      %3086 = vdwg.mxu0
      %v3087 = vsel %vm1208, %v3057, -inf
      %3088 = vmax.xlane.f32.xlu0 %v3087
      %v3089 = vpop.xlane.xlu0 %3088
      %v3090 = vsel %vm1208, %v3060, -inf
      %3091 = vmax.xlane.f32.xlu0 %v3090
      %v3092 = vpop.xlane.xlu0 %3091
      %v3093 = vsel %vm1208, %v3065, -inf
      %3094 = vmax.xlane.f32.xlu0 %v3093
      %v3095 = vpop.xlane.xlu0 %3094
      %v3096 = vsel %vm1208, %v3068, -inf
      %3097 = vmax.xlane.f32.xlu0 %v3096
      %v3098 = vpop.xlane.xlu0 %3097
      %v3099 = vsel %vm1208, %v3073, -inf
      %3100 = vmax.xlane.f32.xlu0 %v3099
      %v3101 = vpop.xlane.xlu0 %3100
      %v3102 = vsel %vm1208, %v3076, -inf
      %3103 = vmax.xlane.f32.xlu0 %v3102
      %v3104 = vpop.xlane.xlu0 %3103
      %v3105 = vsel %vm1208, %v3081, -inf
      %3106 = vmax.xlane.f32.xlu0 %v3105
      %v3107 = vpop.xlane.xlu0 %3106
      %v3108 = vsel %vm1208, %v3084, -inf
      %3109 = vmax.xlane.f32.xlu0 %v3108
      %v3110 = vpop.xlane.xlu0 %3109
      %v3111 = vsub.f32 %v3057, %v3089
      %v3112 = vsub.f32 %v3060, %v3092
      %v3113 = vsub.f32 %v3065, %v3095
      %v3114 = vsub.f32 %v3068, %v3098
      %v3115 = vsub.f32 %v3073, %v3101
      %v3116 = vsub.f32 %v3076, %v3104
      %v3117 = vsub.f32 %v3081, %v3107
      %v3118 = vsub.f32 %v3084, %v3110
      %v3119 = vmul.f32 %v3111, 1.442695
      %v3120 = vpow.pop %v3119
      %v3121 = vmul.f32 %v3112, 1.442695
      %v3122 = vpow.pop %v3121
      %v3123 = vmul.f32 %v3113, 1.442695
      %v3124 = vpow.pop %v3123
      %v3125 = vmul.f32 %v3114, 1.442695
      %v3126 = vpow.pop %v3125
      %v3127 = vmul.f32 %v3115, 1.442695
      %v3128 = vpow.pop %v3127
      %v3129 = vmul.f32 %v3116, 1.442695
      %v3130 = vpow.pop %v3129
      %v3131 = vmul.f32 %v3117, 1.442695
      %v3132 = vpow.pop %v3131
      %v3133 = vmul.f32 %v3118, 1.442695
      %v3134 = vpow.pop %v3133
      %v3135 = vsel %vm1208, %v3120, 0.0
      %3136 = vadd.xlane.f32.xlu0 %v3135
      %v3137 = vpop.xlane.xlu0 %3136
      %v3138 = vsel %vm1208, %v3122, 0.0
      %3139 = vadd.xlane.f32.xlu0 %v3138
      %v3140 = vpop.xlane.xlu0 %3139
      %v3141 = vsel %vm1208, %v3124, 0.0
      %3142 = vadd.xlane.f32.xlu0 %v3141
      %v3143 = vpop.xlane.xlu0 %3142
      %v3144 = vsel %vm1208, %v3126, 0.0
      %3145 = vadd.xlane.f32.xlu0 %v3144
      %v3146 = vpop.xlane.xlu0 %3145
      %v3147 = vsel %vm1208, %v3128, 0.0
      %3148 = vadd.xlane.f32.xlu0 %v3147
      %v3149 = vpop.xlane.xlu0 %3148
      %v3150 = vsel %vm1208, %v3130, 0.0
      %3151 = vadd.xlane.f32.xlu0 %v3150
      %v3152 = vpop.xlane.xlu0 %3151
      %v3153 = vsel %vm1208, %v3132, 0.0
      %3154 = vadd.xlane.f32.xlu0 %v3153
      %v3155 = vpop.xlane.xlu0 %3154
      %v3156 = vsel %vm1208, %v3134, 0.0
      %3157 = vadd.xlane.f32.xlu0 %v3156
      %v3158 = vpop.xlane.xlu0 %3157
      %v3159 = vpack.c.bf16 %v3122, %v3120
      %v3160 = vpack.c.bf16 %v3126, %v3124
      %v3161 = vpack.c.bf16 %v3130, %v3128
      %v3162 = vpack.c.bf16 %v3134, %v3132
      %v3163 = vpack.c.bf16 %v2963, %v2960
      %v3164 = vpack.c.bf16 %v2971, %v2968
      %v3165 = vpack.c.bf16 %v2979, %v2976
      %v3166 = vpack.c.bf16 %v2987, %v2984
      %v3168 = vsel %vm1208, %v3159, 0
      %v3171 = vsel %vm1208, %v3160, 0
      %v3174 = vsel %vm1208, %v3161, 0
      %v3177 = vsel %vm1208, %v3162, 0
      %3179 = vmatprep.subr.bf16.mxu0 0
      %3180 = vmatpush1.bf16.msra.mxu0 0
      %3181 = vmatprep.subr.bf16.mxu0 0
      %3182 = vmatpush1.bf16.msra.mxu0 0
      %3183 = vmatprep.subr.bf16.mxu0 0
      %3184 = vmatpush1.bf16.msra.mxu0 0
      %3185 = vmatprep.subr.bf16.mxu0 0
      %3186 = vmatpush1.bf16.msra.mxu0 0
      %3187 = vmatprep.subr.bf16.mxu0 0
      %3188 = vmatpush1.bf16.msra.mxu0 %v3166
      %3189 = vmatprep.subr.bf16.mxu0 0
      %3190 = vmatpush1.bf16.msra.mxu0 %v3165
      %3191 = vmatprep.subr.bf16.mxu0 0
      %3192 = vmatpush1.bf16.msra.mxu0 %v3164
      %3193 = vmatprep.subr.bf16.mxu0 0
      %3194 = vmatpush1.bf16.msra.mxu0 %v3163
      %3195 = vmatprep.subr.bf16.mxu0 0
      %3196 = vmatpush2.bf16.msra.mxu0 0
      %3197 = vmatprep.subr.bf16.mxu0 0
      %3198 = vmatpush2.bf16.msra.mxu0 0
      %3199 = vmatprep.subr.bf16.mxu0 0
      %3200 = vmatpush2.bf16.msra.mxu0 0
      %3201 = vmatprep.subr.bf16.mxu0 0
      %3202 = vmatpush2.bf16.msra.mxu0 0
      %3203 = vmatprep.subr.bf16.mxu0 0
      %3204 = vmatpush2.bf16.msra.mxu0 0
      %3205 = vmatprep.subr.bf16.mxu0 0
      %3206 = vmatpush2.bf16.msra.mxu0 0
      %3207 = vmatprep.subr.bf16.mxu0 0
      %3208 = vmatpush2.bf16.msra.mxu0 0
      %3209 = vmatprep.subr.bf16.mxu0 0
      %3210 = vmatpush2.bf16.msra.mxu0 0
      %3211 = vmatprep.mubr.bf16.mxu0 0
      %3212 = vmatmul.mubr.bf16.gmra.mxu0 %v3168
      %v3213 = vpop.f32.mrf.mxu0
      %v3214 = vadd.f32 0.0, %v3213
      %v3215 = vpop.f32.mrf.mxu0
      %v3216 = vpop.f32.mrf.mxu0
      %v3217 = vadd.f32 0.0, %v3216
      %v3218 = vpop.f32.mrf.mxu0
      %3219 = vmatprep.mubr.bf16.mxu0 0
      %3220 = vmatmul.mubr.bf16.gmra.mxu0 %v3171
      %v3221 = vpop.f32.mrf.mxu0
      %v3222 = vadd.f32 0.0, %v3221
      %v3223 = vpop.f32.mrf.mxu0
      %v3224 = vpop.f32.mrf.mxu0
      %v3225 = vadd.f32 0.0, %v3224
      %v3226 = vpop.f32.mrf.mxu0
      %3227 = vmatprep.mubr.bf16.mxu0 0
      %3228 = vmatmul.mubr.bf16.gmra.mxu0 %v3174
      %v3229 = vpop.f32.mrf.mxu0
      %v3230 = vadd.f32 0.0, %v3229
      %v3231 = vpop.f32.mrf.mxu0
      %v3232 = vpop.f32.mrf.mxu0
      %v3233 = vadd.f32 0.0, %v3232
      %v3234 = vpop.f32.mrf.mxu0
      %3235 = vmatprep.mubr.bf16.mxu0 0
      %3236 = vmatmul.mubr.bf16.gmra.mxu0 %v3177
      %v3237 = vpop.f32.mrf.mxu0
      %v3238 = vadd.f32 0.0, %v3237
      %v3239 = vpop.f32.mrf.mxu0
      %v3240 = vpop.f32.mrf.mxu0
      %v3241 = vadd.f32 0.0, %v3240
      %v3242 = vpop.f32.mrf.mxu0
      %3243 = vdwg.mxu0
      %v3244 = vrcp.pop %v3137
      %v3245 = vrcp.pop %v3140
      %v3246 = vrcp.pop %v3143
      %v3247 = vrcp.pop %v3146
      %v3248 = vrcp.pop %v3149
      %v3249 = vrcp.pop %v3152
      %v3250 = vrcp.pop %v3155
      %v3251 = vrcp.pop %v3158
      %v3252 = vmul.f32 %v3214, %v3244
      %v3253 = vmul.f32 %v3217, %v3245
      %v3254 = vmul.f32 %v3222, %v3246
      %v3255 = vmul.f32 %v3225, %v3247
      %v3256 = vmul.f32 %v3230, %v3248
      %v3257 = vmul.f32 %v3233, %v3249
      %v3258 = vmul.f32 %v3238, %v3250
      %v3259 = vmul.f32 %v3241, %v3251
      %v3260 = vld [vmem:[#allocation2] sm:$0xff]
      %v3261 = vld [vmem:[#allocation2 + $0x8] sm:$0xff]
      %v3262 = vld [vmem:[#allocation2 + $0x10] sm:$0xff]
      %v3263 = vld [vmem:[#allocation2 + $0x18] sm:$0xff]
      %v3264 = vld [vmem:[#allocation2 + $0x20] sm:$0xff]
      %v3265 = vld [vmem:[#allocation2 + $0x28] sm:$0xff]
      %v3266 = vld [vmem:[#allocation2 + $0x30] sm:$0xff]
      %v3267 = vld [vmem:[#allocation2 + $0x38] sm:$0xff]
      %v3268 = vpack.c.bf16 %v3253, %v3252
      %v3269 = vpack.c.bf16 %v3255, %v3254
      %v3270 = vpack.c.bf16 %v3257, %v3256
      %v3271 = vpack.c.bf16 %v3259, %v3258
      %s3272 = scalar_lea.vmem %s7, 12
      %v3273 = vld [vmem:[%s3272] sm:$0xf]
      %v3275 = vsel %vm1118, %v3268, 0
      %v3278 = vsel %vm1118, %v3269, 0
      %v3281 = vsel %vm1118, %v3270, 0
      %v3284 = vsel %vm1118, %v3271, 0
      %v3287 = vsel %vm1407, %v3273, 0
      %3289 = vmatprep.subr.bf16.mxu0 0
      %3290 = vmatpush1.bf16.msra.mxu0 0
      %3291 = vmatprep.subr.bf16.mxu0 0
      %3292 = vmatpush1.bf16.msra.mxu0 0
      %3293 = vmatprep.subr.bf16.mxu0 0
      %3294 = vmatpush1.bf16.msra.mxu0 0
      %3295 = vmatprep.subr.bf16.mxu0 0
      %3296 = vmatpush1.bf16.msra.mxu0 0
      %3297 = vmatprep.subr.bf16.mxu0 0
      %3298 = vmatpush1.bf16.msra.mxu0 0
      %3299 = vmatprep.subr.bf16.mxu0 0
      %3300 = vmatpush1.bf16.msra.mxu0 0
      %3301 = vmatprep.subr.bf16.mxu0 0
      %3302 = vmatpush1.bf16.msra.mxu0 0
      %3303 = vmatprep.subr.bf16.mxu0 0
      %3304 = vmatpush1.bf16.msra.mxu0 %v3287
      %3305 = vmatprep.subr.bf16.mxu0 0
      %3306 = vmatpush2.bf16.msra.mxu0 0
      %3307 = vmatprep.subr.bf16.mxu0 0
      %3308 = vmatpush2.bf16.msra.mxu0 0
      %3309 = vmatprep.subr.bf16.mxu0 0
      %3310 = vmatpush2.bf16.msra.mxu0 0
      %3311 = vmatprep.subr.bf16.mxu0 0
      %3312 = vmatpush2.bf16.msra.mxu0 0
      %3313 = vmatprep.subr.bf16.mxu0 0
      %3314 = vmatpush2.bf16.msra.mxu0 0
      %3315 = vmatprep.subr.bf16.mxu0 0
      %3316 = vmatpush2.bf16.msra.mxu0 0
      %3317 = vmatprep.subr.bf16.mxu0 0
      %3318 = vmatpush2.bf16.msra.mxu0 0
      %3319 = vmatprep.subr.bf16.mxu0 0
      %3320 = vmatpush2.bf16.msra.mxu0 0
      %3321 = vmatprep.mubr.bf16.mxu0 0
      %3322 = vmatmul.mubr.bf16.gmra.mxu0 %v3275
      %v3323 = vpop.f32.mrf.mxu0
      %v3324 = vadd.f32 0.0, %v3323
      %v3325 = vpop.f32.mrf.mxu0
      %v3326 = vpop.f32.mrf.mxu0
      %v3327 = vadd.f32 0.0, %v3326
      %v3328 = vpop.f32.mrf.mxu0
      %3329 = vmatprep.mubr.bf16.mxu0 0
      %3330 = vmatmul.mubr.bf16.gmra.mxu0 %v3278
      %v3331 = vpop.f32.mrf.mxu0
      %v3332 = vadd.f32 0.0, %v3331
      %v3333 = vpop.f32.mrf.mxu0
      %v3334 = vpop.f32.mrf.mxu0
      %v3335 = vadd.f32 0.0, %v3334
      %v3336 = vpop.f32.mrf.mxu0
      %3337 = vmatprep.mubr.bf16.mxu0 0
      %3338 = vmatmul.mubr.bf16.gmra.mxu0 %v3281
      %v3339 = vpop.f32.mrf.mxu0
      %v3340 = vadd.f32 0.0, %v3339
      %v3341 = vpop.f32.mrf.mxu0
      %v3342 = vpop.f32.mrf.mxu0
      %v3343 = vadd.f32 0.0, %v3342
      %v3344 = vpop.f32.mrf.mxu0
      %3345 = vmatprep.mubr.bf16.mxu0 0
      %3346 = vmatmul.mubr.bf16.gmra.mxu0 %v3284
      %v3347 = vpop.f32.mrf.mxu0
      %v3348 = vadd.f32 0.0, %v3347
      %v3349 = vpop.f32.mrf.mxu0
      %v3350 = vpop.f32.mrf.mxu0
      %v3351 = vadd.f32 0.0, %v3350
      %v3352 = vpop.f32.mrf.mxu0
      %3353 = vdwg.mxu0
      %v3354 = vadd.f32 %v3260, %v3324
      %v3355 = vadd.f32 %v3261, %v3327
      %v3356 = vadd.f32 %v3262, %v3332
      %v3357 = vadd.f32 %v3263, %v3335
      %v3358 = vadd.f32 %v3264, %v3340
      %v3359 = vadd.f32 %v3265, %v3343
      %v3360 = vadd.f32 %v3266, %v3348
      %v3361 = vadd.f32 %v3267, %v3351
      %3362 = vst.msk [vmem:[#allocation2] sm:$0xff] %vm573, %v3354
      %3363 = vst.msk [vmem:[#allocation2 + $0x8] sm:$0xff] %vm573, %v3355
      %3364 = vst.msk [vmem:[#allocation2 + $0x10] sm:$0xff] %vm573, %v3356
      %3365 = vst.msk [vmem:[#allocation2 + $0x18] sm:$0xff] %vm573, %v3357
      %3366 = vst.msk [vmem:[#allocation2 + $0x20] sm:$0xff] %vm573, %v3358
      %3367 = vst.msk [vmem:[#allocation2 + $0x28] sm:$0xff] %vm573, %v3359
      %3368 = vst.msk [vmem:[#allocation2 + $0x30] sm:$0xff] %vm573, %v3360
      %3369 = vst.msk [vmem:[#allocation2 + $0x38] sm:$0xff] %vm573, %v3361
      %v3370 = vld [vmem:[#allocation2] sm:$0xff]
      %v3371 = vld [vmem:[#allocation2 + $0x8] sm:$0xff]
      %v3372 = vld [vmem:[#allocation2 + $0x10] sm:$0xff]
      %v3373 = vld [vmem:[#allocation2 + $0x18] sm:$0xff]
      %v3374 = vld [vmem:[#allocation2 + $0x20] sm:$0xff]
      %v3375 = vld [vmem:[#allocation2 + $0x28] sm:$0xff]
      %v3376 = vld [vmem:[#allocation2 + $0x30] sm:$0xff]
      %v3377 = vld [vmem:[#allocation2 + $0x38] sm:$0xff]
      %v3378 = vadd.f32 %v555, %v3370
      %v3379 = vadd.f32 %v556, %v3371
      %v3380 = vadd.f32 %v557, %v3372
      %v3381 = vadd.f32 %v558, %v3373
      %v3382 = vadd.f32 %v559, %v3374
      %v3383 = vadd.f32 %v560, %v3375
      %v3384 = vadd.f32 %v561, %v3376
      %v3385 = vadd.f32 %v562, %v3377
      %v3386 = vld [vmem:[%s8] sm:$0x1]
      %v3388 = vlaneseq
      %v3389 = vshrl.u32 %v3388, 7
      %v3390 = vsub.s32 0, %v3389
      %v3391 = vrot.slane %v3386, %v3390
      %v3393 = vadd.f32 %v3378, %v3391
      %v3394 = vadd.f32 %v3379, %v3391
      %v3395 = vadd.f32 %v3380, %v3391
      %v3396 = vadd.f32 %v3381, %v3391
      %v3397 = vadd.f32 %v3382, %v3391
      %v3398 = vadd.f32 %v3383, %v3391
      %v3399 = vadd.f32 %v3384, %v3391
      %v3400 = vadd.f32 %v3385, %v3391
      %v3401 = vld [vmem:[%s9] sm:$0x1]
      %v3402 = vld [vmem:[%s10] sm:$0x1]
      %v3403 = vsel %vm573, %v3393, 0.0
      %3404 = vadd.xlane.f32.xlu0 %v3403
      %v3405 = vpop.xlane.xlu0 %3404
      %v3406 = vsel %vm573, %v3394, 0.0
      %3407 = vadd.xlane.f32.xlu0 %v3406
      %v3408 = vpop.xlane.xlu0 %3407
      %v3409 = vsel %vm573, %v3395, 0.0
      %3410 = vadd.xlane.f32.xlu0 %v3409
      %v3411 = vpop.xlane.xlu0 %3410
      %v3412 = vsel %vm573, %v3396, 0.0
      %3413 = vadd.xlane.f32.xlu0 %v3412
      %v3414 = vpop.xlane.xlu0 %3413
      %v3415 = vsel %vm573, %v3397, 0.0
      %3416 = vadd.xlane.f32.xlu0 %v3415
      %v3417 = vpop.xlane.xlu0 %3416
      %v3418 = vsel %vm573, %v3398, 0.0
      %3419 = vadd.xlane.f32.xlu0 %v3418
      %v3420 = vpop.xlane.xlu0 %3419
      %v3421 = vsel %vm573, %v3399, 0.0
      %3422 = vadd.xlane.f32.xlu0 %v3421
      %v3423 = vpop.xlane.xlu0 %3422
      %v3424 = vsel %vm573, %v3400, 0.0
      %3425 = vadd.xlane.f32.xlu0 %v3424
      %v3426 = vpop.xlane.xlu0 %3425
      %v3427 = vmul.f32 %v3405, %v598
      %v3428 = vmul.f32 %v3408, %v598
      %v3429 = vmul.f32 %v3411, %v598
      %v3430 = vmul.f32 %v3414, %v598
      %v3431 = vmul.f32 %v3417, %v598
      %v3432 = vmul.f32 %v3420, %v598
      %v3433 = vmul.f32 %v3423, %v598
      %v3434 = vmul.f32 %v3426, %v598
      %v3435 = vsub.f32 %v3393, %v3427
      %v3436 = vsub.f32 %v3394, %v3428
      %v3437 = vsub.f32 %v3395, %v3429
      %v3438 = vsub.f32 %v3396, %v3430
      %v3439 = vsub.f32 %v3397, %v3431
      %v3440 = vsub.f32 %v3398, %v3432
      %v3441 = vsub.f32 %v3399, %v3433
      %v3442 = vsub.f32 %v3400, %v3434
      %v3443 = vmul.f32 %v3435, %v3435
      %v3444 = vmul.f32 %v3436, %v3436
      %v3445 = vmul.f32 %v3437, %v3437
      %v3446 = vmul.f32 %v3438, %v3438
      %v3447 = vmul.f32 %v3439, %v3439
      %v3448 = vmul.f32 %v3440, %v3440
      %v3449 = vmul.f32 %v3441, %v3441
      %v3450 = vmul.f32 %v3442, %v3442
      %v3451 = vsel %vm573, %v3443, 0.0
      %3452 = vadd.xlane.f32.xlu0 %v3451
      %v3453 = vpop.xlane.xlu0 %3452
      %v3454 = vsel %vm573, %v3444, 0.0
      %3455 = vadd.xlane.f32.xlu0 %v3454
      %v3456 = vpop.xlane.xlu0 %3455
      %v3457 = vsel %vm573, %v3445, 0.0
      %3458 = vadd.xlane.f32.xlu0 %v3457
      %v3459 = vpop.xlane.xlu0 %3458
      %v3460 = vsel %vm573, %v3446, 0.0
      %3461 = vadd.xlane.f32.xlu0 %v3460
      %v3462 = vpop.xlane.xlu0 %3461
      %v3463 = vsel %vm573, %v3447, 0.0
      %3464 = vadd.xlane.f32.xlu0 %v3463
      %v3465 = vpop.xlane.xlu0 %3464
      %v3466 = vsel %vm573, %v3448, 0.0
      %3467 = vadd.xlane.f32.xlu0 %v3466
      %v3468 = vpop.xlane.xlu0 %3467
      %v3469 = vsel %vm573, %v3449, 0.0
      %3470 = vadd.xlane.f32.xlu0 %v3469
      %v3471 = vpop.xlane.xlu0 %3470
      %v3472 = vsel %vm573, %v3450, 0.0
      %3473 = vadd.xlane.f32.xlu0 %v3472
      %v3474 = vpop.xlane.xlu0 %3473
      %v3475 = vmul.f32 %v3453, %v598
      %v3476 = vmul.f32 %v3456, %v598
      %v3477 = vmul.f32 %v3459, %v598
      %v3478 = vmul.f32 %v3462, %v598
      %v3479 = vmul.f32 %v3465, %v598
      %v3480 = vmul.f32 %v3468, %v598
      %v3481 = vmul.f32 %v3471, %v598
      %v3482 = vmul.f32 %v3474, %v598
      %v3483 = vadd.f32 %v3475, 1e-05
      %v3484 = vadd.f32 %v3476, 1e-05
      %v3485 = vadd.f32 %v3477, 1e-05
      %v3486 = vadd.f32 %v3478, 1e-05
      %v3487 = vadd.f32 %v3479, 1e-05
      %v3488 = vadd.f32 %v3480, 1e-05
      %v3489 = vadd.f32 %v3481, 1e-05
      %v3490 = vadd.f32 %v3482, 1e-05
      %v3491 = vrsqrt.pop %v3483
      %v3492 = vrsqrt.pop %v3484
      %v3493 = vrsqrt.pop %v3485
      %v3494 = vrsqrt.pop %v3486
      %v3495 = vrsqrt.pop %v3487
      %v3496 = vrsqrt.pop %v3488
      %v3497 = vrsqrt.pop %v3489
      %v3498 = vrsqrt.pop %v3490
      %v3499 = vmul.f32 %v3435, %v3491
      %v3500 = vmul.f32 %v3436, %v3492
      %v3501 = vmul.f32 %v3437, %v3493
      %v3502 = vmul.f32 %v3438, %v3494
      %v3503 = vmul.f32 %v3439, %v3495
      %v3504 = vmul.f32 %v3440, %v3496
      %v3505 = vmul.f32 %v3441, %v3497
      %v3506 = vmul.f32 %v3442, %v3498
      %v3508 = vlaneseq
      %v3509 = vshrl.u32 %v3508, 7
      %v3510 = vsub.s32 0, %v3509
      %v3511 = vrot.slane %v3401, %v3510
      %v3513 = vmul.f32 %v3499, %v3511
      %v3514 = vmul.f32 %v3500, %v3511
      %v3515 = vmul.f32 %v3501, %v3511
      %v3516 = vmul.f32 %v3502, %v3511
      %v3517 = vmul.f32 %v3503, %v3511
      %v3518 = vmul.f32 %v3504, %v3511
      %v3519 = vmul.f32 %v3505, %v3511
      %v3520 = vmul.f32 %v3506, %v3511
      %v3522 = vlaneseq
      %v3523 = vshrl.u32 %v3522, 7
      %v3524 = vsub.s32 0, %v3523
      %v3525 = vrot.slane %v3402, %v3524
      %v3527 = vadd.f32 %v3513, %v3525
      %v3528 = vadd.f32 %v3514, %v3525
      %v3529 = vadd.f32 %v3515, %v3525
      %v3530 = vadd.f32 %v3516, %v3525
      %v3531 = vadd.f32 %v3517, %v3525
      %v3532 = vadd.f32 %v3518, %v3525
      %v3533 = vadd.f32 %v3519, %v3525
      %v3534 = vadd.f32 %v3520, %v3525
      %v3535 = vpack.c.bf16 %v3528, %v3527
      %v3536 = vpack.c.bf16 %v3530, %v3529
      %v3537 = vpack.c.bf16 %v3532, %v3531
      %v3538 = vpack.c.bf16 %v3534, %v3533
      %v3539 = vld [vmem:[%s11] sm:$0xf]
      %v3540 = vld [vmem:[%s11 + $0x4] sm:$0xf]
      %v3541 = vld [vmem:[%s11 + $0x8] sm:$0xf]
      %v3542 = vld [vmem:[%s11 + $0xc] sm:$0xf]
      %v3543 = vld [vmem:[%s12] sm:$0x1]
      %v3545 = vlaneseq
      %v3546 = vshrl.u32 %v3545, 7
      %v3547 = vsub.s32 0, %v3546
      %v3548 = vrot.slane %v3543, %v3547
      %v3554 = vunpack.c.l.b16 %v3539
      %v3555 = vunpack.c.l.b16 %v3540
      %v3556 = vunpack.c.l.b16 %v3541
      %v3557 = vunpack.c.l.b16 %v3542
      %v3558 = vpack.c.b16 %v3555, %v3554
      %v3559 = vpack.c.b16 %v3557, %v3556
      %v3563 = vsel %vm573, %v3535, 0
      %v3566 = vsel %vm573, %v3536, 0
      %v3569 = vsel %vm573, %v3537, 0
      %v3572 = vsel %vm573, %v3538, 0
      %3574 = vmatprep.subr.bf16.mxu0 0
      %3575 = vmatpush1.bf16.msra.mxu0 0
      %3576 = vmatprep.subr.bf16.mxu0 0
      %3577 = vmatpush1.bf16.msra.mxu0 0
      %3578 = vmatprep.subr.bf16.mxu0 0
      %3579 = vmatpush1.bf16.msra.mxu0 0
      %3580 = vmatprep.subr.bf16.mxu0 0
      %3581 = vmatpush1.bf16.msra.mxu0 0
      %3582 = vmatprep.subr.bf16.mxu0 0
      %3583 = vmatpush1.bf16.msra.mxu0 0
      %3584 = vmatprep.subr.bf16.mxu0 0
      %3585 = vmatpush1.bf16.msra.mxu0 0
      %3586 = vmatprep.subr.bf16.mxu0 0
      %3587 = vmatpush1.bf16.msra.mxu0 %v3559
      %3588 = vmatprep.subr.bf16.mxu0 0
      %3589 = vmatpush1.bf16.msra.mxu0 %v3558
      %3590 = vmatprep.subr.bf16.mxu0 0
      %3591 = vmatpush2.bf16.msra.mxu0 0
      %3592 = vmatprep.subr.bf16.mxu0 0
      %3593 = vmatpush2.bf16.msra.mxu0 0
      %3594 = vmatprep.subr.bf16.mxu0 0
      %3595 = vmatpush2.bf16.msra.mxu0 0
      %3596 = vmatprep.subr.bf16.mxu0 0
      %3597 = vmatpush2.bf16.msra.mxu0 0
      %3598 = vmatprep.subr.bf16.mxu0 0
      %3599 = vmatpush2.bf16.msra.mxu0 0
      %3600 = vmatprep.subr.bf16.mxu0 0
      %3601 = vmatpush2.bf16.msra.mxu0 0
      %3602 = vmatprep.subr.bf16.mxu0 0
      %3603 = vmatpush2.bf16.msra.mxu0 0
      %3604 = vmatprep.subr.bf16.mxu0 0
      %3605 = vmatpush2.bf16.msra.mxu0 0
      %3606 = vmatprep.mubr.bf16.mxu0 0
      %3607 = vmatmul.mubr.bf16.gmra.mxu0 %v3563
      %v3608 = vpop.f32.mrf.mxu0
      %v3609 = vadd.f32 %v3548, %v3608
      %v3610 = vpop.f32.mrf.mxu0
      %v3611 = vpop.f32.mrf.mxu0
      %v3612 = vadd.f32 %v3548, %v3611
      %v3613 = vpop.f32.mrf.mxu0
      %3614 = vmatprep.mubr.bf16.mxu0 0
      %3615 = vmatmul.mubr.bf16.gmra.mxu0 %v3566
      %v3616 = vpop.f32.mrf.mxu0
      %v3617 = vadd.f32 %v3548, %v3616
      %v3618 = vpop.f32.mrf.mxu0
      %v3619 = vpop.f32.mrf.mxu0
      %v3620 = vadd.f32 %v3548, %v3619
      %v3621 = vpop.f32.mrf.mxu0
      %3622 = vmatprep.mubr.bf16.mxu0 0
      %3623 = vmatmul.mubr.bf16.gmra.mxu0 %v3569
      %v3624 = vpop.f32.mrf.mxu0
      %v3625 = vadd.f32 %v3548, %v3624
      %v3626 = vpop.f32.mrf.mxu0
      %v3627 = vpop.f32.mrf.mxu0
      %v3628 = vadd.f32 %v3548, %v3627
      %v3629 = vpop.f32.mrf.mxu0
      %3630 = vmatprep.mubr.bf16.mxu0 0
      %3631 = vmatmul.mubr.bf16.gmra.mxu0 %v3572
      %v3632 = vpop.f32.mrf.mxu0
      %v3633 = vadd.f32 %v3548, %v3632
      %v3634 = vpop.f32.mrf.mxu0
      %v3635 = vpop.f32.mrf.mxu0
      %v3636 = vadd.f32 %v3548, %v3635
      %v3637 = vpop.f32.mrf.mxu0
      %3638 = vdwg.mxu0
      %v3639 = vmul.f32 %v3609, 0.5
      %v3640 = vmul.f32 %v3612, 0.5
      %v3641 = vmul.f32 %v3617, 0.5
      %v3642 = vmul.f32 %v3620, 0.5
      %v3643 = vmul.f32 %v3625, 0.5
      %v3644 = vmul.f32 %v3628, 0.5
      %v3645 = vmul.f32 %v3633, 0.5
      %v3646 = vmul.f32 %v3636, 0.5
      %v3647 = vmul.f32 %v3609, 0.70710677
      %v3648 = vmul.f32 %v3612, 0.70710677
      %v3649 = vmul.f32 %v3617, 0.70710677
      %v3650 = vmul.f32 %v3620, 0.70710677
      %v3651 = vmul.f32 %v3625, 0.70710677
      %v3652 = vmul.f32 %v3628, 0.70710677
      %v3653 = vmul.f32 %v3633, 0.70710677
      %v3654 = vmul.f32 %v3636, 0.70710677
      %v3655 = verf.f32.pop %v3647
      %v3656 = verf.f32.pop %v3648
      %v3657 = verf.f32.pop %v3649
      %v3658 = verf.f32.pop %v3650
      %v3659 = verf.f32.pop %v3651
      %v3660 = verf.f32.pop %v3652
      %v3661 = verf.f32.pop %v3653
      %v3662 = verf.f32.pop %v3654
      %v3663 = vadd.f32 %v3655, 1.0
      %v3664 = vadd.f32 %v3656, 1.0
      %v3665 = vadd.f32 %v3657, 1.0
      %v3666 = vadd.f32 %v3658, 1.0
      %v3667 = vadd.f32 %v3659, 1.0
      %v3668 = vadd.f32 %v3660, 1.0
      %v3669 = vadd.f32 %v3661, 1.0
      %v3670 = vadd.f32 %v3662, 1.0
      %v3671 = vmul.f32 %v3639, %v3663
      %v3672 = vmul.f32 %v3640, %v3664
      %v3673 = vmul.f32 %v3641, %v3665
      %v3674 = vmul.f32 %v3642, %v3666
      %v3675 = vmul.f32 %v3643, %v3667
      %v3676 = vmul.f32 %v3644, %v3668
      %v3677 = vmul.f32 %v3645, %v3669
      %v3678 = vmul.f32 %v3646, %v3670
      %v3679 = vpack.c.bf16 %v3672, %v3671
      %v3680 = vpack.c.bf16 %v3674, %v3673
      %v3681 = vpack.c.bf16 %v3676, %v3675
      %v3682 = vpack.c.bf16 %v3678, %v3677
      %v3683 = vld [vmem:[%s13] sm:$0xf]
      %v3684 = vld [vmem:[%s13 + $0x4] sm:$0xf]
      %v3685 = vld [vmem:[%s13 + $0x8] sm:$0xf]
      %v3686 = vld [vmem:[%s13 + $0xc] sm:$0xf]
      %v3687 = vld [vmem:[%s13 + $0x10] sm:$0xf]
      %v3688 = vld [vmem:[%s13 + $0x14] sm:$0xf]
      %v3689 = vld [vmem:[%s13 + $0x18] sm:$0xf]
      %v3690 = vld [vmem:[%s13 + $0x1c] sm:$0xf]
      %v3691 = vld [vmem:[%s13 + $0x20] sm:$0xf]
      %v3692 = vld [vmem:[%s13 + $0x24] sm:$0xf]
      %v3693 = vld [vmem:[%s13 + $0x28] sm:$0xf]
      %v3694 = vld [vmem:[%s13 + $0x2c] sm:$0xf]
      %v3695 = vld [vmem:[%s13 + $0x30] sm:$0xf]
      %v3696 = vld [vmem:[%s13 + $0x34] sm:$0xf]
      %v3697 = vld [vmem:[%s13 + $0x38] sm:$0xf]
      %v3698 = vld [vmem:[%s13 + $0x3c] sm:$0xf]
      %v3699 = vld [vmem:[%s14] sm:$0x1]
      %v3701 = vlaneseq
      %v3702 = vshrl.u32 %v3701, 7
      %v3703 = vsub.s32 0, %v3702
      %v3704 = vrot.slane %v3699, %v3703
      %v3722 = vunpack.c.l.b16 %v3683
      %v3723 = vunpack.c.l.b16 %v3684
      %v3724 = vunpack.c.l.b16 %v3685
      %v3725 = vunpack.c.l.b16 %v3686
      %v3726 = vunpack.c.l.b16 %v3687
      %v3727 = vunpack.c.l.b16 %v3688
      %v3728 = vunpack.c.l.b16 %v3689
      %v3729 = vunpack.c.l.b16 %v3690
      %v3730 = vunpack.c.l.b16 %v3691
      %v3731 = vunpack.c.l.b16 %v3692
      %v3732 = vunpack.c.l.b16 %v3693
      %v3733 = vunpack.c.l.b16 %v3694
      %v3734 = vunpack.c.l.b16 %v3695
      %v3735 = vunpack.c.l.b16 %v3696
      %v3736 = vunpack.c.l.b16 %v3697
      %v3737 = vunpack.c.l.b16 %v3698
      %v3738 = vpack.c.b16 %v3723, %v3722
      %v3739 = vpack.c.b16 %v3725, %v3724
      %v3740 = vpack.c.b16 %v3727, %v3726
      %v3741 = vpack.c.b16 %v3729, %v3728
      %v3742 = vpack.c.b16 %v3731, %v3730
      %v3743 = vpack.c.b16 %v3733, %v3732
      %v3744 = vpack.c.b16 %v3735, %v3734
      %v3745 = vpack.c.b16 %v3737, %v3736
      %3754 = vmatprep.subr.bf16.mxu0 0
      %3755 = vmatpush1.bf16.msra.mxu0 %v3745
      %3756 = vmatprep.subr.bf16.mxu0 0
      %3757 = vmatpush1.bf16.msra.mxu0 %v3744
      %3758 = vmatprep.subr.bf16.mxu0 0
      %3759 = vmatpush1.bf16.msra.mxu0 %v3743
      %3760 = vmatprep.subr.bf16.mxu0 0
      %3761 = vmatpush1.bf16.msra.mxu0 %v3742
      %3762 = vmatprep.subr.bf16.mxu0 0
      %3763 = vmatpush1.bf16.msra.mxu0 %v3741
      %3764 = vmatprep.subr.bf16.mxu0 0
      %3765 = vmatpush1.bf16.msra.mxu0 %v3740
      %3766 = vmatprep.subr.bf16.mxu0 0
      %3767 = vmatpush1.bf16.msra.mxu0 %v3739
      %3768 = vmatprep.subr.bf16.mxu0 0
      %3769 = vmatpush1.bf16.msra.mxu0 %v3738
      %3770 = vmatprep.subr.bf16.mxu0 0
      %3771 = vmatpush2.bf16.msra.mxu0 0
      %3772 = vmatprep.subr.bf16.mxu0 0
      %3773 = vmatpush2.bf16.msra.mxu0 0
      %3774 = vmatprep.subr.bf16.mxu0 0
      %3775 = vmatpush2.bf16.msra.mxu0 0
      %3776 = vmatprep.subr.bf16.mxu0 0
      %3777 = vmatpush2.bf16.msra.mxu0 0
      %3778 = vmatprep.subr.bf16.mxu0 0
      %3779 = vmatpush2.bf16.msra.mxu0 0
      %3780 = vmatprep.subr.bf16.mxu0 0
      %3781 = vmatpush2.bf16.msra.mxu0 0
      %3782 = vmatprep.subr.bf16.mxu0 0
      %3783 = vmatpush2.bf16.msra.mxu0 0
      %3784 = vmatprep.subr.bf16.mxu0 0
      %3785 = vmatpush2.bf16.msra.mxu0 0
      %3786 = vmatprep.mubr.bf16.mxu0 0
      %3787 = vmatmul.mubr.bf16.gmra.mxu0 %v3679
      %v3788 = vpop.f32.mrf.mxu0
      %v3789 = vadd.f32 %v3704, %v3788
      %v3790 = vpop.f32.mrf.mxu0
      %v3791 = vpop.f32.mrf.mxu0
      %v3792 = vadd.f32 %v3704, %v3791
      %v3793 = vpop.f32.mrf.mxu0
      %3794 = vmatprep.mubr.bf16.mxu0 0
      %3795 = vmatmul.mubr.bf16.gmra.mxu0 %v3680
      %v3796 = vpop.f32.mrf.mxu0
      %v3797 = vadd.f32 %v3704, %v3796
      %v3798 = vpop.f32.mrf.mxu0
      %v3799 = vpop.f32.mrf.mxu0
      %v3800 = vadd.f32 %v3704, %v3799
      %v3801 = vpop.f32.mrf.mxu0
      %3802 = vmatprep.mubr.bf16.mxu0 0
      %3803 = vmatmul.mubr.bf16.gmra.mxu0 %v3681
      %v3804 = vpop.f32.mrf.mxu0
      %v3805 = vadd.f32 %v3704, %v3804
      %v3806 = vpop.f32.mrf.mxu0
      %v3807 = vpop.f32.mrf.mxu0
      %v3808 = vadd.f32 %v3704, %v3807
      %v3809 = vpop.f32.mrf.mxu0
      %3810 = vmatprep.mubr.bf16.mxu0 0
      %3811 = vmatmul.mubr.bf16.gmra.mxu0 %v3682
      %v3812 = vpop.f32.mrf.mxu0
      %v3813 = vadd.f32 %v3704, %v3812
      %v3814 = vpop.f32.mrf.mxu0
      %v3815 = vpop.f32.mrf.mxu0
      %v3816 = vadd.f32 %v3704, %v3815
      %v3817 = vpop.f32.mrf.mxu0
      %3818 = vdwg.mxu0
      %v3819 = vadd.f32 %v3393, %v3789
      %v3820 = vadd.f32 %v3394, %v3792
      %v3821 = vadd.f32 %v3395, %v3797
      %v3822 = vadd.f32 %v3396, %v3800
      %v3823 = vadd.f32 %v3397, %v3805
      %v3824 = vadd.f32 %v3398, %v3808
      %v3825 = vadd.f32 %v3399, %v3813
      %v3826 = vadd.f32 %v3400, %v3816
      %3827 = vst.msk [vmem:[%s552] sm:$0xff] %vm573, %v3819
      %3828 = vst.msk [vmem:[%s552 + $0x8] sm:$0xff] %vm573, %v3820
      %3829 = vst.msk [vmem:[%s552 + $0x10] sm:$0xff] %vm573, %v3821
      %3830 = vst.msk [vmem:[%s552 + $0x18] sm:$0xff] %vm573, %v3822
      %3831 = vst.msk [vmem:[%s552 + $0x20] sm:$0xff] %vm573, %v3823
      %3832 = vst.msk [vmem:[%s552 + $0x28] sm:$0xff] %vm573, %v3824
      %3833 = vst.msk [vmem:[%s552 + $0x30] sm:$0xff] %vm573, %v3825
      %3834 = vst.msk [vmem:[%s552 + $0x38] sm:$0xff] %vm573, %v3826
      %s3835 = smul.u32 8, %s31
      %p3836 = scmp.lt.s32.totalorder %s30, 1
      %s3837 = scalar_select %p3836, %s30, 1
      %p3838 = scmp.lt.s32.totalorder %s3835, 7
      %s3839 = scalar_select %p3838, %s3835, 7
      %s3840 = smul.addr %s3837, 8
      %s3841 = sadd.s32 %s3839, %s3840
      %s3842 = smul.addr %s3841, 8
      %s3843 = scalar_lea.vmem %s15, %s3842
      // Predicated region
      $region81: #{tpu_custom_call.1} parent=79 // pred_check
        %p3844 = pneg %p385
      $region82: #{tpu_custom_call.1} parent=79 // pred_check_branch
        %3846 = sbr.rel (%p3844) target = $region84
      $region83: #{tpu_custom_call.1} parent=79 // pred_region
        %s3847 = smul.u32 8, %s31
      $region84: #{tpu_custom_call.1} parent=79 // pred_fallthru
        _
    $region80: #{tpu_custom_call.1} parent=5 // pred_fallthru
      _
    %p3848 = scmp.le.s32.totalorder 2, %s21
    // Predicated region
    $region85: #{tpu_custom_call.1} parent=5 // pred_check
      %p3849 = pneg %p3848
    $region86: #{tpu_custom_call.1} parent=5 // pred_check_branch
      %3851 = sbr.rel (%p3849) target = $region88
    $region87: #{tpu_custom_call.1} parent=5 // pred_region
      %s3852 = ssub.s32 %s21, 2
      // Predicated region
      $region89: #{tpu_custom_call.1} parent=87 // pred_check
        %p3853 = pneg %p391
      $region90: #{tpu_custom_call.1} parent=87 // pred_check_branch
        %3855 = sbr.rel (%p3853) target = $region92
      $region91: #{tpu_custom_call.1} parent=87 // pred_region
        %s3856 = smul.u32 8, %s33
        %p3857 = scmp.lt.s32.totalorder %s32, 1
        %s3858 = scalar_select %p3857, %s32, 1
        %p3859 = scmp.lt.s32.totalorder %s3856, 7
        %s3860 = scalar_select %p3859, %s3856, 7
        %s3861 = smul.addr %s3858, 8
        %s3862 = sadd.s32 %s3860, %s3861
        %s3863 = smul.addr %s3862, 8
        %s3864 = scalar_lea.vmem %s15, %s3863
      $region92: #{tpu_custom_call.1} parent=87 // pred_fallthru
        _
    $region88: #{tpu_custom_call.1} parent=5 // pred_fallthru
      _
  $region6: #{tpu_custom_call.1} parent=0 // loop_footer
    %s25 = sadd.s32 1, %s21
  $region7: #{tpu_custom_call.1} parent=0 // loop_footer_branch
    %20 = sbr.rel target = $region3
  $region8: #{tpu_custom_call.1} parent=0 // loop_exit
    _

</llo_original>
